<compile_context>
chip_gen: v7x
topology: tpu7x:2x2x1
jax: 0.10.0
libtpu: 0.0.40
codegen_flags: <defaults>
</compile_context>

<pallas_src>
import numpy as np

import jax
import jax.numpy as jnp
from jax.experimental import pallas as pl
from jax.experimental.pallas import tpu as pltpu


def _round_up(a, m):
    return (a + m - 1) // m * m


# ------------------------------ Pallas kernel ------------------------------ #

def _lenet_kernel(x_ref, t1_ref, b1_ref, t2_ref, b2_ref,
                  wf1_ref, bf1_ref, wf2_ref, bf2_ref, wf3_ref, bf3_ref,
                  out_ref):
    f32 = jnp.float32
    B = x_ref.shape[0] // 28          # images per grid step (static, multiple of 8)

    # ---- conv1 (1->6, 5x5) fused with its 2x2 max-pool --------------------- #
    # x_ref row layout: h*B + b.  For tap di, rows [di*B, (di+24)*B) give conv output
    # rows h = 0..23 for every image.  Output columns ordered (w & 1, w // 2, c).
    acc = None
    for di in range(5):
        lhs = x_ref[pl.ds(di * B, 24 * B), :]                       # (24B, 28)
        term = jnp.dot(lhs, t1_ref[di], preferred_element_type=f32)  # (24B, 144)
        acc = term if acc is None else acc + term
    acc = acc.reshape(12, 2 * B, 144)                               # tile-aligned split (2B % 8 == 0)
    hp = jnp.maximum(acc[:, :B, :], acc[:, B:, :])                  # H-pool: rows 2t vs 2t+1
    p1 = jnp.maximum(jnp.maximum(hp[:, :, :72], hp[:, :, 72:]) + b1_ref[...], 0.0)
    p1 = p1.reshape(12 * B, 72)                                     # row = h1*B + b, col = w1*6 + c

    # ---- conv2 (6->16, 5x5) fused with its 2x2 max-pool --------------------- #
    acc2 = None
    for di in range(5):
        lhs = p1[di * B:(di + 8) * B, :]                            # (8B, 72), rows h1 = h2 + di
        term = jnp.dot(lhs, t2_ref[di], preferred_element_type=f32)  # (8B, 128)
        acc2 = term if acc2 is None else acc2 + term
    acc2 = acc2.reshape(4, 2 * B, 128)
    hp2 = jnp.maximum(acc2[:, :B, :], acc2[:, B:, :])               # H-pool
    p2 = jnp.maximum(jnp.maximum(hp2[:, :, :64], hp2[:, :, 64:]) + b2_ref[...], 0.0)
    p2 = p2.reshape(4 * B, 64)                                      # row = h*B + b, col = w*16 + o

    # ---- fc1 -> relu -> fc2 -> relu -> fc3 (lane-padded to 128) ------------- #
    z = None
    for h in range(4):                                              # contract all 256 features
        term = jnp.dot(p2[h * B:(h + 1) * B, :], wf1_ref[h], preferred_element_type=f32)
        z = term if z is None else z + term
    z = jnp.maximum(z + bf1_ref[...], 0.0)                          # (B, 120)
    z = jnp.maximum(jnp.dot(z, wf2_ref[...], preferred_element_type=f32) + bf2_ref[...], 0.0)
    z = jnp.dot(z, wf3_ref[...], preferred_element_type=f32) + bf3_ref[...]   # (B, 128)
    out_ref[...] = z.astype(out_ref.dtype)


# ------------------------------ forward wrapper ----------------------------- #

def lenet_forward(x_nchw, packed, block_b=64):
    """block_b: images per grid step (rounded to a multiple of 8; use 128-256 for large
    production batches to saturate the 128/256-wide MXU)."""
    n = x_nchw.shape[0]
    B = _round_up(min(block_b, _round_up(n, 8)), 8)
    padded_n = _round_up(n, B)
    nb = padded_n // B

    x = x_nchw.reshape(n, 28, 28)                                   # single gray channel
    if padded_n != n:
        x = jnp.pad(x, ((0, padded_n - n), (0, 0), (0, 0)))         # tail block padded with zeros
    # Per block: row = h*B + b  ->  (nb, 28*B, 28); one contiguous HBM chunk per grid step.
    x = x.reshape(nb, B, 28, 28).transpose(0, 2, 1, 3).reshape(nb, 28 * B, 28)

    out = pl.pallas_call(
        _lenet_kernel,
        out_shape=jax.ShapeDtypeStruct((padded_n, 128), jnp.float32),
        grid=(nb,),
        in_specs=[
            pl.BlockSpec((None, 28 * B, 28), lambda g: (g, 0, 0)),   # image block (per grid step)
            pl.BlockSpec((5, 28, 144), lambda g: (0, 0, 0)),         # conv1 Toeplitz (resident)
            pl.BlockSpec((1, 72), lambda g: (0, 0)),                 # conv1 bias (pool-tiled)
            pl.BlockSpec((5, 72, 128), lambda g: (0, 0, 0)),         # conv2 Toeplitz (resident)
            pl.BlockSpec((1, 64), lambda g: (0, 0)),                 # conv2 bias (pool-tiled)
            pl.BlockSpec((4, 64, 120), lambda g: (0, 0, 0)),         # fc1 weight (permuted)
            pl.BlockSpec((1, 120), lambda g: (0, 0)),
            pl.BlockSpec((120, 84), lambda g: (0, 0)),               # fc2 weight (pre-transposed)
            pl.BlockSpec((1, 84), lambda g: (0, 0)),
            pl.BlockSpec((84, 128), lambda g: (0, 0)),               # fc3 weight (lane-padded)
            pl.BlockSpec((1, 128), lambda g: (0, 0)),
        ],
        out_specs=pl.BlockSpec((B, 128), lambda g: (g, 0)),
        compiler_params=pltpu.CompilerParams(
            dimension_semantics=("parallel",),
            vmem_limit_bytes=32 * 1024 * 1024),
    )(x, packed["t1"], packed["b1"], packed["t2"], packed["b2"],
      packed["w_fc1"], packed["b_fc1"], packed["w_fc2"], packed["b_fc2"],
      packed["w_fc3"], packed["b_fc3"])
    return out[:n, :10]


# -------------------------- one-time parameter packing ----------------------- #

def prepare_params(params):
    """Host-side, one-time packing: Toeplitz conv matrices with pool/flatten-aware column
    orders, pool-tiled biases, pre-transposed/permuted FC weights (fc3 lane-padded to 128)."""
    c1_w = np.asarray(params["c1_w"], np.float32)     # (6, 1, 5, 5)
    c1_b = np.asarray(params["c1_b"], np.float32)     # (6,)
    c3_w = np.asarray(params["c3_w"], np.float32)     # (16, 6, 5, 5)
    c3_b = np.asarray(params["c3_b"], np.float32)     # (16,)
    fc1_w = np.asarray(params["fc1_w"], np.float32)   # (120, 256)
    fc1_b = np.asarray(params["fc1_b"], np.float32)
    fc2_w = np.asarray(params["fc2_w"], np.float32)   # (84, 120)
    fc2_b = np.asarray(params["fc2_b"], np.float32)
    fc3_w = np.asarray(params["fc3_w"], np.float32)   # (10, 84)
    fc3_b = np.asarray(params["fc3_b"], np.float32)

    # conv1: out[., a*72 + wp*6 + c] = sum_di sum_dj x[h+di, (2*wp+a)+dj] * c1_w[c, 0, di, dj]
    t1 = np.zeros((5, 28, 144), np.float32)
    for di in range(5):
        for a in range(2):
            for wp in range(12):
                w_out = 2 * wp + a
                col = a * 72 + wp * 6
                for dj in range(5):
                    t1[di, w_out + dj, col:col + 6] = c1_w[:, 0, di, dj]

    # conv2: in cols = w_in*6 + ci ; out cols = a*64 + wp*16 + o ; w_out = 2*wp + a
    t2 = np.zeros((5, 72, 128), np.float32)
    for di in range(5):
        for a in range(2):
            for wp in range(4):
                w_out = 2 * wp + a
                col = a * 64 + wp * 16
                for dj in range(5):
                    for ci in range(6):
                        t2[di, (w_out + dj) * 6 + ci, col:col + 16] = c3_w[:, ci, di, dj]

    # fc1: kernel sees features as p2[h, w*16 + o]; PyTorch flatten order is o*16 + h*4 + w.
    w_fc1 = np.zeros((4, 64, 120), np.float32)
    for h in range(4):
        for w in range(4):
            for o in range(16):
                w_fc1[h, w * 16 + o, :] = fc1_w[:, o * 16 + h * 4 + w]

    # fc3: pre-transposed and lane-padded to 128 (unmasked, lane-dense output store).
    w_fc3 = np.zeros((84, 128), np.float32)
    w_fc3[:, :10] = fc3_w.T
    b_fc3 = np.zeros((1, 128), np.float32)
    b_fc3[0, :10] = fc3_b

    return {
        "t1": jnp.asarray(t1),
        "b1": jnp.asarray(np.tile(c1_b, 12).reshape(1, 72)),
        "t2": jnp.asarray(t2),
        "b2": jnp.asarray(np.tile(c3_b, 4).reshape(1, 64)),
        "w_fc1": jnp.asarray(w_fc1),
        "b_fc1": jnp.asarray(fc1_b.reshape(1, 120)),
        "w_fc2": jnp.asarray(fc2_w.T.copy()),
        "b_fc2": jnp.asarray(fc2_b.reshape(1, 84)),
        "w_fc3": jnp.asarray(w_fc3),
        "b_fc3": jnp.asarray(b_fc3),
    }


def init_params(key):
    """Deterministic PyTorch-shaped parameters (uniform(-1/sqrt(fan_in), +1/sqrt(fan_in)))."""
    ks = jax.random.split(key, 10)

    def u(k, shape, fan_in):
        bound = 1.0 / (fan_in ** 0.5)
        return jax.random.uniform(k, shape, jnp.float32, -bound, bound)

    return {
        "c1_w": u(ks[0], (6, 1, 5, 5), 1 * 5 * 5),
        "c1_b": u(ks[1], (6,), 1 * 5 * 5),
        "c3_w": u(ks[2], (16, 6, 5, 5), 6 * 5 * 5),
        "c3_b": u(ks[3], (16,), 6 * 5 * 5),
        "fc1_w": u(ks[4], (120, 256), 256),
        "fc1_b": u(ks[5], (120,), 256),
        "fc2_w": u(ks[6], (84, 120), 120),
        "fc2_b": u(ks[7], (84,), 120),
        "fc3_w": u(ks[8], (10, 84), 84),
        "fc3_b": u(ks[9], (10,), 84),
    }


# ------------------------------ plain-JAX reference -------------------------- #

def lenet_reference(x_nchw, params):
    """Pure-JAX reference with PyTorch semantics (for the in-script correctness check)."""
    hi = jax.lax.Precision.HIGHEST

    def conv(x, w, b):
        y = jax.lax.conv_general_dilated(
            x, w, window_strides=(1, 1), padding="VALID",
            dimension_numbers=("NCHW", "OIHW", "NCHW"), precision=hi)
        return y + b[None, :, None, None]

    def pool(x):
        n, c, h, w = x.shape
        return jnp.max(x.reshape(n, c, h // 2, 2, w // 2, 2), axis=(3, 5))

    x = pool(jax.nn.relu(conv(x_nchw, params["c1_w"], params["c1_b"])))
    x = pool(jax.nn.relu(conv(x, params["c3_w"], params["c3_b"])))
    x = x.reshape(x.shape[0], -1)                     # (N, 256) in PyTorch (C, H, W) order
    x = jax.nn.relu(jnp.dot(x, params["fc1_w"].T, precision=hi) + params["fc1_b"])
    x = jax.nn.relu(jnp.dot(x, params["fc2_w"].T, precision=hi) + params["fc2_b"])
    return jnp.dot(x, params["fc3_w"].T, precision=hi) + params["fc3_b"]


if __name__ == "__main__":
    key = jax.random.PRNGKey(0)
    pkey, xkey = jax.random.split(key)
    params = init_params(pkey)
    packed = prepare_params(params)

    # LeNet's fc1 (16*4*4 inputs) forces a 1x28x28 image; batch=2 keeps it small.
    x = jax.random.normal(xkey, (2, 1, 28, 28), jnp.float32)

    out = jax.block_until_ready(jax.jit(lenet_forward)(x, packed))
    assert out.shape == (2, 10) and out.dtype == jnp.float32

    ref = jax.block_until_ready(jax.jit(lenet_reference)(x, params))
    max_err = float(jnp.max(jnp.abs(out - ref)))
    assert max_err < 1e-2, f"kernel/reference mismatch, max abs err = {max_err}"

    # Exercise the multi-step grid + batch-tail padding path (20 images, blocks of 8 -> 3 steps).
    x2 = jax.random.normal(jax.random.PRNGKey(1), (20, 1, 28, 28), jnp.float32)
    out2 = jax.block_until_ready(
        jax.jit(lambda a, p: lenet_forward(a, p, block_b=8))(x2, packed))
    ref2 = jax.block_until_ready(jax.jit(lenet_reference)(x2, params))
    max_err2 = float(jnp.max(jnp.abs(out2 - ref2)))
    assert max_err2 < 1e-2, f"multi-block kernel/reference mismatch, max abs err = {max_err2}"

    print("KERNEL_OK")
</pallas_src>

<mosaic_0001>
module attributes {stable_mosaic.version = 11 : i64} {
  func.func @_lenet_kernel(%arg0: i32, %arg1: memref<1x224x28xf32, #tpu.memory_space<vmem>>, %arg2: memref<5x28x144xf32, #tpu.memory_space<vmem>>, %arg3: memref<1x72xf32, #tpu.memory_space<vmem>>, %arg4: memref<5x72x128xf32, #tpu.memory_space<vmem>>, %arg5: memref<1x64xf32, #tpu.memory_space<vmem>>, %arg6: memref<4x64x120xf32, #tpu.memory_space<vmem>>, %arg7: memref<1x120xf32, #tpu.memory_space<vmem>>, %arg8: memref<120x84xf32, #tpu.memory_space<vmem>>, %arg9: memref<1x84xf32, #tpu.memory_space<vmem>>, %arg10: memref<84x128xf32, #tpu.memory_space<vmem>>, %arg11: memref<1x128xf32, #tpu.memory_space<vmem>>, %arg12: memref<8x128xf32, #tpu.memory_space<vmem>>) attributes {dimension_semantics = [#tpu.dimension_semantics<parallel>], iteration_bounds = array<i64: 1>, scalar_prefetch = 0 : i64, scratch_operands = 0 : i64, tpu.core_type = #tpu.core_type<tc>, window_params = [{transform_indices = @transform_0, window_bounds = array<i64: 1, 224, 28>}, {pipeline_mode = #tpu.pipeline_mode<synchronous>, transform_indices = @transform_1, window_bounds = array<i64: 5, 28, 144>}, {pipeline_mode = #tpu.pipeline_mode<synchronous>, transform_indices = @transform_2, window_bounds = array<i64: 1, 72>}, {pipeline_mode = #tpu.pipeline_mode<synchronous>, transform_indices = @transform_3, window_bounds = array<i64: 5, 72, 128>}, {pipeline_mode = #tpu.pipeline_mode<synchronous>, transform_indices = @transform_4, window_bounds = array<i64: 1, 64>}, {pipeline_mode = #tpu.pipeline_mode<synchronous>, transform_indices = @transform_5, window_bounds = array<i64: 4, 64, 120>}, {pipeline_mode = #tpu.pipeline_mode<synchronous>, transform_indices = @transform_6, window_bounds = array<i64: 1, 120>}, {pipeline_mode = #tpu.pipeline_mode<synchronous>, transform_indices = @transform_7, window_bounds = array<i64: 120, 84>}, {pipeline_mode = #tpu.pipeline_mode<synchronous>, transform_indices = @transform_8, window_bounds = array<i64: 1, 84>}, {pipeline_mode = #tpu.pipeline_mode<synchronous>, transform_indices = @transform_9, window_bounds = array<i64: 84, 128>}, {pipeline_mode = #tpu.pipeline_mode<synchronous>, transform_indices = @transform_10, window_bounds = array<i64: 1, 128>}, {transform_indices = @transform_11, window_bounds = array<i64: 8, 128>}]} {
    %c0 = arith.constant 0 : index
    %c0_0 = arith.constant 0 : index
    %c0_1 = arith.constant 0 : index
    %0 = vector.load %arg1[%c0, %c0_0, %c0_1] : memref<1x224x28xf32, #tpu.memory_space<vmem>>, vector<1x192x28xf32>
    %1 = vector.shape_cast %0 : vector<1x192x28xf32> to vector<192x28xf32>
    %c0_2 = arith.constant 0 : index
    %c0_3 = arith.constant 0 : index
    %c0_4 = arith.constant 0 : index
    %2 = vector.load %arg2[%c0_2, %c0_3, %c0_4] : memref<5x28x144xf32, #tpu.memory_space<vmem>>, vector<1x28x144xf32>
    %3 = vector.shape_cast %2 : vector<1x28x144xf32> to vector<28x144xf32>
    %cst = arith.constant dense<0.000000e+00> : vector<192x144xf32>
    %4 = tpu.matmul %1, %3, %cst {dimension_numbers = #tpu.dot_dimension_numbers<[1], [0], [0], [1], [0, 0, 1, 1], [], []>} : vector<192x28xf32>, vector<28x144xf32>, vector<192x144xf32> -> vector<192x144xf32>
    %c0_5 = arith.constant 0 : index
    %c8 = arith.constant 8 : index
    %c0_6 = arith.constant 0 : index
    %5 = vector.load %arg1[%c0_5, %c8, %c0_6] : memref<1x224x28xf32, #tpu.memory_space<vmem>>, vector<1x192x28xf32>
    %6 = vector.shape_cast %5 : vector<1x192x28xf32> to vector<192x28xf32>
    %c1 = arith.constant 1 : index
    %c0_7 = arith.constant 0 : index
    %c0_8 = arith.constant 0 : index
    %7 = vector.load %arg2[%c1, %c0_7, %c0_8] : memref<5x28x144xf32, #tpu.memory_space<vmem>>, vector<1x28x144xf32>
    %8 = vector.shape_cast %7 : vector<1x28x144xf32> to vector<28x144xf32>
    %cst_9 = arith.constant dense<0.000000e+00> : vector<192x144xf32>
    %9 = tpu.matmul %6, %8, %cst_9 {dimension_numbers = #tpu.dot_dimension_numbers<[1], [0], [0], [1], [0, 0, 1, 1], [], []>} : vector<192x28xf32>, vector<28x144xf32>, vector<192x144xf32> -> vector<192x144xf32>
    %10 = arith.addf %4, %9 : vector<192x144xf32>
    %c0_10 = arith.constant 0 : index
    %c16 = arith.constant 16 : index
    %c0_11 = arith.constant 0 : index
    %11 = vector.load %arg1[%c0_10, %c16, %c0_11] : memref<1x224x28xf32, #tpu.memory_space<vmem>>, vector<1x192x28xf32>
    %12 = vector.shape_cast %11 : vector<1x192x28xf32> to vector<192x28xf32>
    %c2 = arith.constant 2 : index
    %c0_12 = arith.constant 0 : index
    %c0_13 = arith.constant 0 : index
    %13 = vector.load %arg2[%c2, %c0_12, %c0_13] : memref<5x28x144xf32, #tpu.memory_space<vmem>>, vector<1x28x144xf32>
    %14 = vector.shape_cast %13 : vector<1x28x144xf32> to vector<28x144xf32>
    %cst_14 = arith.constant dense<0.000000e+00> : vector<192x144xf32>
    %15 = tpu.matmul %12, %14, %cst_14 {dimension_numbers = #tpu.dot_dimension_numbers<[1], [0], [0], [1], [0, 0, 1, 1], [], []>} : vector<192x28xf32>, vector<28x144xf32>, vector<192x144xf32> -> vector<192x144xf32>
    %16 = arith.addf %10, %15 : vector<192x144xf32>
    %c0_15 = arith.constant 0 : index
    %c24 = arith.constant 24 : index
    %c0_16 = arith.constant 0 : index
    %17 = vector.load %arg1[%c0_15, %c24, %c0_16] : memref<1x224x28xf32, #tpu.memory_space<vmem>>, vector<1x192x28xf32>
    %18 = vector.shape_cast %17 : vector<1x192x28xf32> to vector<192x28xf32>
    %c3 = arith.constant 3 : index
    %c0_17 = arith.constant 0 : index
    %c0_18 = arith.constant 0 : index
    %19 = vector.load %arg2[%c3, %c0_17, %c0_18] : memref<5x28x144xf32, #tpu.memory_space<vmem>>, vector<1x28x144xf32>
    %20 = vector.shape_cast %19 : vector<1x28x144xf32> to vector<28x144xf32>
    %cst_19 = arith.constant dense<0.000000e+00> : vector<192x144xf32>
    %21 = tpu.matmul %18, %20, %cst_19 {dimension_numbers = #tpu.dot_dimension_numbers<[1], [0], [0], [1], [0, 0, 1, 1], [], []>} : vector<192x28xf32>, vector<28x144xf32>, vector<192x144xf32> -> vector<192x144xf32>
    %22 = arith.addf %16, %21 : vector<192x144xf32>
    %c0_20 = arith.constant 0 : index
    %c32 = arith.constant 32 : index
    %c0_21 = arith.constant 0 : index
    %23 = vector.load %arg1[%c0_20, %c32, %c0_21] : memref<1x224x28xf32, #tpu.memory_space<vmem>>, vector<1x192x28xf32>
    %24 = vector.shape_cast %23 : vector<1x192x28xf32> to vector<192x28xf32>
    %c4 = arith.constant 4 : index
    %c0_22 = arith.constant 0 : index
    %c0_23 = arith.constant 0 : index
    %25 = vector.load %arg2[%c4, %c0_22, %c0_23] : memref<5x28x144xf32, #tpu.memory_space<vmem>>, vector<1x28x144xf32>
    %26 = vector.shape_cast %25 : vector<1x28x144xf32> to vector<28x144xf32>
    %cst_24 = arith.constant dense<0.000000e+00> : vector<192x144xf32>
    %27 = tpu.matmul %24, %26, %cst_24 {dimension_numbers = #tpu.dot_dimension_numbers<[1], [0], [0], [1], [0, 0, 1, 1], [], []>} : vector<192x28xf32>, vector<28x144xf32>, vector<192x144xf32> -> vector<192x144xf32>
    %28 = arith.addf %22, %27 : vector<192x144xf32>
    %29 = vector.shape_cast %28 : vector<192x144xf32> to vector<12x16x144xf32>
    %30 = vector.extract_strided_slice %29 {offsets = [0, 0, 0], sizes = [12, 8, 144], strides = [1, 1, 1]} : vector<12x16x144xf32> to vector<12x8x144xf32>
    %31 = vector.extract_strided_slice %29 {offsets = [0, 8, 0], sizes = [12, 8, 144], strides = [1, 1, 1]} : vector<12x16x144xf32> to vector<12x8x144xf32>
    %32 = arith.maximumf %30, %31 : vector<12x8x144xf32>
    %33 = vector.extract_strided_slice %32 {offsets = [0, 0, 0], sizes = [12, 8, 72], strides = [1, 1, 1]} : vector<12x8x144xf32> to vector<12x8x72xf32>
    %34 = vector.extract_strided_slice %32 {offsets = [0, 0, 72], sizes = [12, 8, 72], strides = [1, 1, 1]} : vector<12x8x144xf32> to vector<12x8x72xf32>
    %35 = arith.maximumf %33, %34 : vector<12x8x72xf32>
    %c0_25 = arith.constant 0 : index
    %c0_26 = arith.constant 0 : index
    %36 = vector.load %arg3[%c0_25, %c0_26] : memref<1x72xf32, #tpu.memory_space<vmem>>, vector<1x72xf32>
    %37 = vector.shape_cast %36 : vector<1x72xf32> to vector<1x1x72xf32>
    %38 = vector.broadcast %37 : vector<1x1x72xf32> to vector<12x8x72xf32>
    %39 = arith.addf %35, %38 : vector<12x8x72xf32>
    %cst_27 = arith.constant 0.000000e+00 : f32
    %40 = vector.broadcast %cst_27 : f32 to vector<12x8x72xf32>
    %41 = arith.maximumf %39, %40 : vector<12x8x72xf32>
    %42 = vector.shape_cast %41 : vector<12x8x72xf32> to vector<96x72xf32>
    %43 = vector.extract_strided_slice %42 {offsets = [0, 0], sizes = [64, 72], strides = [1, 1]} : vector<96x72xf32> to vector<64x72xf32>
    %c0_28 = arith.constant 0 : index
    %c0_29 = arith.constant 0 : index
    %c0_30 = arith.constant 0 : index
    %44 = vector.load %arg4[%c0_28, %c0_29, %c0_30] : memref<5x72x128xf32, #tpu.memory_space<vmem>>, vector<1x72x128xf32>
    %45 = vector.shape_cast %44 : vector<1x72x128xf32> to vector<72x128xf32>
    %cst_31 = arith.constant dense<0.000000e+00> : vector<64x128xf32>
    %46 = tpu.matmul %43, %45, %cst_31 {dimension_numbers = #tpu.dot_dimension_numbers<[1], [0], [0], [1], [0, 0, 1, 1], [], []>} : vector<64x72xf32>, vector<72x128xf32>, vector<64x128xf32> -> vector<64x128xf32>
    %47 = vector.extract_strided_slice %42 {offsets = [8, 0], sizes = [64, 72], strides = [1, 1]} : vector<96x72xf32> to vector<64x72xf32>
    %c1_32 = arith.constant 1 : index
    %c0_33 = arith.constant 0 : index
    %c0_34 = arith.constant 0 : index
    %48 = vector.load %arg4[%c1_32, %c0_33, %c0_34] : memref<5x72x128xf32, #tpu.memory_space<vmem>>, vector<1x72x128xf32>
    %49 = vector.shape_cast %48 : vector<1x72x128xf32> to vector<72x128xf32>
    %cst_35 = arith.constant dense<0.000000e+00> : vector<64x128xf32>
    %50 = tpu.matmul %47, %49, %cst_35 {dimension_numbers = #tpu.dot_dimension_numbers<[1], [0], [0], [1], [0, 0, 1, 1], [], []>} : vector<64x72xf32>, vector<72x128xf32>, vector<64x128xf32> -> vector<64x128xf32>
    %51 = arith.addf %46, %50 : vector<64x128xf32>
    %52 = vector.extract_strided_slice %42 {offsets = [16, 0], sizes = [64, 72], strides = [1, 1]} : vector<96x72xf32> to vector<64x72xf32>
    %c2_36 = arith.constant 2 : index
    %c0_37 = arith.constant 0 : index
    %c0_38 = arith.constant 0 : index
    %53 = vector.load %arg4[%c2_36, %c0_37, %c0_38] : memref<5x72x128xf32, #tpu.memory_space<vmem>>, vector<1x72x128xf32>
    %54 = vector.shape_cast %53 : vector<1x72x128xf32> to vector<72x128xf32>
    %cst_39 = arith.constant dense<0.000000e+00> : vector<64x128xf32>
    %55 = tpu.matmul %52, %54, %cst_39 {dimension_numbers = #tpu.dot_dimension_numbers<[1], [0], [0], [1], [0, 0, 1, 1], [], []>} : vector<64x72xf32>, vector<72x128xf32>, vector<64x128xf32> -> vector<64x128xf32>
    %56 = arith.addf %51, %55 : vector<64x128xf32>
    %57 = vector.extract_strided_slice %42 {offsets = [24, 0], sizes = [64, 72], strides = [1, 1]} : vector<96x72xf32> to vector<64x72xf32>
    %c3_40 = arith.constant 3 : index
    %c0_41 = arith.constant 0 : index
    %c0_42 = arith.constant 0 : index
    %58 = vector.load %arg4[%c3_40, %c0_41, %c0_42] : memref<5x72x128xf32, #tpu.memory_space<vmem>>, vector<1x72x128xf32>
    %59 = vector.shape_cast %58 : vector<1x72x128xf32> to vector<72x128xf32>
    %cst_43 = arith.constant dense<0.000000e+00> : vector<64x128xf32>
    %60 = tpu.matmul %57, %59, %cst_43 {dimension_numbers = #tpu.dot_dimension_numbers<[1], [0], [0], [1], [0, 0, 1, 1], [], []>} : vector<64x72xf32>, vector<72x128xf32>, vector<64x128xf32> -> vector<64x128xf32>
    %61 = arith.addf %56, %60 : vector<64x128xf32>
    %62 = vector.extract_strided_slice %42 {offsets = [32, 0], sizes = [64, 72], strides = [1, 1]} : vector<96x72xf32> to vector<64x72xf32>
    %c4_44 = arith.constant 4 : index
    %c0_45 = arith.constant 0 : index
    %c0_46 = arith.constant 0 : index
    %63 = vector.load %arg4[%c4_44, %c0_45, %c0_46] : memref<5x72x128xf32, #tpu.memory_space<vmem>>, vector<1x72x128xf32>
    %64 = vector.shape_cast %63 : vector<1x72x128xf32> to vector<72x128xf32>
    %cst_47 = arith.constant dense<0.000000e+00> : vector<64x128xf32>
    %65 = tpu.matmul %62, %64, %cst_47 {dimension_numbers = #tpu.dot_dimension_numbers<[1], [0], [0], [1], [0, 0, 1, 1], [], []>} : vector<64x72xf32>, vector<72x128xf32>, vector<64x128xf32> -> vector<64x128xf32>
    %66 = arith.addf %61, %65 : vector<64x128xf32>
    %67 = vector.shape_cast %66 : vector<64x128xf32> to vector<4x16x128xf32>
    %68 = vector.extract_strided_slice %67 {offsets = [0, 0, 0], sizes = [4, 8, 128], strides = [1, 1, 1]} : vector<4x16x128xf32> to vector<4x8x128xf32>
    %69 = vector.extract_strided_slice %67 {offsets = [0, 8, 0], sizes = [4, 8, 128], strides = [1, 1, 1]} : vector<4x16x128xf32> to vector<4x8x128xf32>
    %70 = arith.maximumf %68, %69 : vector<4x8x128xf32>
    %71 = vector.extract_strided_slice %70 {offsets = [0, 0, 0], sizes = [4, 8, 64], strides = [1, 1, 1]} : vector<4x8x128xf32> to vector<4x8x64xf32>
    %72 = vector.extract_strided_slice %70 {offsets = [0, 0, 64], sizes = [4, 8, 64], strides = [1, 1, 1]} : vector<4x8x128xf32> to vector<4x8x64xf32>
    %73 = arith.maximumf %71, %72 : vector<4x8x64xf32>
    %c0_48 = arith.constant 0 : index
    %c0_49 = arith.constant 0 : index
    %74 = vector.load %arg5[%c0_48, %c0_49] : memref<1x64xf32, #tpu.memory_space<vmem>>, vector<1x64xf32>
    %75 = vector.shape_cast %74 : vector<1x64xf32> to vector<1x1x64xf32>
    %76 = vector.broadcast %75 : vector<1x1x64xf32> to vector<4x8x64xf32>
    %77 = arith.addf %73, %76 : vector<4x8x64xf32>
    %cst_50 = arith.constant 0.000000e+00 : f32
    %78 = vector.broadcast %cst_50 : f32 to vector<4x8x64xf32>
    %79 = arith.maximumf %77, %78 : vector<4x8x64xf32>
    %80 = vector.shape_cast %79 : vector<4x8x64xf32> to vector<32x64xf32>
    %81 = vector.extract_strided_slice %80 {offsets = [0, 0], sizes = [8, 64], strides = [1, 1]} : vector<32x64xf32> to vector<8x64xf32>
    %c0_51 = arith.constant 0 : index
    %c0_52 = arith.constant 0 : index
    %c0_53 = arith.constant 0 : index
    %82 = vector.load %arg6[%c0_51, %c0_52, %c0_53] : memref<4x64x120xf32, #tpu.memory_space<vmem>>, vector<1x64x120xf32>
    %83 = vector.shape_cast %82 : vector<1x64x120xf32> to vector<64x120xf32>
    %cst_54 = arith.constant dense<0.000000e+00> : vector<8x120xf32>
    %84 = tpu.matmul %81, %83, %cst_54 {dimension_numbers = #tpu.dot_dimension_numbers<[1], [0], [0], [1], [0, 0, 1, 1], [], []>} : vector<8x64xf32>, vector<64x120xf32>, vector<8x120xf32> -> vector<8x120xf32>
    %85 = vector.extract_strided_slice %80 {offsets = [8, 0], sizes = [8, 64], strides = [1, 1]} : vector<32x64xf32> to vector<8x64xf32>
    %c1_55 = arith.constant 1 : index
    %c0_56 = arith.constant 0 : index
    %c0_57 = arith.constant 0 : index
    %86 = vector.load %arg6[%c1_55, %c0_56, %c0_57] : memref<4x64x120xf32, #tpu.memory_space<vmem>>, vector<1x64x120xf32>
    %87 = vector.shape_cast %86 : vector<1x64x120xf32> to vector<64x120xf32>
    %cst_58 = arith.constant dense<0.000000e+00> : vector<8x120xf32>
    %88 = tpu.matmul %85, %87, %cst_58 {dimension_numbers = #tpu.dot_dimension_numbers<[1], [0], [0], [1], [0, 0, 1, 1], [], []>} : vector<8x64xf32>, vector<64x120xf32>, vector<8x120xf32> -> vector<8x120xf32>
    %89 = arith.addf %84, %88 : vector<8x120xf32>
    %90 = vector.extract_strided_slice %80 {offsets = [16, 0], sizes = [8, 64], strides = [1, 1]} : vector<32x64xf32> to vector<8x64xf32>
    %c2_59 = arith.constant 2 : index
    %c0_60 = arith.constant 0 : index
    %c0_61 = arith.constant 0 : index
    %91 = vector.load %arg6[%c2_59, %c0_60, %c0_61] : memref<4x64x120xf32, #tpu.memory_space<vmem>>, vector<1x64x120xf32>
    %92 = vector.shape_cast %91 : vector<1x64x120xf32> to vector<64x120xf32>
    %cst_62 = arith.constant dense<0.000000e+00> : vector<8x120xf32>
    %93 = tpu.matmul %90, %92, %cst_62 {dimension_numbers = #tpu.dot_dimension_numbers<[1], [0], [0], [1], [0, 0, 1, 1], [], []>} : vector<8x64xf32>, vector<64x120xf32>, vector<8x120xf32> -> vector<8x120xf32>
    %94 = arith.addf %89, %93 : vector<8x120xf32>
    %95 = vector.extract_strided_slice %80 {offsets = [24, 0], sizes = [8, 64], strides = [1, 1]} : vector<32x64xf32> to vector<8x64xf32>
    %c3_63 = arith.constant 3 : index
    %c0_64 = arith.constant 0 : index
    %c0_65 = arith.constant 0 : index
    %96 = vector.load %arg6[%c3_63, %c0_64, %c0_65] : memref<4x64x120xf32, #tpu.memory_space<vmem>>, vector<1x64x120xf32>
    %97 = vector.shape_cast %96 : vector<1x64x120xf32> to vector<64x120xf32>
    %cst_66 = arith.constant dense<0.000000e+00> : vector<8x120xf32>
    %98 = tpu.matmul %95, %97, %cst_66 {dimension_numbers = #tpu.dot_dimension_numbers<[1], [0], [0], [1], [0, 0, 1, 1], [], []>} : vector<8x64xf32>, vector<64x120xf32>, vector<8x120xf32> -> vector<8x120xf32>
    %99 = arith.addf %94, %98 : vector<8x120xf32>
    %c0_67 = arith.constant 0 : index
    %c0_68 = arith.constant 0 : index
    %100 = vector.load %arg7[%c0_67, %c0_68] : memref<1x120xf32, #tpu.memory_space<vmem>>, vector<1x120xf32>
    %101 = vector.broadcast %100 : vector<1x120xf32> to vector<8x120xf32>
    %102 = arith.addf %99, %101 : vector<8x120xf32>
    %cst_69 = arith.constant 0.000000e+00 : f32
    %103 = vector.broadcast %cst_69 : f32 to vector<8x120xf32>
    %104 = arith.maximumf %102, %103 : vector<8x120xf32>
    %c0_70 = arith.constant 0 : index
    %c0_71 = arith.constant 0 : index
    %105 = vector.load %arg8[%c0_70, %c0_71] : memref<120x84xf32, #tpu.memory_space<vmem>>, vector<120x84xf32>
    %cst_72 = arith.constant dense<0.000000e+00> : vector<8x84xf32>
    %106 = tpu.matmul %104, %105, %cst_72 {dimension_numbers = #tpu.dot_dimension_numbers<[1], [0], [0], [1], [0, 0, 1, 1], [], []>} : vector<8x120xf32>, vector<120x84xf32>, vector<8x84xf32> -> vector<8x84xf32>
    %c0_73 = arith.constant 0 : index
    %c0_74 = arith.constant 0 : index
    %107 = vector.load %arg9[%c0_73, %c0_74] : memref<1x84xf32, #tpu.memory_space<vmem>>, vector<1x84xf32>
    %108 = vector.broadcast %107 : vector<1x84xf32> to vector<8x84xf32>
    %109 = arith.addf %106, %108 : vector<8x84xf32>
    %cst_75 = arith.constant 0.000000e+00 : f32
    %110 = vector.broadcast %cst_75 : f32 to vector<8x84xf32>
    %111 = arith.maximumf %109, %110 : vector<8x84xf32>
    %c0_76 = arith.constant 0 : index
    %c0_77 = arith.constant 0 : index
    %112 = vector.load %arg10[%c0_76, %c0_77] : memref<84x128xf32, #tpu.memory_space<vmem>>, vector<84x128xf32>
    %cst_78 = arith.constant dense<0.000000e+00> : vector<8x128xf32>
    %113 = tpu.matmul %111, %112, %cst_78 {dimension_numbers = #tpu.dot_dimension_numbers<[1], [0], [0], [1], [0, 0, 1, 1], [], []>} : vector<8x84xf32>, vector<84x128xf32>, vector<8x128xf32> -> vector<8x128xf32>
    %c0_79 = arith.constant 0 : index
    %c0_80 = arith.constant 0 : index
    %114 = vector.load %arg11[%c0_79, %c0_80] : memref<1x128xf32, #tpu.memory_space<vmem>>, vector<1x128xf32>
    %115 = vector.broadcast %114 : vector<1x128xf32> to vector<8x128xf32>
    %116 = arith.addf %113, %115 : vector<8x128xf32>
    %c0_81 = arith.constant 0 : index
    %c0_82 = arith.constant 0 : index
    %117 = vector.load %arg12[%c0_81, %c0_82] : memref<8x128xf32, #tpu.memory_space<vmem>>, vector<8x128xf32>
    tpu.vector_store %arg12[%c0_81, %c0_82], %116 {strides = array<i32>} : memref<8x128xf32, #tpu.memory_space<vmem>>, vector<8x128xf32>,
    return
  }
  func.func @transform_0(%arg0: i32) -> (i32, i32, i32) {
    %c0_i32 = arith.constant 0 : i32
    %c0_i32_0 = arith.constant 0 : i32
    %c0_i32_1 = arith.constant 0 : i32
    return %arg0, %c0_i32, %c0_i32_0 : i32, i32, i32
  }
  func.func @transform_1(%arg0: i32) -> (i32, i32, i32) {
    %c0_i32 = arith.constant 0 : i32
    %c0_i32_0 = arith.constant 0 : i32
    %c0_i32_1 = arith.constant 0 : i32
    %c0_i32_2 = arith.constant 0 : i32
    return %c0_i32, %c0_i32_0, %c0_i32_1 : i32, i32, i32
  }
  func.func @transform_2(%arg0: i32) -> (i32, i32) {
    %c0_i32 = arith.constant 0 : i32
    %c0_i32_0 = arith.constant 0 : i32
    %c0_i32_1 = arith.constant 0 : i32
    return %c0_i32, %c0_i32_0 : i32, i32
  }
  func.func @transform_3(%arg0: i32) -> (i32, i32, i32) {
    %c0_i32 = arith.constant 0 : i32
    %c0_i32_0 = arith.constant 0 : i32
    %c0_i32_1 = arith.constant 0 : i32
    %c0_i32_2 = arith.constant 0 : i32
    return %c0_i32, %c0_i32_0, %c0_i32_1 : i32, i32, i32
  }
  func.func @transform_4(%arg0: i32) -> (i32, i32) {
    %c0_i32 = arith.constant 0 : i32
    %c0_i32_0 = arith.constant 0 : i32
    %c0_i32_1 = arith.constant 0 : i32
    return %c0_i32, %c0_i32_0 : i32, i32
  }
  func.func @transform_5(%arg0: i32) -> (i32, i32, i32) {
    %c0_i32 = arith.constant 0 : i32
    %c0_i32_0 = arith.constant 0 : i32
    %c0_i32_1 = arith.constant 0 : i32
    %c0_i32_2 = arith.constant 0 : i32
    return %c0_i32, %c0_i32_0, %c0_i32_1 : i32, i32, i32
  }
  func.func @transform_6(%arg0: i32) -> (i32, i32) {
    %c0_i32 = arith.constant 0 : i32
    %c0_i32_0 = arith.constant 0 : i32
    %c0_i32_1 = arith.constant 0 : i32
    return %c0_i32, %c0_i32_0 : i32, i32
  }
  func.func @transform_7(%arg0: i32) -> (i32, i32) {
    %c0_i32 = arith.constant 0 : i32
    %c0_i32_0 = arith.constant 0 : i32
    %c0_i32_1 = arith.constant 0 : i32
    return %c0_i32, %c0_i32_0 : i32, i32
  }
  func.func @transform_8(%arg0: i32) -> (i32, i32) {
    %c0_i32 = arith.constant 0 : i32
    %c0_i32_0 = arith.constant 0 : i32
    %c0_i32_1 = arith.constant 0 : i32
    return %c0_i32, %c0_i32_0 : i32, i32
  }
  func.func @transform_9(%arg0: i32) -> (i32, i32) {
    %c0_i32 = arith.constant 0 : i32
    %c0_i32_0 = arith.constant 0 : i32
    %c0_i32_1 = arith.constant 0 : i32
    return %c0_i32, %c0_i32_0 : i32, i32
  }
  func.func @transform_10(%arg0: i32) -> (i32, i32) {
    %c0_i32 = arith.constant 0 : i32
    %c0_i32_0 = arith.constant 0 : i32
    %c0_i32_1 = arith.constant 0 : i32
    return %c0_i32, %c0_i32_0 : i32, i32
  }
  func.func @transform_11(%arg0: i32) -> (i32, i32) {
    %c0_i32 = arith.constant 0 : i32
    %c0_i32_0 = arith.constant 0 : i32
    return %arg0, %c0_i32 : i32, i32
  }
}

</mosaic_0001>

<llo_original>
// kernel: lenet_forward.1
$region0: #{lenet_forward.1}
  #allocation0 [shape = 'u32[]', space=smem, size = 0x4, offset = 0x4, fixed_abs, tag = 'smem constant byte address 0x4 - core index']
  #allocation1 [shape = 'u32[144,128]{1,0:T(1,128)}', space=vmem, size = 0x12000, scoped, tag = 'internal scratch']
  %s0 = inlined_call_operand.vmem [shape: f32[1,224,28], index: 0, kind: input, shape index: {}]
  %s1 = inlined_call_operand.hbm [shape: f32[5,28,144], index: 1, kind: input, shape index: {}]
  %s2 = inlined_call_operand.vmem [shape: f32[1,72], index: 2, kind: input, shape index: {}]
  %s3 = inlined_call_operand.vmem [shape: f32[5,72,128], index: 3, kind: input, shape index: {}]
  %s4 = inlined_call_operand.vmem [shape: f32[1,64], index: 4, kind: input, shape index: {}]
  %s5 = inlined_call_operand.hbm [shape: f32[4,64,120], index: 5, kind: input, shape index: {}]
  %s6 = inlined_call_operand.vmem [shape: f32[1,120], index: 6, kind: input, shape index: {}]
  %s7 = inlined_call_operand.vmem [shape: f32[120,84], index: 7, kind: input, shape index: {}]
  %s8 = inlined_call_operand.vmem [shape: f32[1,84], index: 8, kind: input, shape index: {}]
  %s9 = inlined_call_operand.vmem [shape: f32[84,128], index: 9, kind: input, shape index: {}]
  %s10 = inlined_call_operand.vmem [shape: f32[1,128], index: 10, kind: input, shape index: {}]
  %s11 = inlined_call_operand.vmem [shape: f32[8,128], index: 11, kind: output, shape index: {}]
  %s12 = sld [smem:[#allocation0]]
  $region62: #{lenet_forward.1} parent=0
    _
  %s14 = ssub.s32 1, %s12
  %s15 = scalar_select 0, %s14, %s12
  $region1: #{lenet_forward.1} parent=0
    #allocation2 [shape = 'u8[163840]{0}', space=vmem, size = 0x28000, scoped, tag = 'input window, operand 1, single buffered']
    #allocation3 [shape = 's32[1]{0}', space=sflag, size = 0x4, scoped, tag = 'scoped memory for lenet_forward.1']
    #allocation4 [shape = 'u8[131072]{0}', space=vmem, size = 0x20000, scoped, tag = 'input window, operand 5, single buffered']
    #allocation5 [shape = 's32[1]{0}', space=sflag, size = 0x4, scoped, tag = 'scoped memory for lenet_forward.1']
    %16 = vsyncpa [#allocation3], 0
    %17 = vsyncpa [#allocation5], 0
    // Predicated region
    $region2: #{lenet_forward.1} parent=1 // pred_check
      _
    $region3: #{lenet_forward.1} parent=1 // pred_check_branch
      %19 = sbr.rel (0) target = $region5
    $region4: #{lenet_forward.1} parent=1 // pred_region
      _
    $region5: #{lenet_forward.1} parent=1 // pred_fallthru
      _
    // Predicated region
    $region6: #{lenet_forward.1} parent=1 // pred_check
      _
    $region7: #{lenet_forward.1} parent=1 // pred_check_branch
      %21 = sbr.rel (0) target = $region9
    $region8: #{lenet_forward.1} parent=1 // pred_region
      %s23 = ssub.s32 5120, 5120
      %24 = vsyncadd [#allocation3], %s23
      %s25 = sshll.u32 [#allocation2], 4
      %s26 = int_to_ptr.vmem [resolvable:$true] %s25
      %31 = dma.hbm_to_vmem [thread:$0]  %s1, 5120, %s26, [#allocation3], 256, 256, 16
    $region9: #{lenet_forward.1} parent=1 // pred_fallthru
      _
    // Predicated region
    $region10: #{lenet_forward.1} parent=1 // pred_check
      _
    $region11: #{lenet_forward.1} parent=1 // pred_check_branch
      %33 = sbr.rel (0) target = $region13
    $region12: #{lenet_forward.1} parent=1 // pred_region
      _
    $region13: #{lenet_forward.1} parent=1 // pred_fallthru
      _
    // Predicated region
    $region14: #{lenet_forward.1} parent=1 // pred_check
      _
    $region15: #{lenet_forward.1} parent=1 // pred_check_branch
      %35 = sbr.rel (0) target = $region17
    $region16: #{lenet_forward.1} parent=1 // pred_region
      _
    $region17: #{lenet_forward.1} parent=1 // pred_fallthru
      _
    // Predicated region
    $region18: #{lenet_forward.1} parent=1 // pred_check
      _
    $region19: #{lenet_forward.1} parent=1 // pred_check_branch
      %37 = sbr.rel (0) target = $region21
    $region20: #{lenet_forward.1} parent=1 // pred_region
      _
    $region21: #{lenet_forward.1} parent=1 // pred_fallthru
      _
    // Predicated region
    $region22: #{lenet_forward.1} parent=1 // pred_check
      _
    $region23: #{lenet_forward.1} parent=1 // pred_check_branch
      %39 = sbr.rel (0) target = $region25
    $region24: #{lenet_forward.1} parent=1 // pred_region
      %s41 = ssub.s32 4096, 4096
      %42 = vsyncadd [#allocation5], %s41
      %s43 = sshll.u32 [#allocation4], 4
      %s44 = int_to_ptr.vmem [resolvable:$true] %s43
      %49 = dma.hbm_to_vmem [thread:$0]  %s5, 4096, %s44, [#allocation5], 128, 128, 8
    $region25: #{lenet_forward.1} parent=1 // pred_fallthru
      _
    // Predicated region
    $region26: #{lenet_forward.1} parent=1 // pred_check
      _
    $region27: #{lenet_forward.1} parent=1 // pred_check_branch
      %51 = sbr.rel (0) target = $region29
    $region28: #{lenet_forward.1} parent=1 // pred_region
      _
    $region29: #{lenet_forward.1} parent=1 // pred_fallthru
      _
    // Predicated region
    $region30: #{lenet_forward.1} parent=1 // pred_check
      _
    $region31: #{lenet_forward.1} parent=1 // pred_check_branch
      %53 = sbr.rel (0) target = $region33
    $region32: #{lenet_forward.1} parent=1 // pred_region
      _
    $region33: #{lenet_forward.1} parent=1 // pred_fallthru
      _
    // Predicated region
    $region34: #{lenet_forward.1} parent=1 // pred_check
      _
    $region35: #{lenet_forward.1} parent=1 // pred_check_branch
      %55 = sbr.rel (0) target = $region37
    $region36: #{lenet_forward.1} parent=1 // pred_region
      _
    $region37: #{lenet_forward.1} parent=1 // pred_fallthru
      _
    // Predicated region
    $region38: #{lenet_forward.1} parent=1 // pred_check
      _
    $region39: #{lenet_forward.1} parent=1 // pred_check_branch
      %57 = sbr.rel (0) target = $region41
    $region40: #{lenet_forward.1} parent=1 // pred_region
      _
    $region41: #{lenet_forward.1} parent=1 // pred_fallthru
      _
    // Predicated region
    $region42: #{lenet_forward.1} parent=1 // pred_check
      _
    $region43: #{lenet_forward.1} parent=1 // pred_check_branch
      %59 = sbr.rel (0) target = $region45
    $region44: #{lenet_forward.1} parent=1 // pred_region
      _
    $region45: #{lenet_forward.1} parent=1 // pred_fallthru
      _
    // Predicated region
    $region46: #{lenet_forward.1} parent=1 // pred_check
      _
    $region47: #{lenet_forward.1} parent=1 // pred_check_branch
      %61 = sbr.rel (0) target = $region49
    $region48: #{lenet_forward.1} parent=1 // pred_region
      %62 = dma.done [#allocation3], 5120
    $region49: #{lenet_forward.1} parent=1 // pred_fallthru
      _
    // Predicated region
    $region50: #{lenet_forward.1} parent=1 // pred_check
      _
    $region51: #{lenet_forward.1} parent=1 // pred_check_branch
      %64 = sbr.rel (0) target = $region53
    $region52: #{lenet_forward.1} parent=1 // pred_region
      %65 = dma.done [#allocation5], 4096
    $region53: #{lenet_forward.1} parent=1 // pred_fallthru
      _
    %v66 = vld [vmem:[%s0] sm:$0xff]
    %v67 = vld [vmem:[%s0 + $0x8] sm:$0xff]
    %v68 = vld [vmem:[%s0 + $0x10] sm:$0xff]
    %v69 = vld [vmem:[%s0 + $0x18] sm:$0xff]
    %v70 = vld [vmem:[%s0 + $0x20] sm:$0xff]
    %v71 = vld [vmem:[%s0 + $0x28] sm:$0xff]
    %v72 = vld [vmem:[%s0 + $0x30] sm:$0xff]
    %v73 = vld [vmem:[%s0 + $0x38] sm:$0xff]
    %v74 = vld [vmem:[%s0 + $0x40] sm:$0xff]
    %v75 = vld [vmem:[%s0 + $0x48] sm:$0xff]
    %v76 = vld [vmem:[%s0 + $0x50] sm:$0xff]
    %v77 = vld [vmem:[%s0 + $0x58] sm:$0xff]
    %v78 = vld [vmem:[%s0 + $0x60] sm:$0xff]
    %v79 = vld [vmem:[%s0 + $0x68] sm:$0xff]
    %v80 = vld [vmem:[%s0 + $0x70] sm:$0xff]
    %v81 = vld [vmem:[%s0 + $0x78] sm:$0xff]
    %v82 = vld [vmem:[%s0 + $0x80] sm:$0xff]
    %v83 = vld [vmem:[%s0 + $0x88] sm:$0xff]
    %v84 = vld [vmem:[%s0 + $0x90] sm:$0xff]
    %v85 = vld [vmem:[%s0 + $0x98] sm:$0xff]
    %v86 = vld [vmem:[%s0 + $0xa0] sm:$0xff]
    %v87 = vld [vmem:[%s0 + $0xa8] sm:$0xff]
    %v88 = vld [vmem:[%s0 + $0xb0] sm:$0xff]
    %v89 = vld [vmem:[%s0 + $0xb8] sm:$0xff]
    %v90 = vld [vmem:[#allocation2] sm:$0xff]
    %v91 = vld [vmem:[#allocation2 + $0x8] sm:$0xff]
    %v92 = vld [vmem:[#allocation2 + $0x10] sm:$0xff]
    %v93 = vld [vmem:[#allocation2 + $0x18] sm:$0xff]
    %v94 = vld [vmem:[#allocation2 + $0x20] sm:$0xff]
    %v95 = vld [vmem:[#allocation2 + $0x28] sm:$0xff]
    %v96 = vld [vmem:[#allocation2 + $0x30] sm:$0xf]
    %v97 = vld [vmem:[#allocation2 + $0x38] sm:$0xf]
    %v98 = vld [vmem:[%s0 + $0xc0] sm:$0xff]
    %s99 = scalar_lea.vmem [#allocation2], 64
    %v100 = vld [vmem:[%s99] sm:$0xff]
    %v101 = vld [vmem:[%s99 + $0x8] sm:$0xff]
    %v102 = vld [vmem:[%s99 + $0x10] sm:$0xff]
    %v103 = vld [vmem:[%s99 + $0x18] sm:$0xff]
    %v104 = vld [vmem:[%s99 + $0x20] sm:$0xff]
    %v105 = vld [vmem:[%s99 + $0x28] sm:$0xff]
    %v106 = vld [vmem:[%s99 + $0x30] sm:$0xf]
    %v107 = vld [vmem:[%s99 + $0x38] sm:$0xf]
    %vm108 = vcmask 228352
    %v110 = vsel %vm108, %v67, 0
    %v113 = vsel %vm108, %v68, 0
    %v116 = vsel %vm108, %v69, 0
    %v119 = vsel %vm108, %v70, 0
    %v122 = vsel %vm108, %v71, 0
    %v125 = vsel %vm108, %v72, 0
    %v128 = vsel %vm108, %v73, 0
    %v131 = vsel %vm108, %v74, 0
    %v134 = vsel %vm108, %v75, 0
    %v137 = vsel %vm108, %v76, 0
    %v140 = vsel %vm108, %v77, 0
    %v143 = vsel %vm108, %v78, 0
    %v146 = vsel %vm108, %v79, 0
    %v149 = vsel %vm108, %v80, 0
    %v152 = vsel %vm108, %v81, 0
    %v155 = vsel %vm108, %v82, 0
    %v158 = vsel %vm108, %v83, 0
    %v161 = vsel %vm108, %v84, 0
    %v164 = vsel %vm108, %v85, 0
    %v167 = vsel %vm108, %v86, 0
    %v170 = vsel %vm108, %v87, 0
    %v173 = vsel %vm108, %v88, 0
    %v176 = vsel %vm108, %v89, 0
    %v179 = vsel %vm108, %v98, 0
    %vm181 = vcmask 1043456
    %v183 = vsel %vm181, %v106, 0
    %v186 = vsel %vm181, %v107, 0
    %188 = vmatprep.subr.mxu0 %v101
    %189 = vmatpush1.msra.mxu0 %v100
    %190 = vmatprep.subr.mxu0 %v103
    %191 = vmatpush1.msra.mxu0 %v102
    %192 = vmatprep.subr.mxu0 %v105
    %193 = vmatpush1.msra.mxu0 %v104
    %194 = vmatprep.subr.mxu0 %v186
    %195 = vmatpush1.msra.mxu0 %v183
    %196 = vmatprep.subr.mxu0 0.0
    %197 = vmatpush1.msra.mxu0 0.0
    %198 = vmatprep.subr.mxu0 0.0
    %199 = vmatpush1.msra.mxu0 0.0
    %200 = vmatprep.subr.mxu0 0.0
    %201 = vmatpush1.msra.mxu0 0.0
    %202 = vmatprep.subr.mxu0 0.0
    %203 = vmatpush1.msra.mxu0 0.0
    %204 = vmatprep.subr.mxu0 0.0
    %205 = vmatpush1.msra.mxu0 0.0
    %206 = vmatprep.subr.mxu0 0.0
    %207 = vmatpush1.msra.mxu0 0.0
    %208 = vmatprep.subr.mxu0 0.0
    %209 = vmatpush1.msra.mxu0 0.0
    %210 = vmatprep.subr.mxu0 0.0
    %211 = vmatpush1.msra.mxu0 0.0
    %212 = vmatprep.subr.mxu0 0.0
    %213 = vmatpush1.msra.mxu0 0.0
    %214 = vmatprep.subr.mxu0 0.0
    %215 = vmatpush1.msra.mxu0 0.0
    %216 = vmatprep.subr.mxu0 0.0
    %217 = vmatpush1.msra.mxu0 0.0
    %218 = vmatprep.subr.mxu0 0.0
    %219 = vmatpush1.msra.mxu0 0.0
    %220 = vmatprep.subr.mxu0 0.0
    %221 = vmatpush1.msra.mxu0 0.0
    %222 = vmatprep.subr.mxu0 0.0
    %223 = vmatpush1.msra.mxu0 0.0
    %224 = vmatprep.subr.mxu0 0.0
    %225 = vmatpush1.msra.mxu0 0.0
    %226 = vmatprep.subr.mxu0 0.0
    %227 = vmatpush1.msra.mxu0 0.0
    %228 = vmatprep.subr.mxu0 0.0
    %229 = vmatpush1.msra.mxu0 0.0
    %230 = vmatprep.subr.mxu0 0.0
    %231 = vmatpush1.msra.mxu0 0.0
    %232 = vmatprep.subr.mxu0 0.0
    %233 = vmatpush1.msra.mxu0 0.0
    %234 = vmatprep.subr.mxu0 0.0
    %235 = vmatpush1.msra.mxu0 0.0
    %236 = vmatprep.subr.mxu0 0.0
    %237 = vmatpush1.msra.mxu0 0.0
    %238 = vmatprep.subr.mxu0 0.0
    %239 = vmatpush1.msra.mxu0 0.0
    %240 = vmatprep.subr.mxu0 0.0
    %241 = vmatpush1.msra.mxu0 0.0
    %242 = vmatprep.subr.mxu0 0.0
    %243 = vmatpush1.msra.mxu0 0.0
    %244 = vmatprep.subr.mxu0 0.0
    %245 = vmatpush1.msra.mxu0 0.0
    %246 = vmatprep.subr.mxu0 0.0
    %247 = vmatpush1.msra.mxu0 0.0
    %248 = vmatprep.subr.mxu0 0.0
    %249 = vmatpush1.msra.mxu0 0.0
    %250 = vmatprep.subr.mxu0 0.0
    %251 = vmatpush1.msra.mxu0 0.0
    %252 = vmatprep.mubr.f32.mxu0 0.0
    %253 = vmatmul.mubr.f32.gmra.mrb[0].mxu0 %v110
    %v254 = vpop.f32.mrb[0].mxu0
    %v255 = vadd.f32 0.0, %v254
    %v256 = vpop.f32.mrb[0].mxu0
    %v257 = vadd.f32 0.0, %v256
    %258 = vmatprep.mubr.f32.mxu0 0.0
    %259 = vmatmul.mubr.f32.gmra.mrb[0].mxu0 %v113
    %v260 = vpop.f32.mrb[0].mxu0
    %v261 = vadd.f32 0.0, %v260
    %v262 = vpop.f32.mrb[0].mxu0
    %v263 = vadd.f32 0.0, %v262
    %264 = vmatprep.mubr.f32.mxu0 0.0
    %265 = vmatmul.mubr.f32.gmra.mrb[0].mxu0 %v116
    %v266 = vpop.f32.mrb[0].mxu0
    %v267 = vadd.f32 0.0, %v266
    %v268 = vpop.f32.mrb[0].mxu0
    %v269 = vadd.f32 0.0, %v268
    %270 = vmatprep.mubr.f32.mxu0 0.0
    %271 = vmatmul.mubr.f32.gmra.mrb[0].mxu0 %v119
    %v272 = vpop.f32.mrb[0].mxu0
    %v273 = vadd.f32 0.0, %v272
    %v274 = vpop.f32.mrb[0].mxu0
    %v275 = vadd.f32 0.0, %v274
    %276 = vmatprep.mubr.f32.mxu0 0.0
    %277 = vmatmul.mubr.f32.gmra.mrb[0].mxu0 %v122
    %v278 = vpop.f32.mrb[0].mxu0
    %v279 = vadd.f32 0.0, %v278
    %v280 = vpop.f32.mrb[0].mxu0
    %v281 = vadd.f32 0.0, %v280
    %282 = vmatprep.mubr.f32.mxu0 0.0
    %283 = vmatmul.mubr.f32.gmra.mrb[0].mxu0 %v125
    %v284 = vpop.f32.mrb[0].mxu0
    %v285 = vadd.f32 0.0, %v284
    %v286 = vpop.f32.mrb[0].mxu0
    %v287 = vadd.f32 0.0, %v286
    %288 = vmatprep.mubr.f32.mxu0 0.0
    %289 = vmatmul.mubr.f32.gmra.mrb[0].mxu0 %v128
    %v290 = vpop.f32.mrb[0].mxu0
    %v291 = vadd.f32 0.0, %v290
    %v292 = vpop.f32.mrb[0].mxu0
    %v293 = vadd.f32 0.0, %v292
    %294 = vmatprep.mubr.f32.mxu0 0.0
    %295 = vmatmul.mubr.f32.gmra.mrb[0].mxu0 %v131
    %v296 = vpop.f32.mrb[0].mxu0
    %v297 = vadd.f32 0.0, %v296
    %v298 = vpop.f32.mrb[0].mxu0
    %v299 = vadd.f32 0.0, %v298
    %300 = vmatprep.mubr.f32.mxu0 0.0
    %301 = vmatmul.mubr.f32.gmra.mrb[0].mxu0 %v134
    %v302 = vpop.f32.mrb[0].mxu0
    %v303 = vadd.f32 0.0, %v302
    %v304 = vpop.f32.mrb[0].mxu0
    %v305 = vadd.f32 0.0, %v304
    %306 = vmatprep.mubr.f32.mxu0 0.0
    %307 = vmatmul.mubr.f32.gmra.mrb[0].mxu0 %v137
    %v308 = vpop.f32.mrb[0].mxu0
    %v309 = vadd.f32 0.0, %v308
    %v310 = vpop.f32.mrb[0].mxu0
    %v311 = vadd.f32 0.0, %v310
    %312 = vmatprep.mubr.f32.mxu0 0.0
    %313 = vmatmul.mubr.f32.gmra.mrb[0].mxu0 %v140
    %v314 = vpop.f32.mrb[0].mxu0
    %v315 = vadd.f32 0.0, %v314
    %v316 = vpop.f32.mrb[0].mxu0
    %v317 = vadd.f32 0.0, %v316
    %318 = vmatprep.mubr.f32.mxu0 0.0
    %319 = vmatmul.mubr.f32.gmra.mrb[0].mxu0 %v143
    %v320 = vpop.f32.mrb[0].mxu0
    %v321 = vadd.f32 0.0, %v320
    %v322 = vpop.f32.mrb[0].mxu0
    %v323 = vadd.f32 0.0, %v322
    %324 = vmatprep.mubr.f32.mxu0 0.0
    %325 = vmatmul.mubr.f32.gmra.mrb[0].mxu0 %v146
    %v326 = vpop.f32.mrb[0].mxu0
    %v327 = vadd.f32 0.0, %v326
    %v328 = vpop.f32.mrb[0].mxu0
    %v329 = vadd.f32 0.0, %v328
    %330 = vmatprep.mubr.f32.mxu0 0.0
    %331 = vmatmul.mubr.f32.gmra.mrb[0].mxu0 %v149
    %v332 = vpop.f32.mrb[0].mxu0
    %v333 = vadd.f32 0.0, %v332
    %v334 = vpop.f32.mrb[0].mxu0
    %v335 = vadd.f32 0.0, %v334
    %336 = vmatprep.mubr.f32.mxu0 0.0
    %337 = vmatmul.mubr.f32.gmra.mrb[0].mxu0 %v152
    %v338 = vpop.f32.mrb[0].mxu0
    %v339 = vadd.f32 0.0, %v338
    %v340 = vpop.f32.mrb[0].mxu0
    %v341 = vadd.f32 0.0, %v340
    %342 = vmatprep.mubr.f32.mxu0 0.0
    %343 = vmatmul.mubr.f32.gmra.mrb[0].mxu0 %v155
    %v344 = vpop.f32.mrb[0].mxu0
    %v345 = vadd.f32 0.0, %v344
    %v346 = vpop.f32.mrb[0].mxu0
    %v347 = vadd.f32 0.0, %v346
    %348 = vmatprep.mubr.f32.mxu0 0.0
    %349 = vmatmul.mubr.f32.gmra.mrb[0].mxu0 %v158
    %v350 = vpop.f32.mrb[0].mxu0
    %v351 = vadd.f32 0.0, %v350
    %v352 = vpop.f32.mrb[0].mxu0
    %v353 = vadd.f32 0.0, %v352
    %354 = vmatprep.mubr.f32.mxu0 0.0
    %355 = vmatmul.mubr.f32.gmra.mrb[0].mxu0 %v161
    %v356 = vpop.f32.mrb[0].mxu0
    %v357 = vadd.f32 0.0, %v356
    %v358 = vpop.f32.mrb[0].mxu0
    %v359 = vadd.f32 0.0, %v358
    %360 = vmatprep.mubr.f32.mxu0 0.0
    %361 = vmatmul.mubr.f32.gmra.mrb[0].mxu0 %v164
    %v362 = vpop.f32.mrb[0].mxu0
    %v363 = vadd.f32 0.0, %v362
    %v364 = vpop.f32.mrb[0].mxu0
    %v365 = vadd.f32 0.0, %v364
    %366 = vmatprep.mubr.f32.mxu0 0.0
    %367 = vmatmul.mubr.f32.gmra.mrb[0].mxu0 %v167
    %v368 = vpop.f32.mrb[0].mxu0
    %v369 = vadd.f32 0.0, %v368
    %v370 = vpop.f32.mrb[0].mxu0
    %v371 = vadd.f32 0.0, %v370
    %372 = vmatprep.mubr.f32.mxu0 0.0
    %373 = vmatmul.mubr.f32.gmra.mrb[0].mxu0 %v170
    %v374 = vpop.f32.mrb[0].mxu0
    %v375 = vadd.f32 0.0, %v374
    %v376 = vpop.f32.mrb[0].mxu0
    %v377 = vadd.f32 0.0, %v376
    %378 = vmatprep.mubr.f32.mxu0 0.0
    %379 = vmatmul.mubr.f32.gmra.mrb[0].mxu0 %v173
    %v380 = vpop.f32.mrb[0].mxu0
    %v381 = vadd.f32 0.0, %v380
    %v382 = vpop.f32.mrb[0].mxu0
    %v383 = vadd.f32 0.0, %v382
    %384 = vmatprep.mubr.f32.mxu0 0.0
    %385 = vmatmul.mubr.f32.gmra.mrb[0].mxu0 %v176
    %v386 = vpop.f32.mrb[0].mxu0
    %v387 = vadd.f32 0.0, %v386
    %v388 = vpop.f32.mrb[0].mxu0
    %v389 = vadd.f32 0.0, %v388
    %390 = vmatprep.mubr.f32.mxu0 0.0
    %391 = vmatmul.mubr.f32.gmra.mrb[0].mxu0 %v179
    %v392 = vpop.f32.mrb[0].mxu0
    %v393 = vadd.f32 0.0, %v392
    %v394 = vpop.f32.mrb[0].mxu0
    %v395 = vadd.f32 0.0, %v394
    %396 = vdwg.mxu0
    %v398 = vsel %vm108, %v66, 0
    %v401 = vsel %vm181, %v96, 0
    %v404 = vsel %vm181, %v97, 0
    %406 = vmatprep.subr.mxu0 %v91
    %407 = vmatpush1.msra.mxu0 %v90
    %408 = vmatprep.subr.mxu0 %v93
    %409 = vmatpush1.msra.mxu0 %v92
    %410 = vmatprep.subr.mxu0 %v95
    %411 = vmatpush1.msra.mxu0 %v94
    %412 = vmatprep.subr.mxu0 %v404
    %413 = vmatpush1.msra.mxu0 %v401
    %414 = vmatprep.subr.mxu0 0.0
    %415 = vmatpush1.msra.mxu0 0.0
    %416 = vmatprep.subr.mxu0 0.0
    %417 = vmatpush1.msra.mxu0 0.0
    %418 = vmatprep.subr.mxu0 0.0
    %419 = vmatpush1.msra.mxu0 0.0
    %420 = vmatprep.subr.mxu0 0.0
    %421 = vmatpush1.msra.mxu0 0.0
    %422 = vmatprep.subr.mxu0 0.0
    %423 = vmatpush1.msra.mxu0 0.0
    %424 = vmatprep.subr.mxu0 0.0
    %425 = vmatpush1.msra.mxu0 0.0
    %426 = vmatprep.subr.mxu0 0.0
    %427 = vmatpush1.msra.mxu0 0.0
    %428 = vmatprep.subr.mxu0 0.0
    %429 = vmatpush1.msra.mxu0 0.0
    %430 = vmatprep.subr.mxu0 0.0
    %431 = vmatpush1.msra.mxu0 0.0
    %432 = vmatprep.subr.mxu0 0.0
    %433 = vmatpush1.msra.mxu0 0.0
    %434 = vmatprep.subr.mxu0 0.0
    %435 = vmatpush1.msra.mxu0 0.0
    %436 = vmatprep.subr.mxu0 0.0
    %437 = vmatpush1.msra.mxu0 0.0
    %438 = vmatprep.subr.mxu0 0.0
    %439 = vmatpush1.msra.mxu0 0.0
    %440 = vmatprep.subr.mxu0 0.0
    %441 = vmatpush1.msra.mxu0 0.0
    %442 = vmatprep.subr.mxu0 0.0
    %443 = vmatpush1.msra.mxu0 0.0
    %444 = vmatprep.subr.mxu0 0.0
    %445 = vmatpush1.msra.mxu0 0.0
    %446 = vmatprep.subr.mxu0 0.0
    %447 = vmatpush1.msra.mxu0 0.0
    %448 = vmatprep.subr.mxu0 0.0
    %449 = vmatpush1.msra.mxu0 0.0
    %450 = vmatprep.subr.mxu0 0.0
    %451 = vmatpush1.msra.mxu0 0.0
    %452 = vmatprep.subr.mxu0 0.0
    %453 = vmatpush1.msra.mxu0 0.0
    %454 = vmatprep.subr.mxu0 0.0
    %455 = vmatpush1.msra.mxu0 0.0
    %456 = vmatprep.subr.mxu0 0.0
    %457 = vmatpush1.msra.mxu0 0.0
    %458 = vmatprep.subr.mxu0 0.0
    %459 = vmatpush1.msra.mxu0 0.0
    %460 = vmatprep.subr.mxu0 0.0
    %461 = vmatpush1.msra.mxu0 0.0
    %462 = vmatprep.subr.mxu0 0.0
    %463 = vmatpush1.msra.mxu0 0.0
    %464 = vmatprep.subr.mxu0 0.0
    %465 = vmatpush1.msra.mxu0 0.0
    %466 = vmatprep.subr.mxu0 0.0
    %467 = vmatpush1.msra.mxu0 0.0
    %468 = vmatprep.subr.mxu0 0.0
    %469 = vmatpush1.msra.mxu0 0.0
    %470 = vmatprep.mubr.f32.mxu0 0.0
    %471 = vmatmul.mubr.f32.gmra.mrb[0].mxu0 %v398
    %v472 = vpop.f32.mrb[0].mxu0
    %v473 = vadd.f32 %v255, %v472
    %v474 = vpop.f32.mrb[0].mxu0
    %v475 = vadd.f32 %v257, %v474
    %476 = vmatprep.mubr.f32.mxu0 0.0
    %477 = vmatmul.mubr.f32.gmra.mrb[0].mxu0 %v110
    %v478 = vpop.f32.mrb[0].mxu0
    %v479 = vadd.f32 %v261, %v478
    %v480 = vpop.f32.mrb[0].mxu0
    %v481 = vadd.f32 %v263, %v480
    %482 = vmatprep.mubr.f32.mxu0 0.0
    %483 = vmatmul.mubr.f32.gmra.mrb[0].mxu0 %v113
    %v484 = vpop.f32.mrb[0].mxu0
    %v485 = vadd.f32 %v267, %v484
    %v486 = vpop.f32.mrb[0].mxu0
    %v487 = vadd.f32 %v269, %v486
    %488 = vmatprep.mubr.f32.mxu0 0.0
    %489 = vmatmul.mubr.f32.gmra.mrb[0].mxu0 %v116
    %v490 = vpop.f32.mrb[0].mxu0
    %v491 = vadd.f32 %v273, %v490
    %v492 = vpop.f32.mrb[0].mxu0
    %v493 = vadd.f32 %v275, %v492
    %494 = vmatprep.mubr.f32.mxu0 0.0
    %495 = vmatmul.mubr.f32.gmra.mrb[0].mxu0 %v119
    %v496 = vpop.f32.mrb[0].mxu0
    %v497 = vadd.f32 %v279, %v496
    %v498 = vpop.f32.mrb[0].mxu0
    %v499 = vadd.f32 %v281, %v498
    %500 = vmatprep.mubr.f32.mxu0 0.0
    %501 = vmatmul.mubr.f32.gmra.mrb[0].mxu0 %v122
    %v502 = vpop.f32.mrb[0].mxu0
    %v503 = vadd.f32 %v285, %v502
    %v504 = vpop.f32.mrb[0].mxu0
    %v505 = vadd.f32 %v287, %v504
    %506 = vmatprep.mubr.f32.mxu0 0.0
    %507 = vmatmul.mubr.f32.gmra.mrb[0].mxu0 %v125
    %v508 = vpop.f32.mrb[0].mxu0
    %v509 = vadd.f32 %v291, %v508
    %v510 = vpop.f32.mrb[0].mxu0
    %v511 = vadd.f32 %v293, %v510
    %512 = vmatprep.mubr.f32.mxu0 0.0
    %513 = vmatmul.mubr.f32.gmra.mrb[0].mxu0 %v128
    %v514 = vpop.f32.mrb[0].mxu0
    %v515 = vadd.f32 %v297, %v514
    %v516 = vpop.f32.mrb[0].mxu0
    %v517 = vadd.f32 %v299, %v516
    %518 = vmatprep.mubr.f32.mxu0 0.0
    %519 = vmatmul.mubr.f32.gmra.mrb[0].mxu0 %v131
    %v520 = vpop.f32.mrb[0].mxu0
    %v521 = vadd.f32 %v303, %v520
    %v522 = vpop.f32.mrb[0].mxu0
    %v523 = vadd.f32 %v305, %v522
    %524 = vmatprep.mubr.f32.mxu0 0.0
    %525 = vmatmul.mubr.f32.gmra.mrb[0].mxu0 %v134
    %v526 = vpop.f32.mrb[0].mxu0
    %v527 = vadd.f32 %v309, %v526
    %v528 = vpop.f32.mrb[0].mxu0
    %v529 = vadd.f32 %v311, %v528
    %530 = vmatprep.mubr.f32.mxu0 0.0
    %531 = vmatmul.mubr.f32.gmra.mrb[0].mxu0 %v137
    %v532 = vpop.f32.mrb[0].mxu0
    %v533 = vadd.f32 %v315, %v532
    %v534 = vpop.f32.mrb[0].mxu0
    %v535 = vadd.f32 %v317, %v534
    %536 = vmatprep.mubr.f32.mxu0 0.0
    %537 = vmatmul.mubr.f32.gmra.mrb[0].mxu0 %v140
    %v538 = vpop.f32.mrb[0].mxu0
    %v539 = vadd.f32 %v321, %v538
    %v540 = vpop.f32.mrb[0].mxu0
    %v541 = vadd.f32 %v323, %v540
    %542 = vmatprep.mubr.f32.mxu0 0.0
    %543 = vmatmul.mubr.f32.gmra.mrb[0].mxu0 %v143
    %v544 = vpop.f32.mrb[0].mxu0
    %v545 = vadd.f32 %v327, %v544
    %v546 = vpop.f32.mrb[0].mxu0
    %v547 = vadd.f32 %v329, %v546
    %548 = vmatprep.mubr.f32.mxu0 0.0
    %549 = vmatmul.mubr.f32.gmra.mrb[0].mxu0 %v146
    %v550 = vpop.f32.mrb[0].mxu0
    %v551 = vadd.f32 %v333, %v550
    %v552 = vpop.f32.mrb[0].mxu0
    %v553 = vadd.f32 %v335, %v552
    %554 = vmatprep.mubr.f32.mxu0 0.0
    %555 = vmatmul.mubr.f32.gmra.mrb[0].mxu0 %v149
    %v556 = vpop.f32.mrb[0].mxu0
    %v557 = vadd.f32 %v339, %v556
    %v558 = vpop.f32.mrb[0].mxu0
    %v559 = vadd.f32 %v341, %v558
    %560 = vmatprep.mubr.f32.mxu0 0.0
    %561 = vmatmul.mubr.f32.gmra.mrb[0].mxu0 %v152
    %v562 = vpop.f32.mrb[0].mxu0
    %v563 = vadd.f32 %v345, %v562
    %v564 = vpop.f32.mrb[0].mxu0
    %v565 = vadd.f32 %v347, %v564
    %566 = vmatprep.mubr.f32.mxu0 0.0
    %567 = vmatmul.mubr.f32.gmra.mrb[0].mxu0 %v155
    %v568 = vpop.f32.mrb[0].mxu0
    %v569 = vadd.f32 %v351, %v568
    %v570 = vpop.f32.mrb[0].mxu0
    %v571 = vadd.f32 %v353, %v570
    %572 = vmatprep.mubr.f32.mxu0 0.0
    %573 = vmatmul.mubr.f32.gmra.mrb[0].mxu0 %v158
    %v574 = vpop.f32.mrb[0].mxu0
    %v575 = vadd.f32 %v357, %v574
    %v576 = vpop.f32.mrb[0].mxu0
    %v577 = vadd.f32 %v359, %v576
    %578 = vmatprep.mubr.f32.mxu0 0.0
    %579 = vmatmul.mubr.f32.gmra.mrb[0].mxu0 %v161
    %v580 = vpop.f32.mrb[0].mxu0
    %v581 = vadd.f32 %v363, %v580
    %v582 = vpop.f32.mrb[0].mxu0
    %v583 = vadd.f32 %v365, %v582
    %584 = vmatprep.mubr.f32.mxu0 0.0
    %585 = vmatmul.mubr.f32.gmra.mrb[0].mxu0 %v164
    %v586 = vpop.f32.mrb[0].mxu0
    %v587 = vadd.f32 %v369, %v586
    %v588 = vpop.f32.mrb[0].mxu0
    %v589 = vadd.f32 %v371, %v588
    %590 = vmatprep.mubr.f32.mxu0 0.0
    %591 = vmatmul.mubr.f32.gmra.mrb[0].mxu0 %v167
    %v592 = vpop.f32.mrb[0].mxu0
    %v593 = vadd.f32 %v375, %v592
    %v594 = vpop.f32.mrb[0].mxu0
    %v595 = vadd.f32 %v377, %v594
    %596 = vmatprep.mubr.f32.mxu0 0.0
    %597 = vmatmul.mubr.f32.gmra.mrb[0].mxu0 %v170
    %v598 = vpop.f32.mrb[0].mxu0
    %v599 = vadd.f32 %v381, %v598
    %v600 = vpop.f32.mrb[0].mxu0
    %v601 = vadd.f32 %v383, %v600
    %602 = vmatprep.mubr.f32.mxu0 0.0
    %603 = vmatmul.mubr.f32.gmra.mrb[0].mxu0 %v173
    %v604 = vpop.f32.mrb[0].mxu0
    %v605 = vadd.f32 %v387, %v604
    %v606 = vpop.f32.mrb[0].mxu0
    %v607 = vadd.f32 %v389, %v606
    %608 = vmatprep.mubr.f32.mxu0 0.0
    %609 = vmatmul.mubr.f32.gmra.mrb[0].mxu0 %v176
    %v610 = vpop.f32.mrb[0].mxu0
    %v611 = vadd.f32 %v393, %v610
    %v612 = vpop.f32.mrb[0].mxu0
    %v613 = vadd.f32 %v395, %v612
    %614 = vdwg.mxu0
    %v615 = vld [vmem:[%s0 + $0x10] sm:$0xff]
    %v616 = vld [vmem:[%s0 + $0x18] sm:$0xff]
    %v617 = vld [vmem:[%s0 + $0x20] sm:$0xff]
    %v618 = vld [vmem:[%s0 + $0x28] sm:$0xff]
    %v619 = vld [vmem:[%s0 + $0x30] sm:$0xff]
    %v620 = vld [vmem:[%s0 + $0x38] sm:$0xff]
    %v621 = vld [vmem:[%s0 + $0x40] sm:$0xff]
    %v622 = vld [vmem:[%s0 + $0x48] sm:$0xff]
    %v623 = vld [vmem:[%s0 + $0x50] sm:$0xff]
    %v624 = vld [vmem:[%s0 + $0x58] sm:$0xff]
    %v625 = vld [vmem:[%s0 + $0x60] sm:$0xff]
    %v626 = vld [vmem:[%s0 + $0x68] sm:$0xff]
    %v627 = vld [vmem:[%s0 + $0x70] sm:$0xff]
    %v628 = vld [vmem:[%s0 + $0x78] sm:$0xff]
    %v629 = vld [vmem:[%s0 + $0x80] sm:$0xff]
    %v630 = vld [vmem:[%s0 + $0x88] sm:$0xff]
    %v631 = vld [vmem:[%s0 + $0x90] sm:$0xff]
    %v632 = vld [vmem:[%s0 + $0x98] sm:$0xff]
    %v633 = vld [vmem:[%s0 + $0xa0] sm:$0xff]
    %v634 = vld [vmem:[%s0 + $0xa8] sm:$0xff]
    %v635 = vld [vmem:[%s0 + $0xb0] sm:$0xff]
    %v636 = vld [vmem:[%s0 + $0xb8] sm:$0xff]
    %v637 = vld [vmem:[%s0 + $0xc0] sm:$0xff]
    %v638 = vld [vmem:[%s0 + $0xc8] sm:$0xff]
    %s639 = scalar_lea.vmem [#allocation2], 128
    %v640 = vld [vmem:[%s639] sm:$0xff]
    %v641 = vld [vmem:[%s639 + $0x8] sm:$0xff]
    %v642 = vld [vmem:[%s639 + $0x10] sm:$0xff]
    %v643 = vld [vmem:[%s639 + $0x18] sm:$0xff]
    %v644 = vld [vmem:[%s639 + $0x20] sm:$0xff]
    %v645 = vld [vmem:[%s639 + $0x28] sm:$0xff]
    %v646 = vld [vmem:[%s639 + $0x30] sm:$0xf]
    %v647 = vld [vmem:[%s639 + $0x38] sm:$0xf]
    %v649 = vsel %vm108, %v615, 0
    %v652 = vsel %vm108, %v616, 0
    %v655 = vsel %vm108, %v617, 0
    %v658 = vsel %vm108, %v618, 0
    %v661 = vsel %vm108, %v619, 0
    %v664 = vsel %vm108, %v620, 0
    %v667 = vsel %vm108, %v621, 0
    %v670 = vsel %vm108, %v622, 0
    %v673 = vsel %vm108, %v623, 0
    %v676 = vsel %vm108, %v624, 0
    %v679 = vsel %vm108, %v625, 0
    %v682 = vsel %vm108, %v626, 0
    %v685 = vsel %vm108, %v627, 0
    %v688 = vsel %vm108, %v628, 0
    %v691 = vsel %vm108, %v629, 0
    %v694 = vsel %vm108, %v630, 0
    %v697 = vsel %vm108, %v631, 0
    %v700 = vsel %vm108, %v632, 0
    %v703 = vsel %vm108, %v633, 0
    %v706 = vsel %vm108, %v634, 0
    %v709 = vsel %vm108, %v635, 0
    %v712 = vsel %vm108, %v636, 0
    %v715 = vsel %vm108, %v637, 0
    %v718 = vsel %vm108, %v638, 0
    %v721 = vsel %vm181, %v646, 0
    %v724 = vsel %vm181, %v647, 0
    %726 = vmatprep.subr.mxu0 %v641
    %727 = vmatpush1.msra.mxu0 %v640
    %728 = vmatprep.subr.mxu0 %v643
    %729 = vmatpush1.msra.mxu0 %v642
    %730 = vmatprep.subr.mxu0 %v645
    %731 = vmatpush1.msra.mxu0 %v644
    %732 = vmatprep.subr.mxu0 %v724
    %733 = vmatpush1.msra.mxu0 %v721
    %734 = vmatprep.subr.mxu0 0.0
    %735 = vmatpush1.msra.mxu0 0.0
    %736 = vmatprep.subr.mxu0 0.0
    %737 = vmatpush1.msra.mxu0 0.0
    %738 = vmatprep.subr.mxu0 0.0
    %739 = vmatpush1.msra.mxu0 0.0
    %740 = vmatprep.subr.mxu0 0.0
    %741 = vmatpush1.msra.mxu0 0.0
    %742 = vmatprep.subr.mxu0 0.0
    %743 = vmatpush1.msra.mxu0 0.0
    %744 = vmatprep.subr.mxu0 0.0
    %745 = vmatpush1.msra.mxu0 0.0
    %746 = vmatprep.subr.mxu0 0.0
    %747 = vmatpush1.msra.mxu0 0.0
    %748 = vmatprep.subr.mxu0 0.0
    %749 = vmatpush1.msra.mxu0 0.0
    %750 = vmatprep.subr.mxu0 0.0
    %751 = vmatpush1.msra.mxu0 0.0
    %752 = vmatprep.subr.mxu0 0.0
    %753 = vmatpush1.msra.mxu0 0.0
    %754 = vmatprep.subr.mxu0 0.0
    %755 = vmatpush1.msra.mxu0 0.0
    %756 = vmatprep.subr.mxu0 0.0
    %757 = vmatpush1.msra.mxu0 0.0
    %758 = vmatprep.subr.mxu0 0.0
    %759 = vmatpush1.msra.mxu0 0.0
    %760 = vmatprep.subr.mxu0 0.0
    %761 = vmatpush1.msra.mxu0 0.0
    %762 = vmatprep.subr.mxu0 0.0
    %763 = vmatpush1.msra.mxu0 0.0
    %764 = vmatprep.subr.mxu0 0.0
    %765 = vmatpush1.msra.mxu0 0.0
    %766 = vmatprep.subr.mxu0 0.0
    %767 = vmatpush1.msra.mxu0 0.0
    %768 = vmatprep.subr.mxu0 0.0
    %769 = vmatpush1.msra.mxu0 0.0
    %770 = vmatprep.subr.mxu0 0.0
    %771 = vmatpush1.msra.mxu0 0.0
    %772 = vmatprep.subr.mxu0 0.0
    %773 = vmatpush1.msra.mxu0 0.0
    %774 = vmatprep.subr.mxu0 0.0
    %775 = vmatpush1.msra.mxu0 0.0
    %776 = vmatprep.subr.mxu0 0.0
    %777 = vmatpush1.msra.mxu0 0.0
    %778 = vmatprep.subr.mxu0 0.0
    %779 = vmatpush1.msra.mxu0 0.0
    %780 = vmatprep.subr.mxu0 0.0
    %781 = vmatpush1.msra.mxu0 0.0
    %782 = vmatprep.subr.mxu0 0.0
    %783 = vmatpush1.msra.mxu0 0.0
    %784 = vmatprep.subr.mxu0 0.0
    %785 = vmatpush1.msra.mxu0 0.0
    %786 = vmatprep.subr.mxu0 0.0
    %787 = vmatpush1.msra.mxu0 0.0
    %788 = vmatprep.subr.mxu0 0.0
    %789 = vmatpush1.msra.mxu0 0.0
    %790 = vmatprep.mubr.f32.mxu0 0.0
    %791 = vmatmul.mubr.f32.gmra.mrb[0].mxu0 %v649
    %v792 = vpop.f32.mrb[0].mxu0
    %v793 = vadd.f32 0.0, %v792
    %v794 = vpop.f32.mrb[0].mxu0
    %v795 = vadd.f32 0.0, %v794
    %796 = vmatprep.mubr.f32.mxu0 0.0
    %797 = vmatmul.mubr.f32.gmra.mrb[0].mxu0 %v652
    %v798 = vpop.f32.mrb[0].mxu0
    %v799 = vadd.f32 0.0, %v798
    %v800 = vpop.f32.mrb[0].mxu0
    %v801 = vadd.f32 0.0, %v800
    %802 = vmatprep.mubr.f32.mxu0 0.0
    %803 = vmatmul.mubr.f32.gmra.mrb[0].mxu0 %v655
    %v804 = vpop.f32.mrb[0].mxu0
    %v805 = vadd.f32 0.0, %v804
    %v806 = vpop.f32.mrb[0].mxu0
    %v807 = vadd.f32 0.0, %v806
    %808 = vmatprep.mubr.f32.mxu0 0.0
    %809 = vmatmul.mubr.f32.gmra.mrb[0].mxu0 %v658
    %v810 = vpop.f32.mrb[0].mxu0
    %v811 = vadd.f32 0.0, %v810
    %v812 = vpop.f32.mrb[0].mxu0
    %v813 = vadd.f32 0.0, %v812
    %814 = vmatprep.mubr.f32.mxu0 0.0
    %815 = vmatmul.mubr.f32.gmra.mrb[0].mxu0 %v661
    %v816 = vpop.f32.mrb[0].mxu0
    %v817 = vadd.f32 0.0, %v816
    %v818 = vpop.f32.mrb[0].mxu0
    %v819 = vadd.f32 0.0, %v818
    %820 = vmatprep.mubr.f32.mxu0 0.0
    %821 = vmatmul.mubr.f32.gmra.mrb[0].mxu0 %v664
    %v822 = vpop.f32.mrb[0].mxu0
    %v823 = vadd.f32 0.0, %v822
    %v824 = vpop.f32.mrb[0].mxu0
    %v825 = vadd.f32 0.0, %v824
    %826 = vmatprep.mubr.f32.mxu0 0.0
    %827 = vmatmul.mubr.f32.gmra.mrb[0].mxu0 %v667
    %v828 = vpop.f32.mrb[0].mxu0
    %v829 = vadd.f32 0.0, %v828
    %v830 = vpop.f32.mrb[0].mxu0
    %v831 = vadd.f32 0.0, %v830
    %832 = vmatprep.mubr.f32.mxu0 0.0
    %833 = vmatmul.mubr.f32.gmra.mrb[0].mxu0 %v670
    %v834 = vpop.f32.mrb[0].mxu0
    %v835 = vadd.f32 0.0, %v834
    %v836 = vpop.f32.mrb[0].mxu0
    %v837 = vadd.f32 0.0, %v836
    %838 = vmatprep.mubr.f32.mxu0 0.0
    %839 = vmatmul.mubr.f32.gmra.mrb[0].mxu0 %v673
    %v840 = vpop.f32.mrb[0].mxu0
    %v841 = vadd.f32 0.0, %v840
    %v842 = vpop.f32.mrb[0].mxu0
    %v843 = vadd.f32 0.0, %v842
    %844 = vmatprep.mubr.f32.mxu0 0.0
    %845 = vmatmul.mubr.f32.gmra.mrb[0].mxu0 %v676
    %v846 = vpop.f32.mrb[0].mxu0
    %v847 = vadd.f32 0.0, %v846
    %v848 = vpop.f32.mrb[0].mxu0
    %v849 = vadd.f32 0.0, %v848
    %850 = vmatprep.mubr.f32.mxu0 0.0
    %851 = vmatmul.mubr.f32.gmra.mrb[0].mxu0 %v679
    %v852 = vpop.f32.mrb[0].mxu0
    %v853 = vadd.f32 0.0, %v852
    %v854 = vpop.f32.mrb[0].mxu0
    %v855 = vadd.f32 0.0, %v854
    %856 = vmatprep.mubr.f32.mxu0 0.0
    %857 = vmatmul.mubr.f32.gmra.mrb[0].mxu0 %v682
    %v858 = vpop.f32.mrb[0].mxu0
    %v859 = vadd.f32 0.0, %v858
    %v860 = vpop.f32.mrb[0].mxu0
    %v861 = vadd.f32 0.0, %v860
    %862 = vmatprep.mubr.f32.mxu0 0.0
    %863 = vmatmul.mubr.f32.gmra.mrb[0].mxu0 %v685
    %v864 = vpop.f32.mrb[0].mxu0
    %v865 = vadd.f32 0.0, %v864
    %v866 = vpop.f32.mrb[0].mxu0
    %v867 = vadd.f32 0.0, %v866
    %868 = vmatprep.mubr.f32.mxu0 0.0
    %869 = vmatmul.mubr.f32.gmra.mrb[0].mxu0 %v688
    %v870 = vpop.f32.mrb[0].mxu0
    %v871 = vadd.f32 0.0, %v870
    %v872 = vpop.f32.mrb[0].mxu0
    %v873 = vadd.f32 0.0, %v872
    %874 = vmatprep.mubr.f32.mxu0 0.0
    %875 = vmatmul.mubr.f32.gmra.mrb[0].mxu0 %v691
    %v876 = vpop.f32.mrb[0].mxu0
    %v877 = vadd.f32 0.0, %v876
    %v878 = vpop.f32.mrb[0].mxu0
    %v879 = vadd.f32 0.0, %v878
    %880 = vmatprep.mubr.f32.mxu0 0.0
    %881 = vmatmul.mubr.f32.gmra.mrb[0].mxu0 %v694
    %v882 = vpop.f32.mrb[0].mxu0
    %v883 = vadd.f32 0.0, %v882
    %v884 = vpop.f32.mrb[0].mxu0
    %v885 = vadd.f32 0.0, %v884
    %886 = vmatprep.mubr.f32.mxu0 0.0
    %887 = vmatmul.mubr.f32.gmra.mrb[0].mxu0 %v697
    %v888 = vpop.f32.mrb[0].mxu0
    %v889 = vadd.f32 0.0, %v888
    %v890 = vpop.f32.mrb[0].mxu0
    %v891 = vadd.f32 0.0, %v890
    %892 = vmatprep.mubr.f32.mxu0 0.0
    %893 = vmatmul.mubr.f32.gmra.mrb[0].mxu0 %v700
    %v894 = vpop.f32.mrb[0].mxu0
    %v895 = vadd.f32 0.0, %v894
    %v896 = vpop.f32.mrb[0].mxu0
    %v897 = vadd.f32 0.0, %v896
    %898 = vmatprep.mubr.f32.mxu0 0.0
    %899 = vmatmul.mubr.f32.gmra.mrb[0].mxu0 %v703
    %v900 = vpop.f32.mrb[0].mxu0
    %v901 = vadd.f32 0.0, %v900
    %v902 = vpop.f32.mrb[0].mxu0
    %v903 = vadd.f32 0.0, %v902
    %904 = vmatprep.mubr.f32.mxu0 0.0
    %905 = vmatmul.mubr.f32.gmra.mrb[0].mxu0 %v706
    %v906 = vpop.f32.mrb[0].mxu0
    %v907 = vadd.f32 0.0, %v906
    %v908 = vpop.f32.mrb[0].mxu0
    %v909 = vadd.f32 0.0, %v908
    %910 = vmatprep.mubr.f32.mxu0 0.0
    %911 = vmatmul.mubr.f32.gmra.mrb[0].mxu0 %v709
    %v912 = vpop.f32.mrb[0].mxu0
    %v913 = vadd.f32 0.0, %v912
    %v914 = vpop.f32.mrb[0].mxu0
    %v915 = vadd.f32 0.0, %v914
    %916 = vmatprep.mubr.f32.mxu0 0.0
    %917 = vmatmul.mubr.f32.gmra.mrb[0].mxu0 %v712
    %v918 = vpop.f32.mrb[0].mxu0
    %v919 = vadd.f32 0.0, %v918
    %v920 = vpop.f32.mrb[0].mxu0
    %v921 = vadd.f32 0.0, %v920
    %922 = vmatprep.mubr.f32.mxu0 0.0
    %923 = vmatmul.mubr.f32.gmra.mrb[0].mxu0 %v715
    %v924 = vpop.f32.mrb[0].mxu0
    %v925 = vadd.f32 0.0, %v924
    %v926 = vpop.f32.mrb[0].mxu0
    %v927 = vadd.f32 0.0, %v926
    %928 = vmatprep.mubr.f32.mxu0 0.0
    %929 = vmatmul.mubr.f32.gmra.mrb[0].mxu0 %v718
    %v930 = vpop.f32.mrb[0].mxu0
    %v931 = vadd.f32 0.0, %v930
    %v932 = vpop.f32.mrb[0].mxu0
    %v933 = vadd.f32 0.0, %v932
    %934 = vdwg.mxu0
    %v935 = vadd.f32 %v473, %v793
    %v936 = vadd.f32 %v475, %v795
    %v937 = vadd.f32 %v479, %v799
    %v938 = vadd.f32 %v481, %v801
    %v939 = vadd.f32 %v485, %v805
    %v940 = vadd.f32 %v487, %v807
    %v941 = vadd.f32 %v491, %v811
    %v942 = vadd.f32 %v493, %v813
    %v943 = vadd.f32 %v497, %v817
    %v944 = vadd.f32 %v499, %v819
    %v945 = vadd.f32 %v503, %v823
    %v946 = vadd.f32 %v505, %v825
    %v947 = vadd.f32 %v509, %v829
    %v948 = vadd.f32 %v511, %v831
    %v949 = vadd.f32 %v515, %v835
    %v950 = vadd.f32 %v517, %v837
    %v951 = vadd.f32 %v521, %v841
    %v952 = vadd.f32 %v523, %v843
    %v953 = vadd.f32 %v527, %v847
    %v954 = vadd.f32 %v529, %v849
    %v955 = vadd.f32 %v533, %v853
    %v956 = vadd.f32 %v535, %v855
    %v957 = vadd.f32 %v539, %v859
    %v958 = vadd.f32 %v541, %v861
    %v959 = vadd.f32 %v545, %v865
    %v960 = vadd.f32 %v547, %v867
    %v961 = vadd.f32 %v551, %v871
    %v962 = vadd.f32 %v553, %v873
    %v963 = vadd.f32 %v557, %v877
    %v964 = vadd.f32 %v559, %v879
    %v965 = vadd.f32 %v563, %v883
    %v966 = vadd.f32 %v565, %v885
    %v967 = vadd.f32 %v569, %v889
    %v968 = vadd.f32 %v571, %v891
    %v969 = vadd.f32 %v575, %v895
    %v970 = vadd.f32 %v577, %v897
    %v971 = vadd.f32 %v581, %v901
    %v972 = vadd.f32 %v583, %v903
    %v973 = vadd.f32 %v587, %v907
    %v974 = vadd.f32 %v589, %v909
    %v975 = vadd.f32 %v593, %v913
    %v976 = vadd.f32 %v595, %v915
    %v977 = vadd.f32 %v599, %v919
    %v978 = vadd.f32 %v601, %v921
    %v979 = vadd.f32 %v605, %v925
    %v980 = vadd.f32 %v607, %v927
    %v981 = vadd.f32 %v611, %v931
    %v982 = vadd.f32 %v613, %v933
    %v983 = vld [vmem:[%s0 + $0x18] sm:$0xff]
    %v984 = vld [vmem:[%s0 + $0x20] sm:$0xff]
    %v985 = vld [vmem:[%s0 + $0x28] sm:$0xff]
    %v986 = vld [vmem:[%s0 + $0x30] sm:$0xff]
    %v987 = vld [vmem:[%s0 + $0x38] sm:$0xff]
    %v988 = vld [vmem:[%s0 + $0x40] sm:$0xff]
    %v989 = vld [vmem:[%s0 + $0x48] sm:$0xff]
    %v990 = vld [vmem:[%s0 + $0x50] sm:$0xff]
    %v991 = vld [vmem:[%s0 + $0x58] sm:$0xff]
    %v992 = vld [vmem:[%s0 + $0x60] sm:$0xff]
    %v993 = vld [vmem:[%s0 + $0x68] sm:$0xff]
    %v994 = vld [vmem:[%s0 + $0x70] sm:$0xff]
    %v995 = vld [vmem:[%s0 + $0x78] sm:$0xff]
    %v996 = vld [vmem:[%s0 + $0x80] sm:$0xff]
    %v997 = vld [vmem:[%s0 + $0x88] sm:$0xff]
    %v998 = vld [vmem:[%s0 + $0x90] sm:$0xff]
    %v999 = vld [vmem:[%s0 + $0x98] sm:$0xff]
    %v1000 = vld [vmem:[%s0 + $0xa0] sm:$0xff]
    %v1001 = vld [vmem:[%s0 + $0xa8] sm:$0xff]
    %v1002 = vld [vmem:[%s0 + $0xb0] sm:$0xff]
    %v1003 = vld [vmem:[%s0 + $0xb8] sm:$0xff]
    %v1004 = vld [vmem:[%s0 + $0xc0] sm:$0xff]
    %v1005 = vld [vmem:[%s0 + $0xc8] sm:$0xff]
    %v1006 = vld [vmem:[%s0 + $0xd0] sm:$0xff]
    %s1007 = scalar_lea.vmem [#allocation2], 192
    %v1008 = vld [vmem:[%s1007] sm:$0xff]
    %v1009 = vld [vmem:[%s1007 + $0x8] sm:$0xff]
    %v1010 = vld [vmem:[%s1007 + $0x10] sm:$0xff]
    %v1011 = vld [vmem:[%s1007 + $0x18] sm:$0xff]
    %v1012 = vld [vmem:[%s1007 + $0x20] sm:$0xff]
    %v1013 = vld [vmem:[%s1007 + $0x28] sm:$0xff]
    %v1014 = vld [vmem:[%s1007 + $0x30] sm:$0xf]
    %v1015 = vld [vmem:[%s1007 + $0x38] sm:$0xf]
    %v1017 = vsel %vm108, %v983, 0
    %v1020 = vsel %vm108, %v984, 0
    %v1023 = vsel %vm108, %v985, 0
    %v1026 = vsel %vm108, %v986, 0
    %v1029 = vsel %vm108, %v987, 0
    %v1032 = vsel %vm108, %v988, 0
    %v1035 = vsel %vm108, %v989, 0
    %v1038 = vsel %vm108, %v990, 0
    %v1041 = vsel %vm108, %v991, 0
    %v1044 = vsel %vm108, %v992, 0
    %v1047 = vsel %vm108, %v993, 0
    %v1050 = vsel %vm108, %v994, 0
    %v1053 = vsel %vm108, %v995, 0
    %v1056 = vsel %vm108, %v996, 0
    %v1059 = vsel %vm108, %v997, 0
    %v1062 = vsel %vm108, %v998, 0
    %v1065 = vsel %vm108, %v999, 0
    %v1068 = vsel %vm108, %v1000, 0
    %v1071 = vsel %vm108, %v1001, 0
    %v1074 = vsel %vm108, %v1002, 0
    %v1077 = vsel %vm108, %v1003, 0
    %v1080 = vsel %vm108, %v1004, 0
    %v1083 = vsel %vm108, %v1005, 0
    %v1086 = vsel %vm108, %v1006, 0
    %v1089 = vsel %vm181, %v1014, 0
    %v1092 = vsel %vm181, %v1015, 0
    %1094 = vmatprep.subr.mxu0 %v1009
    %1095 = vmatpush1.msra.mxu0 %v1008
    %1096 = vmatprep.subr.mxu0 %v1011
    %1097 = vmatpush1.msra.mxu0 %v1010
    %1098 = vmatprep.subr.mxu0 %v1013
    %1099 = vmatpush1.msra.mxu0 %v1012
    %1100 = vmatprep.subr.mxu0 %v1092
    %1101 = vmatpush1.msra.mxu0 %v1089
    %1102 = vmatprep.subr.mxu0 0.0
    %1103 = vmatpush1.msra.mxu0 0.0
    %1104 = vmatprep.subr.mxu0 0.0
    %1105 = vmatpush1.msra.mxu0 0.0
    %1106 = vmatprep.subr.mxu0 0.0
    %1107 = vmatpush1.msra.mxu0 0.0
    %1108 = vmatprep.subr.mxu0 0.0
    %1109 = vmatpush1.msra.mxu0 0.0
    %1110 = vmatprep.subr.mxu0 0.0
    %1111 = vmatpush1.msra.mxu0 0.0
    %1112 = vmatprep.subr.mxu0 0.0
    %1113 = vmatpush1.msra.mxu0 0.0
    %1114 = vmatprep.subr.mxu0 0.0
    %1115 = vmatpush1.msra.mxu0 0.0
    %1116 = vmatprep.subr.mxu0 0.0
    %1117 = vmatpush1.msra.mxu0 0.0
    %1118 = vmatprep.subr.mxu0 0.0
    %1119 = vmatpush1.msra.mxu0 0.0
    %1120 = vmatprep.subr.mxu0 0.0
    %1121 = vmatpush1.msra.mxu0 0.0
    %1122 = vmatprep.subr.mxu0 0.0
    %1123 = vmatpush1.msra.mxu0 0.0
    %1124 = vmatprep.subr.mxu0 0.0
    %1125 = vmatpush1.msra.mxu0 0.0
    %1126 = vmatprep.subr.mxu0 0.0
    %1127 = vmatpush1.msra.mxu0 0.0
    %1128 = vmatprep.subr.mxu0 0.0
    %1129 = vmatpush1.msra.mxu0 0.0
    %1130 = vmatprep.subr.mxu0 0.0
    %1131 = vmatpush1.msra.mxu0 0.0
    %1132 = vmatprep.subr.mxu0 0.0
    %1133 = vmatpush1.msra.mxu0 0.0
    %1134 = vmatprep.subr.mxu0 0.0
    %1135 = vmatpush1.msra.mxu0 0.0
    %1136 = vmatprep.subr.mxu0 0.0
    %1137 = vmatpush1.msra.mxu0 0.0
    %1138 = vmatprep.subr.mxu0 0.0
    %1139 = vmatpush1.msra.mxu0 0.0
    %1140 = vmatprep.subr.mxu0 0.0
    %1141 = vmatpush1.msra.mxu0 0.0
    %1142 = vmatprep.subr.mxu0 0.0
    %1143 = vmatpush1.msra.mxu0 0.0
    %1144 = vmatprep.subr.mxu0 0.0
    %1145 = vmatpush1.msra.mxu0 0.0
    %1146 = vmatprep.subr.mxu0 0.0
    %1147 = vmatpush1.msra.mxu0 0.0
    %1148 = vmatprep.subr.mxu0 0.0
    %1149 = vmatpush1.msra.mxu0 0.0
    %1150 = vmatprep.subr.mxu0 0.0
    %1151 = vmatpush1.msra.mxu0 0.0
    %1152 = vmatprep.subr.mxu0 0.0
    %1153 = vmatpush1.msra.mxu0 0.0
    %1154 = vmatprep.subr.mxu0 0.0
    %1155 = vmatpush1.msra.mxu0 0.0
    %1156 = vmatprep.subr.mxu0 0.0
    %1157 = vmatpush1.msra.mxu0 0.0
    %1158 = vmatprep.mubr.f32.mxu0 0.0
    %1159 = vmatmul.mubr.f32.gmra.mrb[0].mxu0 %v1017
    %v1160 = vpop.f32.mrb[0].mxu0
    %v1161 = vadd.f32 0.0, %v1160
    %v1162 = vpop.f32.mrb[0].mxu0
    %v1163 = vadd.f32 0.0, %v1162
    %1164 = vmatprep.mubr.f32.mxu0 0.0
    %1165 = vmatmul.mubr.f32.gmra.mrb[0].mxu0 %v1020
    %v1166 = vpop.f32.mrb[0].mxu0
    %v1167 = vadd.f32 0.0, %v1166
    %v1168 = vpop.f32.mrb[0].mxu0
    %v1169 = vadd.f32 0.0, %v1168
    %1170 = vmatprep.mubr.f32.mxu0 0.0
    %1171 = vmatmul.mubr.f32.gmra.mrb[0].mxu0 %v1023
    %v1172 = vpop.f32.mrb[0].mxu0
    %v1173 = vadd.f32 0.0, %v1172
    %v1174 = vpop.f32.mrb[0].mxu0
    %v1175 = vadd.f32 0.0, %v1174
    %1176 = vmatprep.mubr.f32.mxu0 0.0
    %1177 = vmatmul.mubr.f32.gmra.mrb[0].mxu0 %v1026
    %v1178 = vpop.f32.mrb[0].mxu0
    %v1179 = vadd.f32 0.0, %v1178
    %v1180 = vpop.f32.mrb[0].mxu0
    %v1181 = vadd.f32 0.0, %v1180
    %1182 = vmatprep.mubr.f32.mxu0 0.0
    %1183 = vmatmul.mubr.f32.gmra.mrb[0].mxu0 %v1029
    %v1184 = vpop.f32.mrb[0].mxu0
    %v1185 = vadd.f32 0.0, %v1184
    %v1186 = vpop.f32.mrb[0].mxu0
    %v1187 = vadd.f32 0.0, %v1186
    %1188 = vmatprep.mubr.f32.mxu0 0.0
    %1189 = vmatmul.mubr.f32.gmra.mrb[0].mxu0 %v1032
    %v1190 = vpop.f32.mrb[0].mxu0
    %v1191 = vadd.f32 0.0, %v1190
    %v1192 = vpop.f32.mrb[0].mxu0
    %v1193 = vadd.f32 0.0, %v1192
    %1194 = vmatprep.mubr.f32.mxu0 0.0
    %1195 = vmatmul.mubr.f32.gmra.mrb[0].mxu0 %v1035
    %v1196 = vpop.f32.mrb[0].mxu0
    %v1197 = vadd.f32 0.0, %v1196
    %v1198 = vpop.f32.mrb[0].mxu0
    %v1199 = vadd.f32 0.0, %v1198
    %1200 = vmatprep.mubr.f32.mxu0 0.0
    %1201 = vmatmul.mubr.f32.gmra.mrb[0].mxu0 %v1038
    %v1202 = vpop.f32.mrb[0].mxu0
    %v1203 = vadd.f32 0.0, %v1202
    %v1204 = vpop.f32.mrb[0].mxu0
    %v1205 = vadd.f32 0.0, %v1204
    %1206 = vmatprep.mubr.f32.mxu0 0.0
    %1207 = vmatmul.mubr.f32.gmra.mrb[0].mxu0 %v1041
    %v1208 = vpop.f32.mrb[0].mxu0
    %v1209 = vadd.f32 0.0, %v1208
    %v1210 = vpop.f32.mrb[0].mxu0
    %v1211 = vadd.f32 0.0, %v1210
    %1212 = vmatprep.mubr.f32.mxu0 0.0
    %1213 = vmatmul.mubr.f32.gmra.mrb[0].mxu0 %v1044
    %v1214 = vpop.f32.mrb[0].mxu0
    %v1215 = vadd.f32 0.0, %v1214
    %v1216 = vpop.f32.mrb[0].mxu0
    %v1217 = vadd.f32 0.0, %v1216
    %1218 = vmatprep.mubr.f32.mxu0 0.0
    %1219 = vmatmul.mubr.f32.gmra.mrb[0].mxu0 %v1047
    %v1220 = vpop.f32.mrb[0].mxu0
    %v1221 = vadd.f32 0.0, %v1220
    %v1222 = vpop.f32.mrb[0].mxu0
    %v1223 = vadd.f32 0.0, %v1222
    %1224 = vmatprep.mubr.f32.mxu0 0.0
    %1225 = vmatmul.mubr.f32.gmra.mrb[0].mxu0 %v1050
    %v1226 = vpop.f32.mrb[0].mxu0
    %v1227 = vadd.f32 0.0, %v1226
    %v1228 = vpop.f32.mrb[0].mxu0
    %v1229 = vadd.f32 0.0, %v1228
    %1230 = vmatprep.mubr.f32.mxu0 0.0
    %1231 = vmatmul.mubr.f32.gmra.mrb[0].mxu0 %v1053
    %v1232 = vpop.f32.mrb[0].mxu0
    %v1233 = vadd.f32 0.0, %v1232
    %v1234 = vpop.f32.mrb[0].mxu0
    %v1235 = vadd.f32 0.0, %v1234
    %1236 = vmatprep.mubr.f32.mxu0 0.0
    %1237 = vmatmul.mubr.f32.gmra.mrb[0].mxu0 %v1056
    %v1238 = vpop.f32.mrb[0].mxu0
    %v1239 = vadd.f32 0.0, %v1238
    %v1240 = vpop.f32.mrb[0].mxu0
    %v1241 = vadd.f32 0.0, %v1240
    %1242 = vmatprep.mubr.f32.mxu0 0.0
    %1243 = vmatmul.mubr.f32.gmra.mrb[0].mxu0 %v1059
    %v1244 = vpop.f32.mrb[0].mxu0
    %v1245 = vadd.f32 0.0, %v1244
    %v1246 = vpop.f32.mrb[0].mxu0
    %v1247 = vadd.f32 0.0, %v1246
    %1248 = vmatprep.mubr.f32.mxu0 0.0
    %1249 = vmatmul.mubr.f32.gmra.mrb[0].mxu0 %v1062
    %v1250 = vpop.f32.mrb[0].mxu0
    %v1251 = vadd.f32 0.0, %v1250
    %v1252 = vpop.f32.mrb[0].mxu0
    %v1253 = vadd.f32 0.0, %v1252
    %1254 = vmatprep.mubr.f32.mxu0 0.0
    %1255 = vmatmul.mubr.f32.gmra.mrb[0].mxu0 %v1065
    %v1256 = vpop.f32.mrb[0].mxu0
    %v1257 = vadd.f32 0.0, %v1256
    %v1258 = vpop.f32.mrb[0].mxu0
    %v1259 = vadd.f32 0.0, %v1258
    %1260 = vmatprep.mubr.f32.mxu0 0.0
    %1261 = vmatmul.mubr.f32.gmra.mrb[0].mxu0 %v1068
    %v1262 = vpop.f32.mrb[0].mxu0
    %v1263 = vadd.f32 0.0, %v1262
    %v1264 = vpop.f32.mrb[0].mxu0
    %v1265 = vadd.f32 0.0, %v1264
    %1266 = vmatprep.mubr.f32.mxu0 0.0
    %1267 = vmatmul.mubr.f32.gmra.mrb[0].mxu0 %v1071
    %v1268 = vpop.f32.mrb[0].mxu0
    %v1269 = vadd.f32 0.0, %v1268
    %v1270 = vpop.f32.mrb[0].mxu0
    %v1271 = vadd.f32 0.0, %v1270
    %1272 = vmatprep.mubr.f32.mxu0 0.0
    %1273 = vmatmul.mubr.f32.gmra.mrb[0].mxu0 %v1074
    %v1274 = vpop.f32.mrb[0].mxu0
    %v1275 = vadd.f32 0.0, %v1274
    %v1276 = vpop.f32.mrb[0].mxu0
    %v1277 = vadd.f32 0.0, %v1276
    %1278 = vmatprep.mubr.f32.mxu0 0.0
    %1279 = vmatmul.mubr.f32.gmra.mrb[0].mxu0 %v1077
    %v1280 = vpop.f32.mrb[0].mxu0
    %v1281 = vadd.f32 0.0, %v1280
    %v1282 = vpop.f32.mrb[0].mxu0
    %v1283 = vadd.f32 0.0, %v1282
    %1284 = vmatprep.mubr.f32.mxu0 0.0
    %1285 = vmatmul.mubr.f32.gmra.mrb[0].mxu0 %v1080
    %v1286 = vpop.f32.mrb[0].mxu0
    %v1287 = vadd.f32 0.0, %v1286
    %v1288 = vpop.f32.mrb[0].mxu0
    %v1289 = vadd.f32 0.0, %v1288
    %1290 = vmatprep.mubr.f32.mxu0 0.0
    %1291 = vmatmul.mubr.f32.gmra.mrb[0].mxu0 %v1083
    %v1292 = vpop.f32.mrb[0].mxu0
    %v1293 = vadd.f32 0.0, %v1292
    %v1294 = vpop.f32.mrb[0].mxu0
    %v1295 = vadd.f32 0.0, %v1294
    %1296 = vmatprep.mubr.f32.mxu0 0.0
    %1297 = vmatmul.mubr.f32.gmra.mrb[0].mxu0 %v1086
    %v1298 = vpop.f32.mrb[0].mxu0
    %v1299 = vadd.f32 0.0, %v1298
    %v1300 = vpop.f32.mrb[0].mxu0
    %v1301 = vadd.f32 0.0, %v1300
    %1302 = vdwg.mxu0
    %v1303 = vadd.f32 %v935, %v1161
    %v1304 = vadd.f32 %v936, %v1163
    %v1305 = vadd.f32 %v937, %v1167
    %v1306 = vadd.f32 %v938, %v1169
    %v1307 = vadd.f32 %v939, %v1173
    %v1308 = vadd.f32 %v940, %v1175
    %v1309 = vadd.f32 %v941, %v1179
    %v1310 = vadd.f32 %v942, %v1181
    %v1311 = vadd.f32 %v943, %v1185
    %v1312 = vadd.f32 %v944, %v1187
    %v1313 = vadd.f32 %v945, %v1191
    %v1314 = vadd.f32 %v946, %v1193
    %v1315 = vadd.f32 %v947, %v1197
    %v1316 = vadd.f32 %v948, %v1199
    %v1317 = vadd.f32 %v949, %v1203
    %v1318 = vadd.f32 %v950, %v1205
    %v1319 = vadd.f32 %v951, %v1209
    %v1320 = vadd.f32 %v952, %v1211
    %v1321 = vadd.f32 %v953, %v1215
    %v1322 = vadd.f32 %v954, %v1217
    %v1323 = vadd.f32 %v955, %v1221
    %v1324 = vadd.f32 %v956, %v1223
    %v1325 = vadd.f32 %v957, %v1227
    %v1326 = vadd.f32 %v958, %v1229
    %v1327 = vadd.f32 %v959, %v1233
    %v1328 = vadd.f32 %v960, %v1235
    %v1329 = vadd.f32 %v961, %v1239
    %v1330 = vadd.f32 %v962, %v1241
    %v1331 = vadd.f32 %v963, %v1245
    %v1332 = vadd.f32 %v964, %v1247
    %v1333 = vadd.f32 %v965, %v1251
    %v1334 = vadd.f32 %v966, %v1253
    %v1335 = vadd.f32 %v967, %v1257
    %v1336 = vadd.f32 %v968, %v1259
    %v1337 = vadd.f32 %v969, %v1263
    %v1338 = vadd.f32 %v970, %v1265
    %v1339 = vadd.f32 %v971, %v1269
    %v1340 = vadd.f32 %v972, %v1271
    %v1341 = vadd.f32 %v973, %v1275
    %v1342 = vadd.f32 %v974, %v1277
    %v1343 = vadd.f32 %v975, %v1281
    %v1344 = vadd.f32 %v976, %v1283
    %v1345 = vadd.f32 %v977, %v1287
    %v1346 = vadd.f32 %v978, %v1289
    %v1347 = vadd.f32 %v979, %v1293
    %v1348 = vadd.f32 %v980, %v1295
    %v1349 = vadd.f32 %v981, %v1299
    %v1350 = vadd.f32 %v982, %v1301
    %v1351 = vld [vmem:[%s0 + $0x20] sm:$0xff]
    %v1352 = vld [vmem:[%s0 + $0x28] sm:$0xff]
    %v1353 = vld [vmem:[%s0 + $0x30] sm:$0xff]
    %v1354 = vld [vmem:[%s0 + $0x38] sm:$0xff]
    %v1355 = vld [vmem:[%s0 + $0x40] sm:$0xff]
    %v1356 = vld [vmem:[%s0 + $0x48] sm:$0xff]
    %v1357 = vld [vmem:[%s0 + $0x50] sm:$0xff]
    %v1358 = vld [vmem:[%s0 + $0x58] sm:$0xff]
    %v1359 = vld [vmem:[%s0 + $0x60] sm:$0xff]
    %v1360 = vld [vmem:[%s0 + $0x68] sm:$0xff]
    %v1361 = vld [vmem:[%s0 + $0x70] sm:$0xff]
    %v1362 = vld [vmem:[%s0 + $0x78] sm:$0xff]
    %v1363 = vld [vmem:[%s0 + $0x80] sm:$0xff]
    %v1364 = vld [vmem:[%s0 + $0x88] sm:$0xff]
    %v1365 = vld [vmem:[%s0 + $0x90] sm:$0xff]
    %v1366 = vld [vmem:[%s0 + $0x98] sm:$0xff]
    %v1367 = vld [vmem:[%s0 + $0xa0] sm:$0xff]
    %v1368 = vld [vmem:[%s0 + $0xa8] sm:$0xff]
    %v1369 = vld [vmem:[%s0 + $0xb0] sm:$0xff]
    %v1370 = vld [vmem:[%s0 + $0xb8] sm:$0xff]
    %v1371 = vld [vmem:[%s0 + $0xc0] sm:$0xff]
    %v1372 = vld [vmem:[%s0 + $0xc8] sm:$0xff]
    %v1373 = vld [vmem:[%s0 + $0xd0] sm:$0xff]
    %v1374 = vld [vmem:[%s0 + $0xd8] sm:$0xff]
    %s1375 = scalar_lea.vmem [#allocation2], 256
    %v1376 = vld [vmem:[%s1375] sm:$0xff]
    %v1377 = vld [vmem:[%s1375 + $0x8] sm:$0xff]
    %v1378 = vld [vmem:[%s1375 + $0x10] sm:$0xff]
    %v1379 = vld [vmem:[%s1375 + $0x18] sm:$0xff]
    %v1380 = vld [vmem:[%s1375 + $0x20] sm:$0xff]
    %v1381 = vld [vmem:[%s1375 + $0x28] sm:$0xff]
    %v1382 = vld [vmem:[%s1375 + $0x30] sm:$0xf]
    %v1383 = vld [vmem:[%s1375 + $0x38] sm:$0xf]
    %v1385 = vsel %vm108, %v1351, 0
    %v1388 = vsel %vm108, %v1352, 0
    %v1391 = vsel %vm108, %v1353, 0
    %v1394 = vsel %vm108, %v1354, 0
    %v1397 = vsel %vm108, %v1355, 0
    %v1400 = vsel %vm108, %v1356, 0
    %v1403 = vsel %vm108, %v1357, 0
    %v1406 = vsel %vm108, %v1358, 0
    %v1409 = vsel %vm108, %v1359, 0
    %v1412 = vsel %vm108, %v1360, 0
    %v1415 = vsel %vm108, %v1361, 0
    %v1418 = vsel %vm108, %v1362, 0
    %v1421 = vsel %vm108, %v1363, 0
    %v1424 = vsel %vm108, %v1364, 0
    %v1427 = vsel %vm108, %v1365, 0
    %v1430 = vsel %vm108, %v1366, 0
    %v1433 = vsel %vm108, %v1367, 0
    %v1436 = vsel %vm108, %v1368, 0
    %v1439 = vsel %vm108, %v1369, 0
    %v1442 = vsel %vm108, %v1370, 0
    %v1445 = vsel %vm108, %v1371, 0
    %v1448 = vsel %vm108, %v1372, 0
    %v1451 = vsel %vm108, %v1373, 0
    %v1454 = vsel %vm108, %v1374, 0
    %v1457 = vsel %vm181, %v1382, 0
    %v1460 = vsel %vm181, %v1383, 0
    %1462 = vmatprep.subr.mxu0 %v1377
    %1463 = vmatpush1.msra.mxu0 %v1376
    %1464 = vmatprep.subr.mxu0 %v1379
    %1465 = vmatpush1.msra.mxu0 %v1378
    %1466 = vmatprep.subr.mxu0 %v1381
    %1467 = vmatpush1.msra.mxu0 %v1380
    %1468 = vmatprep.subr.mxu0 %v1460
    %1469 = vmatpush1.msra.mxu0 %v1457
    %1470 = vmatprep.subr.mxu0 0.0
    %1471 = vmatpush1.msra.mxu0 0.0
    %1472 = vmatprep.subr.mxu0 0.0
    %1473 = vmatpush1.msra.mxu0 0.0
    %1474 = vmatprep.subr.mxu0 0.0
    %1475 = vmatpush1.msra.mxu0 0.0
    %1476 = vmatprep.subr.mxu0 0.0
    %1477 = vmatpush1.msra.mxu0 0.0
    %1478 = vmatprep.subr.mxu0 0.0
    %1479 = vmatpush1.msra.mxu0 0.0
    %1480 = vmatprep.subr.mxu0 0.0
    %1481 = vmatpush1.msra.mxu0 0.0
    %1482 = vmatprep.subr.mxu0 0.0
    %1483 = vmatpush1.msra.mxu0 0.0
    %1484 = vmatprep.subr.mxu0 0.0
    %1485 = vmatpush1.msra.mxu0 0.0
    %1486 = vmatprep.subr.mxu0 0.0
    %1487 = vmatpush1.msra.mxu0 0.0
    %1488 = vmatprep.subr.mxu0 0.0
    %1489 = vmatpush1.msra.mxu0 0.0
    %1490 = vmatprep.subr.mxu0 0.0
    %1491 = vmatpush1.msra.mxu0 0.0
    %1492 = vmatprep.subr.mxu0 0.0
    %1493 = vmatpush1.msra.mxu0 0.0
    %1494 = vmatprep.subr.mxu0 0.0
    %1495 = vmatpush1.msra.mxu0 0.0
    %1496 = vmatprep.subr.mxu0 0.0
    %1497 = vmatpush1.msra.mxu0 0.0
    %1498 = vmatprep.subr.mxu0 0.0
    %1499 = vmatpush1.msra.mxu0 0.0
    %1500 = vmatprep.subr.mxu0 0.0
    %1501 = vmatpush1.msra.mxu0 0.0
    %1502 = vmatprep.subr.mxu0 0.0
    %1503 = vmatpush1.msra.mxu0 0.0
    %1504 = vmatprep.subr.mxu0 0.0
    %1505 = vmatpush1.msra.mxu0 0.0
    %1506 = vmatprep.subr.mxu0 0.0
    %1507 = vmatpush1.msra.mxu0 0.0
    %1508 = vmatprep.subr.mxu0 0.0
    %1509 = vmatpush1.msra.mxu0 0.0
    %1510 = vmatprep.subr.mxu0 0.0
    %1511 = vmatpush1.msra.mxu0 0.0
    %1512 = vmatprep.subr.mxu0 0.0
    %1513 = vmatpush1.msra.mxu0 0.0
    %1514 = vmatprep.subr.mxu0 0.0
    %1515 = vmatpush1.msra.mxu0 0.0
    %1516 = vmatprep.subr.mxu0 0.0
    %1517 = vmatpush1.msra.mxu0 0.0
    %1518 = vmatprep.subr.mxu0 0.0
    %1519 = vmatpush1.msra.mxu0 0.0
    %1520 = vmatprep.subr.mxu0 0.0
    %1521 = vmatpush1.msra.mxu0 0.0
    %1522 = vmatprep.subr.mxu0 0.0
    %1523 = vmatpush1.msra.mxu0 0.0
    %1524 = vmatprep.subr.mxu0 0.0
    %1525 = vmatpush1.msra.mxu0 0.0
    %1526 = vmatprep.mubr.f32.mxu0 0.0
    %1527 = vmatmul.mubr.f32.gmra.mrb[0].mxu0 %v1385
    %v1528 = vpop.f32.mrb[0].mxu0
    %v1529 = vadd.f32 0.0, %v1528
    %v1530 = vpop.f32.mrb[0].mxu0
    %v1531 = vadd.f32 0.0, %v1530
    %1532 = vmatprep.mubr.f32.mxu0 0.0
    %1533 = vmatmul.mubr.f32.gmra.mrb[0].mxu0 %v1388
    %v1534 = vpop.f32.mrb[0].mxu0
    %v1535 = vadd.f32 0.0, %v1534
    %v1536 = vpop.f32.mrb[0].mxu0
    %v1537 = vadd.f32 0.0, %v1536
    %1538 = vmatprep.mubr.f32.mxu0 0.0
    %1539 = vmatmul.mubr.f32.gmra.mrb[0].mxu0 %v1391
    %v1540 = vpop.f32.mrb[0].mxu0
    %v1541 = vadd.f32 0.0, %v1540
    %v1542 = vpop.f32.mrb[0].mxu0
    %v1543 = vadd.f32 0.0, %v1542
    %1544 = vmatprep.mubr.f32.mxu0 0.0
    %1545 = vmatmul.mubr.f32.gmra.mrb[0].mxu0 %v1394
    %v1546 = vpop.f32.mrb[0].mxu0
    %v1547 = vadd.f32 0.0, %v1546
    %v1548 = vpop.f32.mrb[0].mxu0
    %v1549 = vadd.f32 0.0, %v1548
    %1550 = vmatprep.mubr.f32.mxu0 0.0
    %1551 = vmatmul.mubr.f32.gmra.mrb[0].mxu0 %v1397
    %v1552 = vpop.f32.mrb[0].mxu0
    %v1553 = vadd.f32 0.0, %v1552
    %v1554 = vpop.f32.mrb[0].mxu0
    %v1555 = vadd.f32 0.0, %v1554
    %1556 = vmatprep.mubr.f32.mxu0 0.0
    %1557 = vmatmul.mubr.f32.gmra.mrb[0].mxu0 %v1400
    %v1558 = vpop.f32.mrb[0].mxu0
    %v1559 = vadd.f32 0.0, %v1558
    %v1560 = vpop.f32.mrb[0].mxu0
    %v1561 = vadd.f32 0.0, %v1560
    %1562 = vmatprep.mubr.f32.mxu0 0.0
    %1563 = vmatmul.mubr.f32.gmra.mrb[0].mxu0 %v1403
    %v1564 = vpop.f32.mrb[0].mxu0
    %v1565 = vadd.f32 0.0, %v1564
    %v1566 = vpop.f32.mrb[0].mxu0
    %v1567 = vadd.f32 0.0, %v1566
    %1568 = vmatprep.mubr.f32.mxu0 0.0
    %1569 = vmatmul.mubr.f32.gmra.mrb[0].mxu0 %v1406
    %v1570 = vpop.f32.mrb[0].mxu0
    %v1571 = vadd.f32 0.0, %v1570
    %v1572 = vpop.f32.mrb[0].mxu0
    %v1573 = vadd.f32 0.0, %v1572
    %1574 = vmatprep.mubr.f32.mxu0 0.0
    %1575 = vmatmul.mubr.f32.gmra.mrb[0].mxu0 %v1409
    %v1576 = vpop.f32.mrb[0].mxu0
    %v1577 = vadd.f32 0.0, %v1576
    %v1578 = vpop.f32.mrb[0].mxu0
    %v1579 = vadd.f32 0.0, %v1578
    %1580 = vmatprep.mubr.f32.mxu0 0.0
    %1581 = vmatmul.mubr.f32.gmra.mrb[0].mxu0 %v1412
    %v1582 = vpop.f32.mrb[0].mxu0
    %v1583 = vadd.f32 0.0, %v1582
    %v1584 = vpop.f32.mrb[0].mxu0
    %v1585 = vadd.f32 0.0, %v1584
    %1586 = vmatprep.mubr.f32.mxu0 0.0
    %1587 = vmatmul.mubr.f32.gmra.mrb[0].mxu0 %v1415
    %v1588 = vpop.f32.mrb[0].mxu0
    %v1589 = vadd.f32 0.0, %v1588
    %v1590 = vpop.f32.mrb[0].mxu0
    %v1591 = vadd.f32 0.0, %v1590
    %1592 = vmatprep.mubr.f32.mxu0 0.0
    %1593 = vmatmul.mubr.f32.gmra.mrb[0].mxu0 %v1418
    %v1594 = vpop.f32.mrb[0].mxu0
    %v1595 = vadd.f32 0.0, %v1594
    %v1596 = vpop.f32.mrb[0].mxu0
    %v1597 = vadd.f32 0.0, %v1596
    %1598 = vmatprep.mubr.f32.mxu0 0.0
    %1599 = vmatmul.mubr.f32.gmra.mrb[0].mxu0 %v1421
    %v1600 = vpop.f32.mrb[0].mxu0
    %v1601 = vadd.f32 0.0, %v1600
    %v1602 = vpop.f32.mrb[0].mxu0
    %v1603 = vadd.f32 0.0, %v1602
    %1604 = vmatprep.mubr.f32.mxu0 0.0
    %1605 = vmatmul.mubr.f32.gmra.mrb[0].mxu0 %v1424
    %v1606 = vpop.f32.mrb[0].mxu0
    %v1607 = vadd.f32 0.0, %v1606
    %v1608 = vpop.f32.mrb[0].mxu0
    %v1609 = vadd.f32 0.0, %v1608
    %1610 = vmatprep.mubr.f32.mxu0 0.0
    %1611 = vmatmul.mubr.f32.gmra.mrb[0].mxu0 %v1427
    %v1612 = vpop.f32.mrb[0].mxu0
    %v1613 = vadd.f32 0.0, %v1612
    %v1614 = vpop.f32.mrb[0].mxu0
    %v1615 = vadd.f32 0.0, %v1614
    %1616 = vmatprep.mubr.f32.mxu0 0.0
    %1617 = vmatmul.mubr.f32.gmra.mrb[0].mxu0 %v1430
    %v1618 = vpop.f32.mrb[0].mxu0
    %v1619 = vadd.f32 0.0, %v1618
    %v1620 = vpop.f32.mrb[0].mxu0
    %v1621 = vadd.f32 0.0, %v1620
    %1622 = vmatprep.mubr.f32.mxu0 0.0
    %1623 = vmatmul.mubr.f32.gmra.mrb[0].mxu0 %v1433
    %v1624 = vpop.f32.mrb[0].mxu0
    %v1625 = vadd.f32 0.0, %v1624
    %v1626 = vpop.f32.mrb[0].mxu0
    %v1627 = vadd.f32 0.0, %v1626
    %1628 = vmatprep.mubr.f32.mxu0 0.0
    %1629 = vmatmul.mubr.f32.gmra.mrb[0].mxu0 %v1436
    %v1630 = vpop.f32.mrb[0].mxu0
    %v1631 = vadd.f32 0.0, %v1630
    %v1632 = vpop.f32.mrb[0].mxu0
    %v1633 = vadd.f32 0.0, %v1632
    %1634 = vmatprep.mubr.f32.mxu0 0.0
    %1635 = vmatmul.mubr.f32.gmra.mrb[0].mxu0 %v1439
    %v1636 = vpop.f32.mrb[0].mxu0
    %v1637 = vadd.f32 0.0, %v1636
    %v1638 = vpop.f32.mrb[0].mxu0
    %v1639 = vadd.f32 0.0, %v1638
    %1640 = vmatprep.mubr.f32.mxu0 0.0
    %1641 = vmatmul.mubr.f32.gmra.mrb[0].mxu0 %v1442
    %v1642 = vpop.f32.mrb[0].mxu0
    %v1643 = vadd.f32 0.0, %v1642
    %v1644 = vpop.f32.mrb[0].mxu0
    %v1645 = vadd.f32 0.0, %v1644
    %1646 = vmatprep.mubr.f32.mxu0 0.0
    %1647 = vmatmul.mubr.f32.gmra.mrb[0].mxu0 %v1445
    %v1648 = vpop.f32.mrb[0].mxu0
    %v1649 = vadd.f32 0.0, %v1648
    %v1650 = vpop.f32.mrb[0].mxu0
    %v1651 = vadd.f32 0.0, %v1650
    %1652 = vmatprep.mubr.f32.mxu0 0.0
    %1653 = vmatmul.mubr.f32.gmra.mrb[0].mxu0 %v1448
    %v1654 = vpop.f32.mrb[0].mxu0
    %v1655 = vadd.f32 0.0, %v1654
    %v1656 = vpop.f32.mrb[0].mxu0
    %v1657 = vadd.f32 0.0, %v1656
    %1658 = vmatprep.mubr.f32.mxu0 0.0
    %1659 = vmatmul.mubr.f32.gmra.mrb[0].mxu0 %v1451
    %v1660 = vpop.f32.mrb[0].mxu0
    %v1661 = vadd.f32 0.0, %v1660
    %v1662 = vpop.f32.mrb[0].mxu0
    %v1663 = vadd.f32 0.0, %v1662
    %1664 = vmatprep.mubr.f32.mxu0 0.0
    %1665 = vmatmul.mubr.f32.gmra.mrb[0].mxu0 %v1454
    %v1666 = vpop.f32.mrb[0].mxu0
    %v1667 = vadd.f32 0.0, %v1666
    %v1668 = vpop.f32.mrb[0].mxu0
    %v1669 = vadd.f32 0.0, %v1668
    %1670 = vdwg.mxu0
    %v1671 = vadd.f32 %v1303, %v1529
    %v1672 = vadd.f32 %v1304, %v1531
    %v1673 = vadd.f32 %v1305, %v1535
    %v1674 = vadd.f32 %v1306, %v1537
    %v1675 = vadd.f32 %v1307, %v1541
    %v1676 = vadd.f32 %v1308, %v1543
    %v1677 = vadd.f32 %v1309, %v1547
    %v1678 = vadd.f32 %v1310, %v1549
    %v1679 = vadd.f32 %v1311, %v1553
    %v1680 = vadd.f32 %v1312, %v1555
    %v1681 = vadd.f32 %v1313, %v1559
    %v1682 = vadd.f32 %v1314, %v1561
    %v1683 = vadd.f32 %v1315, %v1565
    %v1684 = vadd.f32 %v1316, %v1567
    %v1685 = vadd.f32 %v1317, %v1571
    %v1686 = vadd.f32 %v1318, %v1573
    %v1687 = vadd.f32 %v1319, %v1577
    %v1688 = vadd.f32 %v1320, %v1579
    %v1689 = vadd.f32 %v1321, %v1583
    %v1690 = vadd.f32 %v1322, %v1585
    %v1691 = vadd.f32 %v1323, %v1589
    %v1692 = vadd.f32 %v1324, %v1591
    %v1693 = vadd.f32 %v1325, %v1595
    %v1694 = vadd.f32 %v1326, %v1597
    %v1695 = vadd.f32 %v1327, %v1601
    %v1696 = vadd.f32 %v1328, %v1603
    %v1697 = vadd.f32 %v1329, %v1607
    %v1698 = vadd.f32 %v1330, %v1609
    %v1699 = vadd.f32 %v1331, %v1613
    %v1700 = vadd.f32 %v1332, %v1615
    %v1701 = vadd.f32 %v1333, %v1619
    %v1702 = vadd.f32 %v1334, %v1621
    %v1703 = vadd.f32 %v1335, %v1625
    %v1704 = vadd.f32 %v1336, %v1627
    %v1705 = vadd.f32 %v1337, %v1631
    %v1706 = vadd.f32 %v1338, %v1633
    %v1707 = vadd.f32 %v1339, %v1637
    %v1708 = vadd.f32 %v1340, %v1639
    %v1709 = vadd.f32 %v1341, %v1643
    %v1710 = vadd.f32 %v1342, %v1645
    %v1711 = vadd.f32 %v1343, %v1649
    %v1712 = vadd.f32 %v1344, %v1651
    %v1713 = vadd.f32 %v1345, %v1655
    %v1714 = vadd.f32 %v1346, %v1657
    %v1715 = vadd.f32 %v1347, %v1661
    %v1716 = vadd.f32 %v1348, %v1663
    %v1717 = vadd.f32 %v1349, %v1667
    %v1718 = vadd.f32 %v1350, %v1669
    %v1719 = vmax.f32 %v1671, %v1673
    %v1720 = vmax.f32 %v1672, %v1674
    %v1721 = vmax.f32 %v1675, %v1677
    %v1722 = vmax.f32 %v1676, %v1678
    %v1723 = vmax.f32 %v1679, %v1681
    %v1724 = vmax.f32 %v1680, %v1682
    %v1725 = vmax.f32 %v1683, %v1685
    %v1726 = vmax.f32 %v1684, %v1686
    %v1727 = vmax.f32 %v1687, %v1689
    %v1728 = vmax.f32 %v1688, %v1690
    %v1729 = vmax.f32 %v1691, %v1693
    %v1730 = vmax.f32 %v1692, %v1694
    %v1731 = vmax.f32 %v1695, %v1697
    %v1732 = vmax.f32 %v1696, %v1698
    %v1733 = vmax.f32 %v1699, %v1701
    %v1734 = vmax.f32 %v1700, %v1702
    %v1735 = vmax.f32 %v1703, %v1705
    %v1736 = vmax.f32 %v1704, %v1706
    %v1737 = vmax.f32 %v1707, %v1709
    %v1738 = vmax.f32 %v1708, %v1710
    %v1739 = vmax.f32 %v1711, %v1713
    %v1740 = vmax.f32 %v1712, %v1714
    %v1741 = vmax.f32 %v1715, %v1717
    %v1742 = vmax.f32 %v1716, %v1718
    %1767 = vrot.lane.b32.xlu0 %v1719, 56
    %v1768 = vpop.permute.xlu0 %1767
    %1769 = vrot.lane.b32.xlu0 %v1720, 56
    %v1770 = vpop.permute.xlu0 %1769
    %1771 = vrot.lane.b32.xlu0 %v1721, 56
    %v1772 = vpop.permute.xlu0 %1771
    %1773 = vrot.lane.b32.xlu0 %v1722, 56
    %v1774 = vpop.permute.xlu0 %1773
    %1775 = vrot.lane.b32.xlu0 %v1723, 56
    %v1776 = vpop.permute.xlu0 %1775
    %1777 = vrot.lane.b32.xlu0 %v1724, 56
    %v1778 = vpop.permute.xlu0 %1777
    %1779 = vrot.lane.b32.xlu0 %v1725, 56
    %v1780 = vpop.permute.xlu0 %1779
    %1781 = vrot.lane.b32.xlu0 %v1726, 56
    %v1782 = vpop.permute.xlu0 %1781
    %1783 = vrot.lane.b32.xlu0 %v1727, 56
    %v1784 = vpop.permute.xlu0 %1783
    %1785 = vrot.lane.b32.xlu0 %v1728, 56
    %v1786 = vpop.permute.xlu0 %1785
    %1787 = vrot.lane.b32.xlu0 %v1729, 56
    %v1788 = vpop.permute.xlu0 %1787
    %1789 = vrot.lane.b32.xlu0 %v1730, 56
    %v1790 = vpop.permute.xlu0 %1789
    %1791 = vrot.lane.b32.xlu0 %v1731, 56
    %v1792 = vpop.permute.xlu0 %1791
    %1793 = vrot.lane.b32.xlu0 %v1732, 56
    %v1794 = vpop.permute.xlu0 %1793
    %1795 = vrot.lane.b32.xlu0 %v1733, 56
    %v1796 = vpop.permute.xlu0 %1795
    %1797 = vrot.lane.b32.xlu0 %v1734, 56
    %v1798 = vpop.permute.xlu0 %1797
    %1799 = vrot.lane.b32.xlu0 %v1735, 56
    %v1800 = vpop.permute.xlu0 %1799
    %1801 = vrot.lane.b32.xlu0 %v1736, 56
    %v1802 = vpop.permute.xlu0 %1801
    %1803 = vrot.lane.b32.xlu0 %v1737, 56
    %v1804 = vpop.permute.xlu0 %1803
    %1805 = vrot.lane.b32.xlu0 %v1738, 56
    %v1806 = vpop.permute.xlu0 %1805
    %1807 = vrot.lane.b32.xlu0 %v1739, 56
    %v1808 = vpop.permute.xlu0 %1807
    %1809 = vrot.lane.b32.xlu0 %v1740, 56
    %v1810 = vpop.permute.xlu0 %1809
    %1811 = vrot.lane.b32.xlu0 %v1741, 56
    %v1812 = vpop.permute.xlu0 %1811
    %1813 = vrot.lane.b32.xlu0 %v1742, 56
    %v1814 = vpop.permute.xlu0 %1813
    %vm1815 = vcmask 457728
    %v1816 = vsel %vm1815, %v1768, %v1770
    %v1817 = vsel %vm1815, %v1772, %v1774
    %v1818 = vsel %vm1815, %v1776, %v1778
    %v1819 = vsel %vm1815, %v1780, %v1782
    %v1820 = vsel %vm1815, %v1784, %v1786
    %v1821 = vsel %vm1815, %v1788, %v1790
    %v1822 = vsel %vm1815, %v1792, %v1794
    %v1823 = vsel %vm1815, %v1796, %v1798
    %v1824 = vsel %vm1815, %v1800, %v1802
    %v1825 = vsel %vm1815, %v1804, %v1806
    %v1826 = vsel %vm1815, %v1808, %v1810
    %v1827 = vsel %vm1815, %v1812, %v1814
    %v1840 = vmax.f32 %v1719, %v1816
    %v1841 = vmax.f32 %v1721, %v1817
    %v1842 = vmax.f32 %v1723, %v1818
    %v1843 = vmax.f32 %v1725, %v1819
    %v1844 = vmax.f32 %v1727, %v1820
    %v1845 = vmax.f32 %v1729, %v1821
    %v1846 = vmax.f32 %v1731, %v1822
    %v1847 = vmax.f32 %v1733, %v1823
    %v1848 = vmax.f32 %v1735, %v1824
    %v1849 = vmax.f32 %v1737, %v1825
    %v1850 = vmax.f32 %v1739, %v1826
    %v1851 = vmax.f32 %v1741, %v1827
    %v1852 = vld [vmem:[%s2] sm:$0x1]
    %v1854 = vlaneseq
    %v1855 = vshrl.u32 %v1854, 7
    %v1856 = vsub.s32 0, %v1855
    %v1857 = vrot.slane %v1852, %v1856
    %v1859 = vadd.f32 %v1840, %v1857
    %v1860 = vadd.f32 %v1841, %v1857
    %v1861 = vadd.f32 %v1842, %v1857
    %v1862 = vadd.f32 %v1843, %v1857
    %v1863 = vadd.f32 %v1844, %v1857
    %v1864 = vadd.f32 %v1845, %v1857
    %v1865 = vadd.f32 %v1846, %v1857
    %v1866 = vadd.f32 %v1847, %v1857
    %v1867 = vadd.f32 %v1848, %v1857
    %v1868 = vadd.f32 %v1849, %v1857
    %v1869 = vadd.f32 %v1850, %v1857
    %v1870 = vadd.f32 %v1851, %v1857
    %v1871 = vmax.f32 %v1859, 0.0
    %v1872 = vmax.f32 %v1860, 0.0
    %v1873 = vmax.f32 %v1861, 0.0
    %v1874 = vmax.f32 %v1862, 0.0
    %v1875 = vmax.f32 %v1863, 0.0
    %v1876 = vmax.f32 %v1864, 0.0
    %v1877 = vmax.f32 %v1865, 0.0
    %v1878 = vmax.f32 %v1866, 0.0
    %v1879 = vmax.f32 %v1867, 0.0
    %v1880 = vmax.f32 %v1868, 0.0
    %v1881 = vmax.f32 %v1869, 0.0
    %v1882 = vmax.f32 %v1870, 0.0
    %v1883 = vld [vmem:[%s3] sm:$0xff]
    %v1884 = vld [vmem:[%s3 + $0x8] sm:$0xff]
    %v1885 = vld [vmem:[%s3 + $0x10] sm:$0xff]
    %v1886 = vld [vmem:[%s3 + $0x18] sm:$0xff]
    %v1887 = vld [vmem:[%s3 + $0x20] sm:$0xff]
    %v1888 = vld [vmem:[%s3 + $0x28] sm:$0xff]
    %v1889 = vld [vmem:[%s3 + $0x30] sm:$0xff]
    %v1890 = vld [vmem:[%s3 + $0x38] sm:$0xff]
    %v1891 = vld [vmem:[%s3 + $0x40] sm:$0xff]
    %s1892 = scalar_lea.vmem %s3, 72
    %v1893 = vld [vmem:[%s1892] sm:$0xff]
    %v1894 = vld [vmem:[%s1892 + $0x8] sm:$0xff]
    %v1895 = vld [vmem:[%s1892 + $0x10] sm:$0xff]
    %v1896 = vld [vmem:[%s1892 + $0x18] sm:$0xff]
    %v1897 = vld [vmem:[%s1892 + $0x20] sm:$0xff]
    %v1898 = vld [vmem:[%s1892 + $0x28] sm:$0xff]
    %v1899 = vld [vmem:[%s1892 + $0x30] sm:$0xff]
    %v1900 = vld [vmem:[%s1892 + $0x38] sm:$0xff]
    %v1901 = vld [vmem:[%s1892 + $0x40] sm:$0xff]
    %vm1902 = vcmask 588800
    %v1904 = vsel %vm1902, %v1872, 0
    %v1907 = vsel %vm1902, %v1873, 0
    %v1910 = vsel %vm1902, %v1874, 0
    %v1913 = vsel %vm1902, %v1875, 0
    %v1916 = vsel %vm1902, %v1876, 0
    %v1919 = vsel %vm1902, %v1877, 0
    %v1922 = vsel %vm1902, %v1878, 0
    %v1925 = vsel %vm1902, %v1879, 0
    %1927 = vmatprep.subr.mxu0 0.0
    %1928 = vmatpush1.msra.mxu0 %v1893
    %1929 = vmatprep.subr.mxu0 0.0
    %1930 = vmatpush1.msra.mxu0 %v1894
    %1931 = vmatprep.subr.mxu0 0.0
    %1932 = vmatpush1.msra.mxu0 %v1895
    %1933 = vmatprep.subr.mxu0 0.0
    %1934 = vmatpush1.msra.mxu0 %v1896
    %1935 = vmatprep.subr.mxu0 0.0
    %1936 = vmatpush1.msra.mxu0 %v1897
    %1937 = vmatprep.subr.mxu0 0.0
    %1938 = vmatpush1.msra.mxu0 %v1898
    %1939 = vmatprep.subr.mxu0 0.0
    %1940 = vmatpush1.msra.mxu0 %v1899
    %1941 = vmatprep.subr.mxu0 0.0
    %1942 = vmatpush1.msra.mxu0 %v1900
    %1943 = vmatprep.subr.mxu0 0.0
    %1944 = vmatpush1.msra.mxu0 %v1901
    %1945 = vmatprep.subr.mxu0 0.0
    %1946 = vmatpush1.msra.mxu0 0.0
    %1947 = vmatprep.subr.mxu0 0.0
    %1948 = vmatpush1.msra.mxu0 0.0
    %1949 = vmatprep.subr.mxu0 0.0
    %1950 = vmatpush1.msra.mxu0 0.0
    %1951 = vmatprep.subr.mxu0 0.0
    %1952 = vmatpush1.msra.mxu0 0.0
    %1953 = vmatprep.subr.mxu0 0.0
    %1954 = vmatpush1.msra.mxu0 0.0
    %1955 = vmatprep.subr.mxu0 0.0
    %1956 = vmatpush1.msra.mxu0 0.0
    %1957 = vmatprep.subr.mxu0 0.0
    %1958 = vmatpush1.msra.mxu0 0.0
    %1959 = vmatprep.subr.mxu0 0.0
    %1960 = vmatpush1.msra.mxu0 0.0
    %1961 = vmatprep.subr.mxu0 0.0
    %1962 = vmatpush1.msra.mxu0 0.0
    %1963 = vmatprep.subr.mxu0 0.0
    %1964 = vmatpush1.msra.mxu0 0.0
    %1965 = vmatprep.subr.mxu0 0.0
    %1966 = vmatpush1.msra.mxu0 0.0
    %1967 = vmatprep.subr.mxu0 0.0
    %1968 = vmatpush1.msra.mxu0 0.0
    %1969 = vmatprep.subr.mxu0 0.0
    %1970 = vmatpush1.msra.mxu0 0.0
    %1971 = vmatprep.subr.mxu0 0.0
    %1972 = vmatpush1.msra.mxu0 0.0
    %1973 = vmatprep.subr.mxu0 0.0
    %1974 = vmatpush1.msra.mxu0 0.0
    %1975 = vmatprep.subr.mxu0 0.0
    %1976 = vmatpush1.msra.mxu0 0.0
    %1977 = vmatprep.subr.mxu0 0.0
    %1978 = vmatpush1.msra.mxu0 0.0
    %1979 = vmatprep.subr.mxu0 0.0
    %1980 = vmatpush1.msra.mxu0 0.0
    %1981 = vmatprep.subr.mxu0 0.0
    %1982 = vmatpush1.msra.mxu0 0.0
    %1983 = vmatprep.subr.mxu0 0.0
    %1984 = vmatpush1.msra.mxu0 0.0
    %1985 = vmatprep.subr.mxu0 0.0
    %1986 = vmatpush1.msra.mxu0 0.0
    %1987 = vmatprep.subr.mxu0 0.0
    %1988 = vmatpush1.msra.mxu0 0.0
    %1989 = vmatprep.subr.mxu0 0.0
    %1990 = vmatpush1.msra.mxu0 0.0
    %1991 = vmatprep.mubr.f32.mxu0 0.0
    %1992 = vmatmul.mubr.f32.gmra.mrb[0].mxu0 %v1904
    %v1993 = vpop.f32.mrb[0].mxu0
    %v1994 = vadd.f32 0.0, %v1993
    %v1995 = vpop.f32.mrb[0].mxu0
    %1996 = vmatprep.mubr.f32.mxu0 0.0
    %1997 = vmatmul.mubr.f32.gmra.mrb[0].mxu0 %v1907
    %v1998 = vpop.f32.mrb[0].mxu0
    %v1999 = vadd.f32 0.0, %v1998
    %v2000 = vpop.f32.mrb[0].mxu0
    %2001 = vmatprep.mubr.f32.mxu0 0.0
    %2002 = vmatmul.mubr.f32.gmra.mrb[0].mxu0 %v1910
    %v2003 = vpop.f32.mrb[0].mxu0
    %v2004 = vadd.f32 0.0, %v2003
    %v2005 = vpop.f32.mrb[0].mxu0
    %2006 = vmatprep.mubr.f32.mxu0 0.0
    %2007 = vmatmul.mubr.f32.gmra.mrb[0].mxu0 %v1913
    %v2008 = vpop.f32.mrb[0].mxu0
    %v2009 = vadd.f32 0.0, %v2008
    %v2010 = vpop.f32.mrb[0].mxu0
    %2011 = vmatprep.mubr.f32.mxu0 0.0
    %2012 = vmatmul.mubr.f32.gmra.mrb[0].mxu0 %v1916
    %v2013 = vpop.f32.mrb[0].mxu0
    %v2014 = vadd.f32 0.0, %v2013
    %v2015 = vpop.f32.mrb[0].mxu0
    %2016 = vmatprep.mubr.f32.mxu0 0.0
    %2017 = vmatmul.mubr.f32.gmra.mrb[0].mxu0 %v1919
    %v2018 = vpop.f32.mrb[0].mxu0
    %v2019 = vadd.f32 0.0, %v2018
    %v2020 = vpop.f32.mrb[0].mxu0
    %2021 = vmatprep.mubr.f32.mxu0 0.0
    %2022 = vmatmul.mubr.f32.gmra.mrb[0].mxu0 %v1922
    %v2023 = vpop.f32.mrb[0].mxu0
    %v2024 = vadd.f32 0.0, %v2023
    %v2025 = vpop.f32.mrb[0].mxu0
    %2026 = vmatprep.mubr.f32.mxu0 0.0
    %2027 = vmatmul.mubr.f32.gmra.mrb[0].mxu0 %v1925
    %v2028 = vpop.f32.mrb[0].mxu0
    %v2029 = vadd.f32 0.0, %v2028
    %v2030 = vpop.f32.mrb[0].mxu0
    %2031 = vdwg.mxu0
    %v2033 = vsel %vm1902, %v1871, 0
    %2035 = vmatprep.subr.mxu0 0.0
    %2036 = vmatpush1.msra.mxu0 %v1883
    %2037 = vmatprep.subr.mxu0 0.0
    %2038 = vmatpush1.msra.mxu0 %v1884
    %2039 = vmatprep.subr.mxu0 0.0
    %2040 = vmatpush1.msra.mxu0 %v1885
    %2041 = vmatprep.subr.mxu0 0.0
    %2042 = vmatpush1.msra.mxu0 %v1886
    %2043 = vmatprep.subr.mxu0 0.0
    %2044 = vmatpush1.msra.mxu0 %v1887
    %2045 = vmatprep.subr.mxu0 0.0
    %2046 = vmatpush1.msra.mxu0 %v1888
    %2047 = vmatprep.subr.mxu0 0.0
    %2048 = vmatpush1.msra.mxu0 %v1889
    %2049 = vmatprep.subr.mxu0 0.0
    %2050 = vmatpush1.msra.mxu0 %v1890
    %2051 = vmatprep.subr.mxu0 0.0
    %2052 = vmatpush1.msra.mxu0 %v1891
    %2053 = vmatprep.subr.mxu0 0.0
    %2054 = vmatpush1.msra.mxu0 0.0
    %2055 = vmatprep.subr.mxu0 0.0
    %2056 = vmatpush1.msra.mxu0 0.0
    %2057 = vmatprep.subr.mxu0 0.0
    %2058 = vmatpush1.msra.mxu0 0.0
    %2059 = vmatprep.subr.mxu0 0.0
    %2060 = vmatpush1.msra.mxu0 0.0
    %2061 = vmatprep.subr.mxu0 0.0
    %2062 = vmatpush1.msra.mxu0 0.0
    %2063 = vmatprep.subr.mxu0 0.0
    %2064 = vmatpush1.msra.mxu0 0.0
    %2065 = vmatprep.subr.mxu0 0.0
    %2066 = vmatpush1.msra.mxu0 0.0
    %2067 = vmatprep.subr.mxu0 0.0
    %2068 = vmatpush1.msra.mxu0 0.0
    %2069 = vmatprep.subr.mxu0 0.0
    %2070 = vmatpush1.msra.mxu0 0.0
    %2071 = vmatprep.subr.mxu0 0.0
    %2072 = vmatpush1.msra.mxu0 0.0
    %2073 = vmatprep.subr.mxu0 0.0
    %2074 = vmatpush1.msra.mxu0 0.0
    %2075 = vmatprep.subr.mxu0 0.0
    %2076 = vmatpush1.msra.mxu0 0.0
    %2077 = vmatprep.subr.mxu0 0.0
    %2078 = vmatpush1.msra.mxu0 0.0
    %2079 = vmatprep.subr.mxu0 0.0
    %2080 = vmatpush1.msra.mxu0 0.0
    %2081 = vmatprep.subr.mxu0 0.0
    %2082 = vmatpush1.msra.mxu0 0.0
    %2083 = vmatprep.subr.mxu0 0.0
    %2084 = vmatpush1.msra.mxu0 0.0
    %2085 = vmatprep.subr.mxu0 0.0
    %2086 = vmatpush1.msra.mxu0 0.0
    %2087 = vmatprep.subr.mxu0 0.0
    %2088 = vmatpush1.msra.mxu0 0.0
    %2089 = vmatprep.subr.mxu0 0.0
    %2090 = vmatpush1.msra.mxu0 0.0
    %2091 = vmatprep.subr.mxu0 0.0
    %2092 = vmatpush1.msra.mxu0 0.0
    %2093 = vmatprep.subr.mxu0 0.0
    %2094 = vmatpush1.msra.mxu0 0.0
    %2095 = vmatprep.subr.mxu0 0.0
    %2096 = vmatpush1.msra.mxu0 0.0
    %2097 = vmatprep.subr.mxu0 0.0
    %2098 = vmatpush1.msra.mxu0 0.0
    %2099 = vmatprep.mubr.f32.mxu0 0.0
    %2100 = vmatmul.mubr.f32.gmra.mrb[0].mxu0 %v2033
    %v2101 = vpop.f32.mrb[0].mxu0
    %v2102 = vadd.f32 %v1994, %v2101
    %v2103 = vpop.f32.mrb[0].mxu0
    %2104 = vmatprep.mubr.f32.mxu0 0.0
    %2105 = vmatmul.mubr.f32.gmra.mrb[0].mxu0 %v1904
    %v2106 = vpop.f32.mrb[0].mxu0
    %v2107 = vadd.f32 %v1999, %v2106
    %v2108 = vpop.f32.mrb[0].mxu0
    %2109 = vmatprep.mubr.f32.mxu0 0.0
    %2110 = vmatmul.mubr.f32.gmra.mrb[0].mxu0 %v1907
    %v2111 = vpop.f32.mrb[0].mxu0
    %v2112 = vadd.f32 %v2004, %v2111
    %v2113 = vpop.f32.mrb[0].mxu0
    %2114 = vmatprep.mubr.f32.mxu0 0.0
    %2115 = vmatmul.mubr.f32.gmra.mrb[0].mxu0 %v1910
    %v2116 = vpop.f32.mrb[0].mxu0
    %v2117 = vadd.f32 %v2009, %v2116
    %v2118 = vpop.f32.mrb[0].mxu0
    %2119 = vmatprep.mubr.f32.mxu0 0.0
    %2120 = vmatmul.mubr.f32.gmra.mrb[0].mxu0 %v1913
    %v2121 = vpop.f32.mrb[0].mxu0
    %v2122 = vadd.f32 %v2014, %v2121
    %v2123 = vpop.f32.mrb[0].mxu0
    %2124 = vmatprep.mubr.f32.mxu0 0.0
    %2125 = vmatmul.mubr.f32.gmra.mrb[0].mxu0 %v1916
    %v2126 = vpop.f32.mrb[0].mxu0
    %v2127 = vadd.f32 %v2019, %v2126
    %v2128 = vpop.f32.mrb[0].mxu0
    %2129 = vmatprep.mubr.f32.mxu0 0.0
    %2130 = vmatmul.mubr.f32.gmra.mrb[0].mxu0 %v1919
    %v2131 = vpop.f32.mrb[0].mxu0
    %v2132 = vadd.f32 %v2024, %v2131
    %v2133 = vpop.f32.mrb[0].mxu0
    %2134 = vmatprep.mubr.f32.mxu0 0.0
    %2135 = vmatmul.mubr.f32.gmra.mrb[0].mxu0 %v1922
    %v2136 = vpop.f32.mrb[0].mxu0
    %v2137 = vadd.f32 %v2029, %v2136
    %v2138 = vpop.f32.mrb[0].mxu0
    %2139 = vdwg.mxu0
    %s2140 = scalar_lea.vmem %s3, 144
    %v2141 = vld [vmem:[%s2140] sm:$0xff]
    %v2142 = vld [vmem:[%s2140 + $0x8] sm:$0xff]
    %v2143 = vld [vmem:[%s2140 + $0x10] sm:$0xff]
    %v2144 = vld [vmem:[%s2140 + $0x18] sm:$0xff]
    %v2145 = vld [vmem:[%s2140 + $0x20] sm:$0xff]
    %v2146 = vld [vmem:[%s2140 + $0x28] sm:$0xff]
    %v2147 = vld [vmem:[%s2140 + $0x30] sm:$0xff]
    %v2148 = vld [vmem:[%s2140 + $0x38] sm:$0xff]
    %v2149 = vld [vmem:[%s2140 + $0x40] sm:$0xff]
    %v2151 = vsel %vm1902, %v1880, 0
    %2153 = vmatprep.subr.mxu0 0.0
    %2154 = vmatpush1.msra.mxu0 %v2141
    %2155 = vmatprep.subr.mxu0 0.0
    %2156 = vmatpush1.msra.mxu0 %v2142
    %2157 = vmatprep.subr.mxu0 0.0
    %2158 = vmatpush1.msra.mxu0 %v2143
    %2159 = vmatprep.subr.mxu0 0.0
    %2160 = vmatpush1.msra.mxu0 %v2144
    %2161 = vmatprep.subr.mxu0 0.0
    %2162 = vmatpush1.msra.mxu0 %v2145
    %2163 = vmatprep.subr.mxu0 0.0
    %2164 = vmatpush1.msra.mxu0 %v2146
    %2165 = vmatprep.subr.mxu0 0.0
    %2166 = vmatpush1.msra.mxu0 %v2147
    %2167 = vmatprep.subr.mxu0 0.0
    %2168 = vmatpush1.msra.mxu0 %v2148
    %2169 = vmatprep.subr.mxu0 0.0
    %2170 = vmatpush1.msra.mxu0 %v2149
    %2171 = vmatprep.subr.mxu0 0.0
    %2172 = vmatpush1.msra.mxu0 0.0
    %2173 = vmatprep.subr.mxu0 0.0
    %2174 = vmatpush1.msra.mxu0 0.0
    %2175 = vmatprep.subr.mxu0 0.0
    %2176 = vmatpush1.msra.mxu0 0.0
    %2177 = vmatprep.subr.mxu0 0.0
    %2178 = vmatpush1.msra.mxu0 0.0
    %2179 = vmatprep.subr.mxu0 0.0
    %2180 = vmatpush1.msra.mxu0 0.0
    %2181 = vmatprep.subr.mxu0 0.0
    %2182 = vmatpush1.msra.mxu0 0.0
    %2183 = vmatprep.subr.mxu0 0.0
    %2184 = vmatpush1.msra.mxu0 0.0
    %2185 = vmatprep.subr.mxu0 0.0
    %2186 = vmatpush1.msra.mxu0 0.0
    %2187 = vmatprep.subr.mxu0 0.0
    %2188 = vmatpush1.msra.mxu0 0.0
    %2189 = vmatprep.subr.mxu0 0.0
    %2190 = vmatpush1.msra.mxu0 0.0
    %2191 = vmatprep.subr.mxu0 0.0
    %2192 = vmatpush1.msra.mxu0 0.0
    %2193 = vmatprep.subr.mxu0 0.0
    %2194 = vmatpush1.msra.mxu0 0.0
    %2195 = vmatprep.subr.mxu0 0.0
    %2196 = vmatpush1.msra.mxu0 0.0
    %2197 = vmatprep.subr.mxu0 0.0
    %2198 = vmatpush1.msra.mxu0 0.0
    %2199 = vmatprep.subr.mxu0 0.0
    %2200 = vmatpush1.msra.mxu0 0.0
    %2201 = vmatprep.subr.mxu0 0.0
    %2202 = vmatpush1.msra.mxu0 0.0
    %2203 = vmatprep.subr.mxu0 0.0
    %2204 = vmatpush1.msra.mxu0 0.0
    %2205 = vmatprep.subr.mxu0 0.0
    %2206 = vmatpush1.msra.mxu0 0.0
    %2207 = vmatprep.subr.mxu0 0.0
    %2208 = vmatpush1.msra.mxu0 0.0
    %2209 = vmatprep.subr.mxu0 0.0
    %2210 = vmatpush1.msra.mxu0 0.0
    %2211 = vmatprep.subr.mxu0 0.0
    %2212 = vmatpush1.msra.mxu0 0.0
    %2213 = vmatprep.subr.mxu0 0.0
    %2214 = vmatpush1.msra.mxu0 0.0
    %2215 = vmatprep.subr.mxu0 0.0
    %2216 = vmatpush1.msra.mxu0 0.0
    %2217 = vmatprep.mubr.f32.mxu0 0.0
    %2218 = vmatmul.mubr.f32.gmra.mrb[0].mxu0 %v1907
    %v2219 = vpop.f32.mrb[0].mxu0
    %v2220 = vadd.f32 0.0, %v2219
    %v2221 = vpop.f32.mrb[0].mxu0
    %2222 = vmatprep.mubr.f32.mxu0 0.0
    %2223 = vmatmul.mubr.f32.gmra.mrb[0].mxu0 %v1910
    %v2224 = vpop.f32.mrb[0].mxu0
    %v2225 = vadd.f32 0.0, %v2224
    %v2226 = vpop.f32.mrb[0].mxu0
    %2227 = vmatprep.mubr.f32.mxu0 0.0
    %2228 = vmatmul.mubr.f32.gmra.mrb[0].mxu0 %v1913
    %v2229 = vpop.f32.mrb[0].mxu0
    %v2230 = vadd.f32 0.0, %v2229
    %v2231 = vpop.f32.mrb[0].mxu0
    %2232 = vmatprep.mubr.f32.mxu0 0.0
    %2233 = vmatmul.mubr.f32.gmra.mrb[0].mxu0 %v1916
    %v2234 = vpop.f32.mrb[0].mxu0
    %v2235 = vadd.f32 0.0, %v2234
    %v2236 = vpop.f32.mrb[0].mxu0
    %2237 = vmatprep.mubr.f32.mxu0 0.0
    %2238 = vmatmul.mubr.f32.gmra.mrb[0].mxu0 %v1919
    %v2239 = vpop.f32.mrb[0].mxu0
    %v2240 = vadd.f32 0.0, %v2239
    %v2241 = vpop.f32.mrb[0].mxu0
    %2242 = vmatprep.mubr.f32.mxu0 0.0
    %2243 = vmatmul.mubr.f32.gmra.mrb[0].mxu0 %v1922
    %v2244 = vpop.f32.mrb[0].mxu0
    %v2245 = vadd.f32 0.0, %v2244
    %v2246 = vpop.f32.mrb[0].mxu0
    %2247 = vmatprep.mubr.f32.mxu0 0.0
    %2248 = vmatmul.mubr.f32.gmra.mrb[0].mxu0 %v1925
    %v2249 = vpop.f32.mrb[0].mxu0
    %v2250 = vadd.f32 0.0, %v2249
    %v2251 = vpop.f32.mrb[0].mxu0
    %2252 = vmatprep.mubr.f32.mxu0 0.0
    %2253 = vmatmul.mubr.f32.gmra.mrb[0].mxu0 %v2151
    %v2254 = vpop.f32.mrb[0].mxu0
    %v2255 = vadd.f32 0.0, %v2254
    %v2256 = vpop.f32.mrb[0].mxu0
    %2257 = vdwg.mxu0
    %v2258 = vadd.f32 %v2102, %v2220
    %v2259 = vadd.f32 %v2107, %v2225
    %v2260 = vadd.f32 %v2112, %v2230
    %v2261 = vadd.f32 %v2117, %v2235
    %v2262 = vadd.f32 %v2122, %v2240
    %v2263 = vadd.f32 %v2127, %v2245
    %v2264 = vadd.f32 %v2132, %v2250
    %v2265 = vadd.f32 %v2137, %v2255
    %s2266 = scalar_lea.vmem %s3, 216
    %v2267 = vld [vmem:[%s2266] sm:$0xff]
    %v2268 = vld [vmem:[%s2266 + $0x8] sm:$0xff]
    %v2269 = vld [vmem:[%s2266 + $0x10] sm:$0xff]
    %v2270 = vld [vmem:[%s2266 + $0x18] sm:$0xff]
    %v2271 = vld [vmem:[%s2266 + $0x20] sm:$0xff]
    %v2272 = vld [vmem:[%s2266 + $0x28] sm:$0xff]
    %v2273 = vld [vmem:[%s2266 + $0x30] sm:$0xff]
    %v2274 = vld [vmem:[%s2266 + $0x38] sm:$0xff]
    %v2275 = vld [vmem:[%s2266 + $0x40] sm:$0xff]
    %v2277 = vsel %vm1902, %v1881, 0
    %2279 = vmatprep.subr.mxu0 0.0
    %2280 = vmatpush1.msra.mxu0 %v2267
    %2281 = vmatprep.subr.mxu0 0.0
    %2282 = vmatpush1.msra.mxu0 %v2268
    %2283 = vmatprep.subr.mxu0 0.0
    %2284 = vmatpush1.msra.mxu0 %v2269
    %2285 = vmatprep.subr.mxu0 0.0
    %2286 = vmatpush1.msra.mxu0 %v2270
    %2287 = vmatprep.subr.mxu0 0.0
    %2288 = vmatpush1.msra.mxu0 %v2271
    %2289 = vmatprep.subr.mxu0 0.0
    %2290 = vmatpush1.msra.mxu0 %v2272
    %2291 = vmatprep.subr.mxu0 0.0
    %2292 = vmatpush1.msra.mxu0 %v2273
    %2293 = vmatprep.subr.mxu0 0.0
    %2294 = vmatpush1.msra.mxu0 %v2274
    %2295 = vmatprep.subr.mxu0 0.0
    %2296 = vmatpush1.msra.mxu0 %v2275
    %2297 = vmatprep.subr.mxu0 0.0
    %2298 = vmatpush1.msra.mxu0 0.0
    %2299 = vmatprep.subr.mxu0 0.0
    %2300 = vmatpush1.msra.mxu0 0.0
    %2301 = vmatprep.subr.mxu0 0.0
    %2302 = vmatpush1.msra.mxu0 0.0
    %2303 = vmatprep.subr.mxu0 0.0
    %2304 = vmatpush1.msra.mxu0 0.0
    %2305 = vmatprep.subr.mxu0 0.0
    %2306 = vmatpush1.msra.mxu0 0.0
    %2307 = vmatprep.subr.mxu0 0.0
    %2308 = vmatpush1.msra.mxu0 0.0
    %2309 = vmatprep.subr.mxu0 0.0
    %2310 = vmatpush1.msra.mxu0 0.0
    %2311 = vmatprep.subr.mxu0 0.0
    %2312 = vmatpush1.msra.mxu0 0.0
    %2313 = vmatprep.subr.mxu0 0.0
    %2314 = vmatpush1.msra.mxu0 0.0
    %2315 = vmatprep.subr.mxu0 0.0
    %2316 = vmatpush1.msra.mxu0 0.0
    %2317 = vmatprep.subr.mxu0 0.0
    %2318 = vmatpush1.msra.mxu0 0.0
    %2319 = vmatprep.subr.mxu0 0.0
    %2320 = vmatpush1.msra.mxu0 0.0
    %2321 = vmatprep.subr.mxu0 0.0
    %2322 = vmatpush1.msra.mxu0 0.0
    %2323 = vmatprep.subr.mxu0 0.0
    %2324 = vmatpush1.msra.mxu0 0.0
    %2325 = vmatprep.subr.mxu0 0.0
    %2326 = vmatpush1.msra.mxu0 0.0
    %2327 = vmatprep.subr.mxu0 0.0
    %2328 = vmatpush1.msra.mxu0 0.0
    %2329 = vmatprep.subr.mxu0 0.0
    %2330 = vmatpush1.msra.mxu0 0.0
    %2331 = vmatprep.subr.mxu0 0.0
    %2332 = vmatpush1.msra.mxu0 0.0
    %2333 = vmatprep.subr.mxu0 0.0
    %2334 = vmatpush1.msra.mxu0 0.0
    %2335 = vmatprep.subr.mxu0 0.0
    %2336 = vmatpush1.msra.mxu0 0.0
    %2337 = vmatprep.subr.mxu0 0.0
    %2338 = vmatpush1.msra.mxu0 0.0
    %2339 = vmatprep.subr.mxu0 0.0
    %2340 = vmatpush1.msra.mxu0 0.0
    %2341 = vmatprep.subr.mxu0 0.0
    %2342 = vmatpush1.msra.mxu0 0.0
    %2343 = vmatprep.mubr.f32.mxu0 0.0
    %2344 = vmatmul.mubr.f32.gmra.mrb[0].mxu0 %v1910
    %v2345 = vpop.f32.mrb[0].mxu0
    %v2346 = vadd.f32 0.0, %v2345
    %v2347 = vpop.f32.mrb[0].mxu0
    %2348 = vmatprep.mubr.f32.mxu0 0.0
    %2349 = vmatmul.mubr.f32.gmra.mrb[0].mxu0 %v1913
    %v2350 = vpop.f32.mrb[0].mxu0
    %v2351 = vadd.f32 0.0, %v2350
    %v2352 = vpop.f32.mrb[0].mxu0
    %2353 = vmatprep.mubr.f32.mxu0 0.0
    %2354 = vmatmul.mubr.f32.gmra.mrb[0].mxu0 %v1916
    %v2355 = vpop.f32.mrb[0].mxu0
    %v2356 = vadd.f32 0.0, %v2355
    %v2357 = vpop.f32.mrb[0].mxu0
    %2358 = vmatprep.mubr.f32.mxu0 0.0
    %2359 = vmatmul.mubr.f32.gmra.mrb[0].mxu0 %v1919
    %v2360 = vpop.f32.mrb[0].mxu0
    %v2361 = vadd.f32 0.0, %v2360
    %v2362 = vpop.f32.mrb[0].mxu0
    %2363 = vmatprep.mubr.f32.mxu0 0.0
    %2364 = vmatmul.mubr.f32.gmra.mrb[0].mxu0 %v1922
    %v2365 = vpop.f32.mrb[0].mxu0
    %v2366 = vadd.f32 0.0, %v2365
    %v2367 = vpop.f32.mrb[0].mxu0
    %2368 = vmatprep.mubr.f32.mxu0 0.0
    %2369 = vmatmul.mubr.f32.gmra.mrb[0].mxu0 %v1925
    %v2370 = vpop.f32.mrb[0].mxu0
    %v2371 = vadd.f32 0.0, %v2370
    %v2372 = vpop.f32.mrb[0].mxu0
    %2373 = vmatprep.mubr.f32.mxu0 0.0
    %2374 = vmatmul.mubr.f32.gmra.mrb[0].mxu0 %v2151
    %v2375 = vpop.f32.mrb[0].mxu0
    %v2376 = vadd.f32 0.0, %v2375
    %v2377 = vpop.f32.mrb[0].mxu0
    %2378 = vmatprep.mubr.f32.mxu0 0.0
    %2379 = vmatmul.mubr.f32.gmra.mrb[0].mxu0 %v2277
    %v2380 = vpop.f32.mrb[0].mxu0
    %v2381 = vadd.f32 0.0, %v2380
    %v2382 = vpop.f32.mrb[0].mxu0
    %2383 = vdwg.mxu0
    %v2384 = vadd.f32 %v2258, %v2346
    %v2385 = vadd.f32 %v2259, %v2351
    %v2386 = vadd.f32 %v2260, %v2356
    %v2387 = vadd.f32 %v2261, %v2361
    %v2388 = vadd.f32 %v2262, %v2366
    %v2389 = vadd.f32 %v2263, %v2371
    %v2390 = vadd.f32 %v2264, %v2376
    %v2391 = vadd.f32 %v2265, %v2381
    %s2392 = scalar_lea.vmem %s3, 288
    %v2393 = vld [vmem:[%s2392] sm:$0xff]
    %v2394 = vld [vmem:[%s2392 + $0x8] sm:$0xff]
    %v2395 = vld [vmem:[%s2392 + $0x10] sm:$0xff]
    %v2396 = vld [vmem:[%s2392 + $0x18] sm:$0xff]
    %v2397 = vld [vmem:[%s2392 + $0x20] sm:$0xff]
    %v2398 = vld [vmem:[%s2392 + $0x28] sm:$0xff]
    %v2399 = vld [vmem:[%s2392 + $0x30] sm:$0xff]
    %v2400 = vld [vmem:[%s2392 + $0x38] sm:$0xff]
    %v2401 = vld [vmem:[%s2392 + $0x40] sm:$0xff]
    %v2403 = vsel %vm1902, %v1882, 0
    %2405 = vmatprep.subr.mxu0 0.0
    %2406 = vmatpush1.msra.mxu0 %v2393
    %2407 = vmatprep.subr.mxu0 0.0
    %2408 = vmatpush1.msra.mxu0 %v2394
    %2409 = vmatprep.subr.mxu0 0.0
    %2410 = vmatpush1.msra.mxu0 %v2395
    %2411 = vmatprep.subr.mxu0 0.0
    %2412 = vmatpush1.msra.mxu0 %v2396
    %2413 = vmatprep.subr.mxu0 0.0
    %2414 = vmatpush1.msra.mxu0 %v2397
    %2415 = vmatprep.subr.mxu0 0.0
    %2416 = vmatpush1.msra.mxu0 %v2398
    %2417 = vmatprep.subr.mxu0 0.0
    %2418 = vmatpush1.msra.mxu0 %v2399
    %2419 = vmatprep.subr.mxu0 0.0
    %2420 = vmatpush1.msra.mxu0 %v2400
    %2421 = vmatprep.subr.mxu0 0.0
    %2422 = vmatpush1.msra.mxu0 %v2401
    %2423 = vmatprep.subr.mxu0 0.0
    %2424 = vmatpush1.msra.mxu0 0.0
    %2425 = vmatprep.subr.mxu0 0.0
    %2426 = vmatpush1.msra.mxu0 0.0
    %2427 = vmatprep.subr.mxu0 0.0
    %2428 = vmatpush1.msra.mxu0 0.0
    %2429 = vmatprep.subr.mxu0 0.0
    %2430 = vmatpush1.msra.mxu0 0.0
    %2431 = vmatprep.subr.mxu0 0.0
    %2432 = vmatpush1.msra.mxu0 0.0
    %2433 = vmatprep.subr.mxu0 0.0
    %2434 = vmatpush1.msra.mxu0 0.0
    %2435 = vmatprep.subr.mxu0 0.0
    %2436 = vmatpush1.msra.mxu0 0.0
    %2437 = vmatprep.subr.mxu0 0.0
    %2438 = vmatpush1.msra.mxu0 0.0
    %2439 = vmatprep.subr.mxu0 0.0
    %2440 = vmatpush1.msra.mxu0 0.0
    %2441 = vmatprep.subr.mxu0 0.0
    %2442 = vmatpush1.msra.mxu0 0.0
    %2443 = vmatprep.subr.mxu0 0.0
    %2444 = vmatpush1.msra.mxu0 0.0
    %2445 = vmatprep.subr.mxu0 0.0
    %2446 = vmatpush1.msra.mxu0 0.0
    %2447 = vmatprep.subr.mxu0 0.0
    %2448 = vmatpush1.msra.mxu0 0.0
    %2449 = vmatprep.subr.mxu0 0.0
    %2450 = vmatpush1.msra.mxu0 0.0
    %2451 = vmatprep.subr.mxu0 0.0
    %2452 = vmatpush1.msra.mxu0 0.0
    %2453 = vmatprep.subr.mxu0 0.0
    %2454 = vmatpush1.msra.mxu0 0.0
    %2455 = vmatprep.subr.mxu0 0.0
    %2456 = vmatpush1.msra.mxu0 0.0
    %2457 = vmatprep.subr.mxu0 0.0
    %2458 = vmatpush1.msra.mxu0 0.0
    %2459 = vmatprep.subr.mxu0 0.0
    %2460 = vmatpush1.msra.mxu0 0.0
    %2461 = vmatprep.subr.mxu0 0.0
    %2462 = vmatpush1.msra.mxu0 0.0
    %2463 = vmatprep.subr.mxu0 0.0
    %2464 = vmatpush1.msra.mxu0 0.0
    %2465 = vmatprep.subr.mxu0 0.0
    %2466 = vmatpush1.msra.mxu0 0.0
    %2467 = vmatprep.subr.mxu0 0.0
    %2468 = vmatpush1.msra.mxu0 0.0
    %2469 = vmatprep.mubr.f32.mxu0 0.0
    %2470 = vmatmul.mubr.f32.gmra.mrb[0].mxu0 %v1913
    %v2471 = vpop.f32.mrb[0].mxu0
    %v2472 = vadd.f32 0.0, %v2471
    %v2473 = vpop.f32.mrb[0].mxu0
    %2474 = vmatprep.mubr.f32.mxu0 0.0
    %2475 = vmatmul.mubr.f32.gmra.mrb[0].mxu0 %v1916
    %v2476 = vpop.f32.mrb[0].mxu0
    %v2477 = vadd.f32 0.0, %v2476
    %v2478 = vpop.f32.mrb[0].mxu0
    %2479 = vmatprep.mubr.f32.mxu0 0.0
    %2480 = vmatmul.mubr.f32.gmra.mrb[0].mxu0 %v1919
    %v2481 = vpop.f32.mrb[0].mxu0
    %v2482 = vadd.f32 0.0, %v2481
    %v2483 = vpop.f32.mrb[0].mxu0
    %2484 = vmatprep.mubr.f32.mxu0 0.0
    %2485 = vmatmul.mubr.f32.gmra.mrb[0].mxu0 %v1922
    %v2486 = vpop.f32.mrb[0].mxu0
    %v2487 = vadd.f32 0.0, %v2486
    %v2488 = vpop.f32.mrb[0].mxu0
    %2489 = vmatprep.mubr.f32.mxu0 0.0
    %2490 = vmatmul.mubr.f32.gmra.mrb[0].mxu0 %v1925
    %v2491 = vpop.f32.mrb[0].mxu0
    %v2492 = vadd.f32 0.0, %v2491
    %v2493 = vpop.f32.mrb[0].mxu0
    %2494 = vmatprep.mubr.f32.mxu0 0.0
    %2495 = vmatmul.mubr.f32.gmra.mrb[0].mxu0 %v2151
    %v2496 = vpop.f32.mrb[0].mxu0
    %v2497 = vadd.f32 0.0, %v2496
    %v2498 = vpop.f32.mrb[0].mxu0
    %2499 = vmatprep.mubr.f32.mxu0 0.0
    %2500 = vmatmul.mubr.f32.gmra.mrb[0].mxu0 %v2277
    %v2501 = vpop.f32.mrb[0].mxu0
    %v2502 = vadd.f32 0.0, %v2501
    %v2503 = vpop.f32.mrb[0].mxu0
    %2504 = vmatprep.mubr.f32.mxu0 0.0
    %2505 = vmatmul.mubr.f32.gmra.mrb[0].mxu0 %v2403
    %v2506 = vpop.f32.mrb[0].mxu0
    %v2507 = vadd.f32 0.0, %v2506
    %v2508 = vpop.f32.mrb[0].mxu0
    %2509 = vdwg.mxu0
    %v2510 = vadd.f32 %v2384, %v2472
    %v2511 = vadd.f32 %v2385, %v2477
    %v2512 = vadd.f32 %v2386, %v2482
    %v2513 = vadd.f32 %v2387, %v2487
    %v2514 = vadd.f32 %v2388, %v2492
    %v2515 = vadd.f32 %v2389, %v2497
    %v2516 = vadd.f32 %v2390, %v2502
    %v2517 = vadd.f32 %v2391, %v2507
    %v2518 = vmax.f32 %v2510, %v2511
    %v2519 = vmax.f32 %v2512, %v2513
    %v2520 = vmax.f32 %v2514, %v2515
    %v2521 = vmax.f32 %v2516, %v2517
    %2526 = vrot.lane.b32.xlu0 %v2518, 64
    %v2527 = vpop.permute.xlu0 %2526
    %2528 = vrot.lane.b32.xlu0 %v2519, 64
    %v2529 = vpop.permute.xlu0 %2528
    %2530 = vrot.lane.b32.xlu0 %v2520, 64
    %v2531 = vpop.permute.xlu0 %2530
    %2532 = vrot.lane.b32.xlu0 %v2521, 64
    %v2533 = vpop.permute.xlu0 %2532
    %v2538 = vmax.f32 %v2518, %v2527
    %v2539 = vmax.f32 %v2519, %v2529
    %v2540 = vmax.f32 %v2520, %v2531
    %v2541 = vmax.f32 %v2521, %v2533
    %v2542 = vld [vmem:[%s4] sm:$0x1]
    %v2544 = vlaneseq
    %v2545 = vshrl.u32 %v2544, 7
    %v2546 = vsub.s32 0, %v2545
    %v2547 = vrot.slane %v2542, %v2546
    %v2549 = vadd.f32 %v2538, %v2547
    %v2550 = vadd.f32 %v2539, %v2547
    %v2551 = vadd.f32 %v2540, %v2547
    %v2552 = vadd.f32 %v2541, %v2547
    %v2553 = vmax.f32 %v2549, 0.0
    %v2554 = vmax.f32 %v2550, 0.0
    %v2555 = vmax.f32 %v2551, 0.0
    %v2556 = vmax.f32 %v2552, 0.0
    %v2557 = vld [vmem:[#allocation4] sm:$0xff]
    %v2558 = vld [vmem:[#allocation4 + $0x8] sm:$0xff]
    %v2559 = vld [vmem:[#allocation4 + $0x10] sm:$0xff]
    %v2560 = vld [vmem:[#allocation4 + $0x18] sm:$0xff]
    %v2561 = vld [vmem:[#allocation4 + $0x20] sm:$0xff]
    %v2562 = vld [vmem:[#allocation4 + $0x28] sm:$0xff]
    %v2563 = vld [vmem:[#allocation4 + $0x30] sm:$0xff]
    %v2564 = vld [vmem:[#allocation4 + $0x38] sm:$0xff]
    %s2565 = scalar_lea.vmem [#allocation4], 64
    %v2566 = vld [vmem:[%s2565] sm:$0xff]
    %v2567 = vld [vmem:[%s2565 + $0x8] sm:$0xff]
    %v2568 = vld [vmem:[%s2565 + $0x10] sm:$0xff]
    %v2569 = vld [vmem:[%s2565 + $0x18] sm:$0xff]
    %v2570 = vld [vmem:[%s2565 + $0x20] sm:$0xff]
    %v2571 = vld [vmem:[%s2565 + $0x28] sm:$0xff]
    %v2572 = vld [vmem:[%s2565 + $0x30] sm:$0xff]
    %v2573 = vld [vmem:[%s2565 + $0x38] sm:$0xff]
    %vm2574 = vcmask 523264
    %v2576 = vsel %vm2574, %v2554, 0
    %2578 = vmatprep.subr.mxu0 0.0
    %2579 = vmatpush1.msra.mxu0 %v2566
    %2580 = vmatprep.subr.mxu0 0.0
    %2581 = vmatpush1.msra.mxu0 %v2567
    %2582 = vmatprep.subr.mxu0 0.0
    %2583 = vmatpush1.msra.mxu0 %v2568
    %2584 = vmatprep.subr.mxu0 0.0
    %2585 = vmatpush1.msra.mxu0 %v2569
    %2586 = vmatprep.subr.mxu0 0.0
    %2587 = vmatpush1.msra.mxu0 %v2570
    %2588 = vmatprep.subr.mxu0 0.0
    %2589 = vmatpush1.msra.mxu0 %v2571
    %2590 = vmatprep.subr.mxu0 0.0
    %2591 = vmatpush1.msra.mxu0 %v2572
    %2592 = vmatprep.subr.mxu0 0.0
    %2593 = vmatpush1.msra.mxu0 %v2573
    %2594 = vmatprep.subr.mxu0 0.0
    %2595 = vmatpush1.msra.mxu0 0.0
    %2596 = vmatprep.subr.mxu0 0.0
    %2597 = vmatpush1.msra.mxu0 0.0
    %2598 = vmatprep.subr.mxu0 0.0
    %2599 = vmatpush1.msra.mxu0 0.0
    %2600 = vmatprep.subr.mxu0 0.0
    %2601 = vmatpush1.msra.mxu0 0.0
    %2602 = vmatprep.subr.mxu0 0.0
    %2603 = vmatpush1.msra.mxu0 0.0
    %2604 = vmatprep.subr.mxu0 0.0
    %2605 = vmatpush1.msra.mxu0 0.0
    %2606 = vmatprep.subr.mxu0 0.0
    %2607 = vmatpush1.msra.mxu0 0.0
    %2608 = vmatprep.subr.mxu0 0.0
    %2609 = vmatpush1.msra.mxu0 0.0
    %2610 = vmatprep.subr.mxu0 0.0
    %2611 = vmatpush1.msra.mxu0 0.0
    %2612 = vmatprep.subr.mxu0 0.0
    %2613 = vmatpush1.msra.mxu0 0.0
    %2614 = vmatprep.subr.mxu0 0.0
    %2615 = vmatpush1.msra.mxu0 0.0
    %2616 = vmatprep.subr.mxu0 0.0
    %2617 = vmatpush1.msra.mxu0 0.0
    %2618 = vmatprep.subr.mxu0 0.0
    %2619 = vmatpush1.msra.mxu0 0.0
    %2620 = vmatprep.subr.mxu0 0.0
    %2621 = vmatpush1.msra.mxu0 0.0
    %2622 = vmatprep.subr.mxu0 0.0
    %2623 = vmatpush1.msra.mxu0 0.0
    %2624 = vmatprep.subr.mxu0 0.0
    %2625 = vmatpush1.msra.mxu0 0.0
    %2626 = vmatprep.subr.mxu0 0.0
    %2627 = vmatpush1.msra.mxu0 0.0
    %2628 = vmatprep.subr.mxu0 0.0
    %2629 = vmatpush1.msra.mxu0 0.0
    %2630 = vmatprep.subr.mxu0 0.0
    %2631 = vmatpush1.msra.mxu0 0.0
    %2632 = vmatprep.subr.mxu0 0.0
    %2633 = vmatpush1.msra.mxu0 0.0
    %2634 = vmatprep.subr.mxu0 0.0
    %2635 = vmatpush1.msra.mxu0 0.0
    %2636 = vmatprep.subr.mxu0 0.0
    %2637 = vmatpush1.msra.mxu0 0.0
    %2638 = vmatprep.subr.mxu0 0.0
    %2639 = vmatpush1.msra.mxu0 0.0
    %2640 = vmatprep.subr.mxu0 0.0
    %2641 = vmatpush1.msra.mxu0 0.0
    %2642 = vmatprep.mubr.f32.mxu0 0.0
    %2643 = vmatmul.mubr.f32.gmra.mrb[0].mxu0 %v2576
    %v2644 = vpop.f32.mrb[0].mxu0
    %v2645 = vadd.f32 0.0, %v2644
    %v2646 = vpop.f32.mrb[0].mxu0
    %2647 = vdwg.mxu0
    %v2649 = vsel %vm2574, %v2553, 0
    %2651 = vmatprep.subr.mxu0 0.0
    %2652 = vmatpush1.msra.mxu0 %v2557
    %2653 = vmatprep.subr.mxu0 0.0
    %2654 = vmatpush1.msra.mxu0 %v2558
    %2655 = vmatprep.subr.mxu0 0.0
    %2656 = vmatpush1.msra.mxu0 %v2559
    %2657 = vmatprep.subr.mxu0 0.0
    %2658 = vmatpush1.msra.mxu0 %v2560
    %2659 = vmatprep.subr.mxu0 0.0
    %2660 = vmatpush1.msra.mxu0 %v2561
    %2661 = vmatprep.subr.mxu0 0.0
    %2662 = vmatpush1.msra.mxu0 %v2562
    %2663 = vmatprep.subr.mxu0 0.0
    %2664 = vmatpush1.msra.mxu0 %v2563
    %2665 = vmatprep.subr.mxu0 0.0
    %2666 = vmatpush1.msra.mxu0 %v2564
    %2667 = vmatprep.subr.mxu0 0.0
    %2668 = vmatpush1.msra.mxu0 0.0
    %2669 = vmatprep.subr.mxu0 0.0
    %2670 = vmatpush1.msra.mxu0 0.0
    %2671 = vmatprep.subr.mxu0 0.0
    %2672 = vmatpush1.msra.mxu0 0.0
    %2673 = vmatprep.subr.mxu0 0.0
    %2674 = vmatpush1.msra.mxu0 0.0
    %2675 = vmatprep.subr.mxu0 0.0
    %2676 = vmatpush1.msra.mxu0 0.0
    %2677 = vmatprep.subr.mxu0 0.0
    %2678 = vmatpush1.msra.mxu0 0.0
    %2679 = vmatprep.subr.mxu0 0.0
    %2680 = vmatpush1.msra.mxu0 0.0
    %2681 = vmatprep.subr.mxu0 0.0
    %2682 = vmatpush1.msra.mxu0 0.0
    %2683 = vmatprep.subr.mxu0 0.0
    %2684 = vmatpush1.msra.mxu0 0.0
    %2685 = vmatprep.subr.mxu0 0.0
    %2686 = vmatpush1.msra.mxu0 0.0
    %2687 = vmatprep.subr.mxu0 0.0
    %2688 = vmatpush1.msra.mxu0 0.0
    %2689 = vmatprep.subr.mxu0 0.0
    %2690 = vmatpush1.msra.mxu0 0.0
    %2691 = vmatprep.subr.mxu0 0.0
    %2692 = vmatpush1.msra.mxu0 0.0
    %2693 = vmatprep.subr.mxu0 0.0
    %2694 = vmatpush1.msra.mxu0 0.0
    %2695 = vmatprep.subr.mxu0 0.0
    %2696 = vmatpush1.msra.mxu0 0.0
    %2697 = vmatprep.subr.mxu0 0.0
    %2698 = vmatpush1.msra.mxu0 0.0
    %2699 = vmatprep.subr.mxu0 0.0
    %2700 = vmatpush1.msra.mxu0 0.0
    %2701 = vmatprep.subr.mxu0 0.0
    %2702 = vmatpush1.msra.mxu0 0.0
    %2703 = vmatprep.subr.mxu0 0.0
    %2704 = vmatpush1.msra.mxu0 0.0
    %2705 = vmatprep.subr.mxu0 0.0
    %2706 = vmatpush1.msra.mxu0 0.0
    %2707 = vmatprep.subr.mxu0 0.0
    %2708 = vmatpush1.msra.mxu0 0.0
    %2709 = vmatprep.subr.mxu0 0.0
    %2710 = vmatpush1.msra.mxu0 0.0
    %2711 = vmatprep.subr.mxu0 0.0
    %2712 = vmatpush1.msra.mxu0 0.0
    %2713 = vmatprep.subr.mxu0 0.0
    %2714 = vmatpush1.msra.mxu0 0.0
    %2715 = vmatprep.mubr.f32.mxu0 0.0
    %2716 = vmatmul.mubr.f32.gmra.mrb[0].mxu0 %v2649
    %v2717 = vpop.f32.mrb[0].mxu0
    %v2718 = vadd.f32 %v2645, %v2717
    %v2719 = vpop.f32.mrb[0].mxu0
    %2720 = vdwg.mxu0
    %s2721 = scalar_lea.vmem [#allocation4], 128
    %v2722 = vld [vmem:[%s2721] sm:$0xff]
    %v2723 = vld [vmem:[%s2721 + $0x8] sm:$0xff]
    %v2724 = vld [vmem:[%s2721 + $0x10] sm:$0xff]
    %v2725 = vld [vmem:[%s2721 + $0x18] sm:$0xff]
    %v2726 = vld [vmem:[%s2721 + $0x20] sm:$0xff]
    %v2727 = vld [vmem:[%s2721 + $0x28] sm:$0xff]
    %v2728 = vld [vmem:[%s2721 + $0x30] sm:$0xff]
    %v2729 = vld [vmem:[%s2721 + $0x38] sm:$0xff]
    %v2731 = vsel %vm2574, %v2555, 0
    %2733 = vmatprep.subr.mxu0 0.0
    %2734 = vmatpush1.msra.mxu0 %v2722
    %2735 = vmatprep.subr.mxu0 0.0
    %2736 = vmatpush1.msra.mxu0 %v2723
    %2737 = vmatprep.subr.mxu0 0.0
    %2738 = vmatpush1.msra.mxu0 %v2724
    %2739 = vmatprep.subr.mxu0 0.0
    %2740 = vmatpush1.msra.mxu0 %v2725
    %2741 = vmatprep.subr.mxu0 0.0
    %2742 = vmatpush1.msra.mxu0 %v2726
    %2743 = vmatprep.subr.mxu0 0.0
    %2744 = vmatpush1.msra.mxu0 %v2727
    %2745 = vmatprep.subr.mxu0 0.0
    %2746 = vmatpush1.msra.mxu0 %v2728
    %2747 = vmatprep.subr.mxu0 0.0
    %2748 = vmatpush1.msra.mxu0 %v2729
    %2749 = vmatprep.subr.mxu0 0.0
    %2750 = vmatpush1.msra.mxu0 0.0
    %2751 = vmatprep.subr.mxu0 0.0
    %2752 = vmatpush1.msra.mxu0 0.0
    %2753 = vmatprep.subr.mxu0 0.0
    %2754 = vmatpush1.msra.mxu0 0.0
    %2755 = vmatprep.subr.mxu0 0.0
    %2756 = vmatpush1.msra.mxu0 0.0
    %2757 = vmatprep.subr.mxu0 0.0
    %2758 = vmatpush1.msra.mxu0 0.0
    %2759 = vmatprep.subr.mxu0 0.0
    %2760 = vmatpush1.msra.mxu0 0.0
    %2761 = vmatprep.subr.mxu0 0.0
    %2762 = vmatpush1.msra.mxu0 0.0
    %2763 = vmatprep.subr.mxu0 0.0
    %2764 = vmatpush1.msra.mxu0 0.0
    %2765 = vmatprep.subr.mxu0 0.0
    %2766 = vmatpush1.msra.mxu0 0.0
    %2767 = vmatprep.subr.mxu0 0.0
    %2768 = vmatpush1.msra.mxu0 0.0
    %2769 = vmatprep.subr.mxu0 0.0
    %2770 = vmatpush1.msra.mxu0 0.0
    %2771 = vmatprep.subr.mxu0 0.0
    %2772 = vmatpush1.msra.mxu0 0.0
    %2773 = vmatprep.subr.mxu0 0.0
    %2774 = vmatpush1.msra.mxu0 0.0
    %2775 = vmatprep.subr.mxu0 0.0
    %2776 = vmatpush1.msra.mxu0 0.0
    %2777 = vmatprep.subr.mxu0 0.0
    %2778 = vmatpush1.msra.mxu0 0.0
    %2779 = vmatprep.subr.mxu0 0.0
    %2780 = vmatpush1.msra.mxu0 0.0
    %2781 = vmatprep.subr.mxu0 0.0
    %2782 = vmatpush1.msra.mxu0 0.0
    %2783 = vmatprep.subr.mxu0 0.0
    %2784 = vmatpush1.msra.mxu0 0.0
    %2785 = vmatprep.subr.mxu0 0.0
    %2786 = vmatpush1.msra.mxu0 0.0
    %2787 = vmatprep.subr.mxu0 0.0
    %2788 = vmatpush1.msra.mxu0 0.0
    %2789 = vmatprep.subr.mxu0 0.0
    %2790 = vmatpush1.msra.mxu0 0.0
    %2791 = vmatprep.subr.mxu0 0.0
    %2792 = vmatpush1.msra.mxu0 0.0
    %2793 = vmatprep.subr.mxu0 0.0
    %2794 = vmatpush1.msra.mxu0 0.0
    %2795 = vmatprep.subr.mxu0 0.0
    %2796 = vmatpush1.msra.mxu0 0.0
    %2797 = vmatprep.mubr.f32.mxu0 0.0
    %2798 = vmatmul.mubr.f32.gmra.mrb[0].mxu0 %v2731
    %v2799 = vpop.f32.mrb[0].mxu0
    %v2800 = vadd.f32 0.0, %v2799
    %v2801 = vpop.f32.mrb[0].mxu0
    %2802 = vdwg.mxu0
    %v2803 = vadd.f32 %v2718, %v2800
    %s2804 = scalar_lea.vmem [#allocation4], 192
    %v2805 = vld [vmem:[%s2804] sm:$0xff]
    %v2806 = vld [vmem:[%s2804 + $0x8] sm:$0xff]
    %v2807 = vld [vmem:[%s2804 + $0x10] sm:$0xff]
    %v2808 = vld [vmem:[%s2804 + $0x18] sm:$0xff]
    %v2809 = vld [vmem:[%s2804 + $0x20] sm:$0xff]
    %v2810 = vld [vmem:[%s2804 + $0x28] sm:$0xff]
    %v2811 = vld [vmem:[%s2804 + $0x30] sm:$0xff]
    %v2812 = vld [vmem:[%s2804 + $0x38] sm:$0xff]
    %v2814 = vsel %vm2574, %v2556, 0
    %2816 = vmatprep.subr.mxu0 0.0
    %2817 = vmatpush1.msra.mxu0 %v2805
    %2818 = vmatprep.subr.mxu0 0.0
    %2819 = vmatpush1.msra.mxu0 %v2806
    %2820 = vmatprep.subr.mxu0 0.0
    %2821 = vmatpush1.msra.mxu0 %v2807
    %2822 = vmatprep.subr.mxu0 0.0
    %2823 = vmatpush1.msra.mxu0 %v2808
    %2824 = vmatprep.subr.mxu0 0.0
    %2825 = vmatpush1.msra.mxu0 %v2809
    %2826 = vmatprep.subr.mxu0 0.0
    %2827 = vmatpush1.msra.mxu0 %v2810
    %2828 = vmatprep.subr.mxu0 0.0
    %2829 = vmatpush1.msra.mxu0 %v2811
    %2830 = vmatprep.subr.mxu0 0.0
    %2831 = vmatpush1.msra.mxu0 %v2812
    %2832 = vmatprep.subr.mxu0 0.0
    %2833 = vmatpush1.msra.mxu0 0.0
    %2834 = vmatprep.subr.mxu0 0.0
    %2835 = vmatpush1.msra.mxu0 0.0
    %2836 = vmatprep.subr.mxu0 0.0
    %2837 = vmatpush1.msra.mxu0 0.0
    %2838 = vmatprep.subr.mxu0 0.0
    %2839 = vmatpush1.msra.mxu0 0.0
    %2840 = vmatprep.subr.mxu0 0.0
    %2841 = vmatpush1.msra.mxu0 0.0
    %2842 = vmatprep.subr.mxu0 0.0
    %2843 = vmatpush1.msra.mxu0 0.0
    %2844 = vmatprep.subr.mxu0 0.0
    %2845 = vmatpush1.msra.mxu0 0.0
    %2846 = vmatprep.subr.mxu0 0.0
    %2847 = vmatpush1.msra.mxu0 0.0
    %2848 = vmatprep.subr.mxu0 0.0
    %2849 = vmatpush1.msra.mxu0 0.0
    %2850 = vmatprep.subr.mxu0 0.0
    %2851 = vmatpush1.msra.mxu0 0.0
    %2852 = vmatprep.subr.mxu0 0.0
    %2853 = vmatpush1.msra.mxu0 0.0
    %2854 = vmatprep.subr.mxu0 0.0
    %2855 = vmatpush1.msra.mxu0 0.0
    %2856 = vmatprep.subr.mxu0 0.0
    %2857 = vmatpush1.msra.mxu0 0.0
    %2858 = vmatprep.subr.mxu0 0.0
    %2859 = vmatpush1.msra.mxu0 0.0
    %2860 = vmatprep.subr.mxu0 0.0
    %2861 = vmatpush1.msra.mxu0 0.0
    %2862 = vmatprep.subr.mxu0 0.0
    %2863 = vmatpush1.msra.mxu0 0.0
    %2864 = vmatprep.subr.mxu0 0.0
    %2865 = vmatpush1.msra.mxu0 0.0
    %2866 = vmatprep.subr.mxu0 0.0
    %2867 = vmatpush1.msra.mxu0 0.0
    %2868 = vmatprep.subr.mxu0 0.0
    %2869 = vmatpush1.msra.mxu0 0.0
    %2870 = vmatprep.subr.mxu0 0.0
    %2871 = vmatpush1.msra.mxu0 0.0
    %2872 = vmatprep.subr.mxu0 0.0
    %2873 = vmatpush1.msra.mxu0 0.0
    %2874 = vmatprep.subr.mxu0 0.0
    %2875 = vmatpush1.msra.mxu0 0.0
    %2876 = vmatprep.subr.mxu0 0.0
    %2877 = vmatpush1.msra.mxu0 0.0
    %2878 = vmatprep.subr.mxu0 0.0
    %2879 = vmatpush1.msra.mxu0 0.0
    %2880 = vmatprep.mubr.f32.mxu0 0.0
    %2881 = vmatmul.mubr.f32.gmra.mrb[0].mxu0 %v2814
    %v2882 = vpop.f32.mrb[0].mxu0
    %v2883 = vadd.f32 0.0, %v2882
    %v2884 = vpop.f32.mrb[0].mxu0
    %2885 = vdwg.mxu0
    %v2886 = vadd.f32 %v2803, %v2883
    %v2887 = vld [vmem:[%s6] sm:$0x1]
    %v2889 = vlaneseq
    %v2890 = vshrl.u32 %v2889, 7
    %v2891 = vsub.s32 0, %v2890
    %v2892 = vrot.slane %v2887, %v2891
    %v2894 = vadd.f32 %v2886, %v2892
    %v2895 = vmax.f32 %v2894, 0.0
    %v2896 = vld [vmem:[%s7] sm:$0xff]
    %v2897 = vld [vmem:[%s7 + $0x8] sm:$0xff]
    %v2898 = vld [vmem:[%s7 + $0x10] sm:$0xff]
    %v2899 = vld [vmem:[%s7 + $0x18] sm:$0xff]
    %v2900 = vld [vmem:[%s7 + $0x20] sm:$0xff]
    %v2901 = vld [vmem:[%s7 + $0x28] sm:$0xff]
    %v2902 = vld [vmem:[%s7 + $0x30] sm:$0xff]
    %v2903 = vld [vmem:[%s7 + $0x38] sm:$0xff]
    %v2904 = vld [vmem:[%s7 + $0x40] sm:$0xff]
    %v2905 = vld [vmem:[%s7 + $0x48] sm:$0xff]
    %v2906 = vld [vmem:[%s7 + $0x50] sm:$0xff]
    %v2907 = vld [vmem:[%s7 + $0x58] sm:$0xff]
    %v2908 = vld [vmem:[%s7 + $0x60] sm:$0xff]
    %v2909 = vld [vmem:[%s7 + $0x68] sm:$0xff]
    %v2910 = vld [vmem:[%s7 + $0x70] sm:$0xff]
    %v2911 = vld [vmem:[%s8] sm:$0x1]
    %v2913 = vlaneseq
    %v2914 = vshrl.u32 %v2913, 7
    %v2915 = vsub.s32 0, %v2914
    %v2916 = vrot.slane %v2911, %v2915
    %vm2918 = vcmask 982016
    %v2920 = vsel %vm2918, %v2895, 0
    %2922 = vmatprep.subr.mxu0 0.0
    %2923 = vmatpush1.msra.mxu0 %v2896
    %2924 = vmatprep.subr.mxu0 0.0
    %2925 = vmatpush1.msra.mxu0 %v2897
    %2926 = vmatprep.subr.mxu0 0.0
    %2927 = vmatpush1.msra.mxu0 %v2898
    %2928 = vmatprep.subr.mxu0 0.0
    %2929 = vmatpush1.msra.mxu0 %v2899
    %2930 = vmatprep.subr.mxu0 0.0
    %2931 = vmatpush1.msra.mxu0 %v2900
    %2932 = vmatprep.subr.mxu0 0.0
    %2933 = vmatpush1.msra.mxu0 %v2901
    %2934 = vmatprep.subr.mxu0 0.0
    %2935 = vmatpush1.msra.mxu0 %v2902
    %2936 = vmatprep.subr.mxu0 0.0
    %2937 = vmatpush1.msra.mxu0 %v2903
    %2938 = vmatprep.subr.mxu0 0.0
    %2939 = vmatpush1.msra.mxu0 %v2904
    %2940 = vmatprep.subr.mxu0 0.0
    %2941 = vmatpush1.msra.mxu0 %v2905
    %2942 = vmatprep.subr.mxu0 0.0
    %2943 = vmatpush1.msra.mxu0 %v2906
    %2944 = vmatprep.subr.mxu0 0.0
    %2945 = vmatpush1.msra.mxu0 %v2907
    %2946 = vmatprep.subr.mxu0 0.0
    %2947 = vmatpush1.msra.mxu0 %v2908
    %2948 = vmatprep.subr.mxu0 0.0
    %2949 = vmatpush1.msra.mxu0 %v2909
    %2950 = vmatprep.subr.mxu0 0.0
    %2951 = vmatpush1.msra.mxu0 %v2910
    %2952 = vmatprep.subr.mxu0 0.0
    %2953 = vmatpush1.msra.mxu0 0.0
    %2954 = vmatprep.subr.mxu0 0.0
    %2955 = vmatpush1.msra.mxu0 0.0
    %2956 = vmatprep.subr.mxu0 0.0
    %2957 = vmatpush1.msra.mxu0 0.0
    %2958 = vmatprep.subr.mxu0 0.0
    %2959 = vmatpush1.msra.mxu0 0.0
    %2960 = vmatprep.subr.mxu0 0.0
    %2961 = vmatpush1.msra.mxu0 0.0
    %2962 = vmatprep.subr.mxu0 0.0
    %2963 = vmatpush1.msra.mxu0 0.0
    %2964 = vmatprep.subr.mxu0 0.0
    %2965 = vmatpush1.msra.mxu0 0.0
    %2966 = vmatprep.subr.mxu0 0.0
    %2967 = vmatpush1.msra.mxu0 0.0
    %2968 = vmatprep.subr.mxu0 0.0
    %2969 = vmatpush1.msra.mxu0 0.0
    %2970 = vmatprep.subr.mxu0 0.0
    %2971 = vmatpush1.msra.mxu0 0.0
    %2972 = vmatprep.subr.mxu0 0.0
    %2973 = vmatpush1.msra.mxu0 0.0
    %2974 = vmatprep.subr.mxu0 0.0
    %2975 = vmatpush1.msra.mxu0 0.0
    %2976 = vmatprep.subr.mxu0 0.0
    %2977 = vmatpush1.msra.mxu0 0.0
    %2978 = vmatprep.subr.mxu0 0.0
    %2979 = vmatpush1.msra.mxu0 0.0
    %2980 = vmatprep.subr.mxu0 0.0
    %2981 = vmatpush1.msra.mxu0 0.0
    %2982 = vmatprep.subr.mxu0 0.0
    %2983 = vmatpush1.msra.mxu0 0.0
    %2984 = vmatprep.subr.mxu0 0.0
    %2985 = vmatpush1.msra.mxu0 0.0
    %2986 = vmatprep.mubr.f32.mxu0 0.0
    %2987 = vmatmul.mubr.f32.gmra.mrb[0].mxu0 %v2920
    %v2988 = vpop.f32.mrb[0].mxu0
    %v2989 = vadd.f32 %v2916, %v2988
    %v2990 = vpop.f32.mrb[0].mxu0
    %2991 = vdwg.mxu0
    %v2992 = vmax.f32 %v2989, 0.0
    %v2993 = vld [vmem:[%s9] sm:$0xff]
    %v2994 = vld [vmem:[%s9 + $0x8] sm:$0xff]
    %v2995 = vld [vmem:[%s9 + $0x10] sm:$0xff]
    %v2996 = vld [vmem:[%s9 + $0x18] sm:$0xff]
    %v2997 = vld [vmem:[%s9 + $0x20] sm:$0xff]
    %v2998 = vld [vmem:[%s9 + $0x28] sm:$0xff]
    %v2999 = vld [vmem:[%s9 + $0x30] sm:$0xff]
    %v3000 = vld [vmem:[%s9 + $0x38] sm:$0xff]
    %v3001 = vld [vmem:[%s9 + $0x40] sm:$0xff]
    %v3002 = vld [vmem:[%s9 + $0x48] sm:$0xff]
    %v3003 = vld [vmem:[%s9 + $0x50] sm:$0xf]
    %v3004 = vld [vmem:[%s10] sm:$0x1]
    %v3006 = vlaneseq
    %v3007 = vshrl.u32 %v3006, 7
    %v3008 = vsub.s32 0, %v3007
    %v3009 = vrot.slane %v3004, %v3008
    %vm3011 = vcmask 687104
    %v3013 = vsel %vm3011, %v2992, 0
    %v3016 = vsel %vm181, %v3003, 0
    %3018 = vmatprep.subr.mxu0 0.0
    %3019 = vmatpush1.msra.mxu0 %v2993
    %3020 = vmatprep.subr.mxu0 0.0
    %3021 = vmatpush1.msra.mxu0 %v2994
    %3022 = vmatprep.subr.mxu0 0.0
    %3023 = vmatpush1.msra.mxu0 %v2995
    %3024 = vmatprep.subr.mxu0 0.0
    %3025 = vmatpush1.msra.mxu0 %v2996
    %3026 = vmatprep.subr.mxu0 0.0
    %3027 = vmatpush1.msra.mxu0 %v2997
    %3028 = vmatprep.subr.mxu0 0.0
    %3029 = vmatpush1.msra.mxu0 %v2998
    %3030 = vmatprep.subr.mxu0 0.0
    %3031 = vmatpush1.msra.mxu0 %v2999
    %3032 = vmatprep.subr.mxu0 0.0
    %3033 = vmatpush1.msra.mxu0 %v3000
    %3034 = vmatprep.subr.mxu0 0.0
    %3035 = vmatpush1.msra.mxu0 %v3001
    %3036 = vmatprep.subr.mxu0 0.0
    %3037 = vmatpush1.msra.mxu0 %v3002
    %3038 = vmatprep.subr.mxu0 0.0
    %3039 = vmatpush1.msra.mxu0 %v3016
    %3040 = vmatprep.subr.mxu0 0.0
    %3041 = vmatpush1.msra.mxu0 0.0
    %3042 = vmatprep.subr.mxu0 0.0
    %3043 = vmatpush1.msra.mxu0 0.0
    %3044 = vmatprep.subr.mxu0 0.0
    %3045 = vmatpush1.msra.mxu0 0.0
    %3046 = vmatprep.subr.mxu0 0.0
    %3047 = vmatpush1.msra.mxu0 0.0
    %3048 = vmatprep.subr.mxu0 0.0
    %3049 = vmatpush1.msra.mxu0 0.0
    %3050 = vmatprep.subr.mxu0 0.0
    %3051 = vmatpush1.msra.mxu0 0.0
    %3052 = vmatprep.subr.mxu0 0.0
    %3053 = vmatpush1.msra.mxu0 0.0
    %3054 = vmatprep.subr.mxu0 0.0
    %3055 = vmatpush1.msra.mxu0 0.0
    %3056 = vmatprep.subr.mxu0 0.0
    %3057 = vmatpush1.msra.mxu0 0.0
    %3058 = vmatprep.subr.mxu0 0.0
    %3059 = vmatpush1.msra.mxu0 0.0
    %3060 = vmatprep.subr.mxu0 0.0
    %3061 = vmatpush1.msra.mxu0 0.0
    %3062 = vmatprep.subr.mxu0 0.0
    %3063 = vmatpush1.msra.mxu0 0.0
    %3064 = vmatprep.subr.mxu0 0.0
    %3065 = vmatpush1.msra.mxu0 0.0
    %3066 = vmatprep.subr.mxu0 0.0
    %3067 = vmatpush1.msra.mxu0 0.0
    %3068 = vmatprep.subr.mxu0 0.0
    %3069 = vmatpush1.msra.mxu0 0.0
    %3070 = vmatprep.subr.mxu0 0.0
    %3071 = vmatpush1.msra.mxu0 0.0
    %3072 = vmatprep.subr.mxu0 0.0
    %3073 = vmatpush1.msra.mxu0 0.0
    %3074 = vmatprep.subr.mxu0 0.0
    %3075 = vmatpush1.msra.mxu0 0.0
    %3076 = vmatprep.subr.mxu0 0.0
    %3077 = vmatpush1.msra.mxu0 0.0
    %3078 = vmatprep.subr.mxu0 0.0
    %3079 = vmatpush1.msra.mxu0 0.0
    %3080 = vmatprep.subr.mxu0 0.0
    %3081 = vmatpush1.msra.mxu0 0.0
    %3082 = vmatprep.mubr.f32.mxu0 0.0
    %3083 = vmatmul.mubr.f32.gmra.mrb[0].mxu0 %v3013
    %v3084 = vpop.f32.mrb[0].mxu0
    %v3085 = vadd.f32 %v3009, %v3084
    %v3086 = vpop.f32.mrb[0].mxu0
    %3087 = vdwg.mxu0
    %3088 = vst [vmem:[%s11] sm:$0xff] %v3085
    // Predicated region
    $region54: #{lenet_forward.1} parent=1 // pred_check
      _
    $region55: #{lenet_forward.1} parent=1 // pred_check_branch
      %3090 = sbr.rel (0) target = $region57
    $region56: #{lenet_forward.1} parent=1 // pred_region
      _
    $region57: #{lenet_forward.1} parent=1 // pred_fallthru
      _
    // Predicated region
    $region58: #{lenet_forward.1} parent=1 // pred_check
      _
    $region59: #{lenet_forward.1} parent=1 // pred_check_branch
      %3092 = sbr.rel (0) target = $region61
    $region60: #{lenet_forward.1} parent=1 // pred_region
      _
    $region61: #{lenet_forward.1} parent=1 // pred_fallthru
      _
    %3093 = vsyncpa [#allocation3], 1
    %3094 = vsyncpa [#allocation5], 1

</llo_original>
